<compile_context>
chip_gen: v7x
topology: tpu7x:2x2x1
jax: 0.10.0
libtpu: 0.0.40
codegen_flags: <defaults>
</compile_context>

<pallas_src>
import functools

import jax
import jax.numpy as jnp
import numpy as np
from jax import lax
from jax.experimental import pallas as pl
from jax.experimental.pallas import tpu as pltpu


def _ctrgc_sum_kernel(x_ref, w1_ref, b1_ref, w2_ref, b2_ref, w3_ref, b3_ref,
                      aw4_ref, ab4_ref, kacat_ref, kacol_ref, qt_ref,
                      y_ref, stats_ref, xk_ref, *, nb, s_sub, r_ch, cout,
                      t_len, v_len):
    f32 = jnp.float32
    TV = t_len * v_len
    TRANS_B = (((1,), (1,)), ((), ()))        # contract the two minor dims

    x = x_ref[...]                            # (NB*Cin, TV), lane-dense

    # Hoisted subset-invariant contraction: one lane-dense matmul against the
    # lane-concatenated [kron(I_T,A_s^T) ... | kron(I_T, 1_{VxV})] operand.
    xk_ref[...] = jnp.dot(x, kacat_ref[...], preferred_element_type=f32)

    # Time-pooled, channel-transposed mean: xbart[v, n*Cin+c] = mean_t x[n,c,t,v].
    xbart = lax.dot_general(qt_ref[...], x, TRANS_B,
                            preferred_element_type=f32)              # (V, NB*Cin)

    # Block-diagonal 1s mask = kron(I_T, ones(V,V)) (last lane-slice of kacat).
    mask = kacat_ref[:, s_sub * TV:(s_sub + 1) * TV]                  # (TV, TV)

    y_ref[...] = jnp.zeros((nb * cout, TV), f32)

    for s in range(s_sub):                    # adjacency subsets, static unroll
        w3 = w3_ref[s]                        # (NB*Cout, NB*Cin) block-diagonal
        b3 = b3_ref[s]                        # (NB*Cout, 1)
        ab4 = ab4_ref[s]                      # (NB*Cout, 1) == alpha * b4
        aw4 = aw4_ref[s]                      # (Cout, R)    == alpha * w4

        # conv3 (needed by the channel-wise refinement below).
        x3 = jnp.dot(w3, x, preferred_element_type=f32) + b3          # (NB*Cout, TV)

        # A-term: x3 @ kron(I_T, A_s^T) == w3 @ (x @ ka_s) + b3 * colsum(ka_s).
        xks = xk_ref[:, s * TV:(s + 1) * TV]
        za = jnp.dot(w3, xks, preferred_element_type=f32) + b3 * kacol_ref[s]

        # conv4-bias term: alpha*b4*(x3 @ mask) == ab4 * (w3 @ (x@mask) + V*b3).
        xm = xk_ref[:, s_sub * TV:(s_sub + 1) * TV]
        zb = ab4 * (jnp.dot(w3, xm, preferred_element_type=f32)
                    + float(v_len) * b3)

        y_ref[...] += za + zb

        # Channel-wise refinement (per-sample tanh relation matrices).
        x1m = lax.dot_general(w1_ref[s], xbart, TRANS_B,
                              preferred_element_type=f32) + b1_ref[s]  # (NB*R, V)
        x2t = lax.dot_general(xbart, w2_ref[s], TRANS_B,
                              preferred_element_type=f32) + b2_ref[s]  # (V, NB*R)

        for n in range(nb):                   # samples in this block
            x3n = x3[n * cout:(n + 1) * cout, :]                       # (Cout, TV)
            zc = jnp.zeros((cout, TV), f32)
            for r in range(r_ch):             # rel channels (R = 2)
                nr = n * r_ch + r
                # d[v, u] = tanh(x1[u] - x2[v]); bulk tanh on a (V, V) tile.
                d = jnp.tanh(x1m[nr:nr + 1, :] - x2t[:, nr:nr + 1])    # (V, V)
                # kron(I_T, d) without matmuls: lane-tile, sublane-tile, mask.
                row = jnp.concatenate([d] * t_len, axis=1)             # (V, TV)
                k = mask * jnp.concatenate([row] * t_len, axis=0)      # (TV, TV)
                g = jnp.dot(x3n, k, preferred_element_type=f32)        # (Cout, TV)
                zc = zc + aw4[:, r:r + 1] * g
            y_ref[pl.ds(n * cout, cout), :] += zc

    # Per-block first/second moments for the BatchNorm batch statistics,
    # emitted as a single lane-packed (Cout, 2) store.
    s1 = jnp.zeros((cout, 1), f32)
    s2 = jnp.zeros((cout, 1), f32)
    for n in range(nb):
        yn = y_ref[pl.ds(n * cout, cout), :]
        s1 = s1 + jnp.sum(yn, axis=1, keepdims=True)
        s2 = s2 + jnp.sum(yn * yn, axis=1, keepdims=True)
    stats_ref[0] = jnp.concatenate([s1, s2], axis=1)


def _bn_residual_relu_kernel(y_ref, x_ref, scale_ref, shift_ref, o_ref):
    o_ref[...] = jnp.maximum(
        y_ref[...] * scale_ref[...] + shift_ref[...] + x_ref[...], 0.0)


def _pick_nb(n, cout):
    """Samples per grid step: fill MXU rows but keep >=2 steps when possible."""
    cap = max(1, 256 // cout)
    divs = [d for d in range(1, n + 1) if n % d == 0 and d <= cap]
    multi = [d for d in divs if n // d >= 2]
    return max(multi) if multi else max(divs)


def _pick_rows(rows, cap=1024):
    """Row-block for the HBM-bound epilogue: big, divides rows, 8-aligned."""
    divs = [d for d in range(1, rows + 1)
            if rows % d == 0 and d <= cap and (d % 8 == 0 or d == rows)]
    return max(divs) if divs else rows


def unit_gcn_forward(x, params, nb=None):
    N, Cin, T, V = x.shape
    S, Cout, _ = params['w3'].shape
    R = params['w1'].shape[1]
    assert Cin == Cout  # residual is identity in this configuration
    # TODO(synk): the `down` (1x1 conv + BN) residual branch for in_channels != out_channels is not implemented.
    TV = T * V
    f32 = jnp.float32

    NB = _pick_nb(N, Cout) if nb is None else nb
    assert N % NB == 0
    G = N // NB

    x2d = x.astype(f32).reshape(N * Cin, TV)          # lane-dense (T*V = 128)

    alpha = params['alpha'].astype(f32)[0]
    i_t = jnp.eye(T, dtype=f32)
    i_b = jnp.eye(NB, dtype=f32)
    mask = jnp.kron(i_t, jnp.ones((V, V), f32))                      # (TV, TV)
    ka = jnp.stack([jnp.kron(i_t, params['A'][s].astype(f32).T)
                    for s in range(S)])                              # (S, TV, TV)
    kacat = jnp.concatenate([ka[s] for s in range(S)] + [mask], axis=1)  # (TV,(S+1)TV)
    kacol = jnp.sum(ka, axis=1, keepdims=True)                       # (S, 1, TV)
    # Time-mean pooling operator, already transposed and scaled by 1/T.
    qt = jnp.kron(jnp.ones((1, T), f32), jnp.eye(V, dtype=f32)) / T  # (V, TV)

    def blkdiag(w):          # (a, b) -> (NB*a, NB*b) block-diagonal lift
        return jnp.kron(i_b, w.astype(f32))

    def col_tile(b):         # (a,) -> (NB*a, 1), per-sample repeat
        return jnp.tile(b.astype(f32), NB).reshape(NB * b.shape[0], 1)

    w1_blk = jnp.stack([blkdiag(params['w1'][s]) for s in range(S)])
    w2_blk = jnp.stack([blkdiag(params['w2'][s]) for s in range(S)])
    w3_blk = jnp.stack([blkdiag(params['w3'][s]) for s in range(S)])
    b1_blk = jnp.stack([col_tile(params['b1'][s]) for s in range(S)])
    b2_row = jnp.stack([col_tile(params['b2'][s]).reshape(1, NB * R)
                        for s in range(S)])
    b3_blk = jnp.stack([col_tile(params['b3'][s]) for s in range(S)])
    # alpha folded into the conv4 parameters (exact).
    ab4_blk = jnp.stack([col_tile(alpha * params['b4'][s]) for s in range(S)])
    aw4 = alpha * params['w4'].astype(f32)                           # (S, Cout, R)

    kernel = functools.partial(
        _ctrgc_sum_kernel, nb=NB, s_sub=S, r_ch=R, cout=Cout,
        t_len=T, v_len=V)

    y2d, stats = pl.pallas_call(
        kernel,
        out_shape=(jax.ShapeDtypeStruct((N * Cout, TV), f32),
                   jax.ShapeDtypeStruct((G, Cout, 2), f32)),
        grid=(G,),
        in_specs=[
            pl.BlockSpec((NB * Cin, TV), lambda i: (i, 0)),              # x
            pl.BlockSpec((S, NB * R, NB * Cin), lambda i: (0, 0, 0)),    # w1 blockdiag
            pl.BlockSpec((S, NB * R, 1), lambda i: (0, 0, 0)),           # b1
            pl.BlockSpec((S, NB * R, NB * Cin), lambda i: (0, 0, 0)),    # w2 blockdiag
            pl.BlockSpec((S, 1, NB * R), lambda i: (0, 0, 0)),           # b2 (row)
            pl.BlockSpec((S, NB * Cout, NB * Cin), lambda i: (0, 0, 0)), # w3 blockdiag
            pl.BlockSpec((S, NB * Cout, 1), lambda i: (0, 0, 0)),        # b3
            pl.BlockSpec((S, Cout, R), lambda i: (0, 0, 0)),             # alpha*w4
            pl.BlockSpec((S, NB * Cout, 1), lambda i: (0, 0, 0)),        # alpha*b4
            pl.BlockSpec((TV, (S + 1) * TV), lambda i: (0, 0)),          # [ka... | mask]
            pl.BlockSpec((S, 1, TV), lambda i: (0, 0, 0)),               # colsum(ka)
            pl.BlockSpec((V, TV), lambda i: (0, 0)),                     # pooling op
        ],
        out_specs=(pl.BlockSpec((NB * Cout, TV), lambda i: (i, 0)),
                   pl.BlockSpec((1, Cout, 2), lambda i: (i, 0, 0))),
        scratch_shapes=[pltpu.VMEM((NB * Cin, (S + 1) * TV), f32)],
        compiler_params=pltpu.CompilerParams(dimension_semantics=("parallel",)),
    )(x2d, w1_blk, b1_blk, w2_blk, b2_row, w3_blk, b3_blk, aw4, ab4_blk,
      kacat, kacol, qt)

    # BatchNorm2d (training-mode forward: batch statistics) from the in-kernel
    # per-block moments.
    # TODO(synk): E[x^2]-E[x]^2 can cancel in f32 at much larger N*T*V; switch
    # to a two-pass/Welford reduction before scaling up.
    eps = 1e-5
    cnt = float(N * T * V)
    tot = jnp.sum(stats, axis=0)                       # (Cout, 2)
    mean = tot[:, 0] / cnt
    var = jnp.maximum(tot[:, 1] / cnt - mean * mean, 0.0)
    scale = params['gamma'].astype(f32) * lax.rsqrt(var + eps)
    shift = params['beta'].astype(f32) - mean * scale

    rows = N * Cout
    scale2d = jnp.tile(scale[None, :], (N, 1)).reshape(rows, 1)
    shift2d = jnp.tile(shift[None, :], (N, 1)).reshape(rows, 1)
    RB = _pick_rows(rows)

    out2d = pl.pallas_call(
        _bn_residual_relu_kernel,
        out_shape=jax.ShapeDtypeStruct((rows, TV), f32),
        grid=(rows // RB,),
        in_specs=[
            pl.BlockSpec((RB, TV), lambda i: (i, 0)),
            pl.BlockSpec((RB, TV), lambda i: (i, 0)),
            pl.BlockSpec((RB, 1), lambda i: (i, 0)),
            pl.BlockSpec((RB, 1), lambda i: (i, 0)),
        ],
        out_specs=pl.BlockSpec((RB, TV), lambda i: (i, 0)),
        input_output_aliases={0: 0},
        compiler_params=pltpu.CompilerParams(dimension_semantics=("parallel",)),
    )(y2d, x2d, scale2d, shift2d)

    return out2d.reshape(N, Cout, T, V)


def unit_gcn_reference(x, params):
    """Pure-JAX reference mirroring the PyTorch forward (training-mode BN)."""
    S = params['A'].shape[0]
    alpha = params['alpha'][0]
    y = None
    for s in range(S):
        h1 = jnp.einsum('rc,nctv->nrtv', params['w1'][s], x) + params['b1'][s][None, :, None, None]
        h2 = jnp.einsum('rc,nctv->nrtv', params['w2'][s], x) + params['b2'][s][None, :, None, None]
        x1 = h1.mean(axis=2)                                           # (N, R, V)
        x2 = h2.mean(axis=2)
        x3 = jnp.einsum('oc,nctv->notv', params['w3'][s], x) + params['b3'][s][None, :, None, None]
        d = jnp.tanh(x1[:, :, :, None] - x2[:, :, None, :])            # (N, R, V, V)
        m = jnp.einsum('or,nruv->nouv', params['w4'][s], d) + params['b4'][s][None, :, None, None]
        m = m * alpha + params['A'][s][None, None]
        z = jnp.einsum('ncuv,nctv->nctu', m, x3)
        y = z if y is None else y + z
    eps = 1e-5
    mean = jnp.mean(y, axis=(0, 2, 3), keepdims=True)
    var = jnp.mean((y - mean) ** 2, axis=(0, 2, 3), keepdims=True)
    yb = (params['gamma'][None, :, None, None] * (y - mean) / jnp.sqrt(var + eps)
          + params['beta'][None, :, None, None])
    return jax.nn.relu(yb + x)


if __name__ == "__main__":
    # Small shapes consistent with unit_gcn: N=4, C_in=C_out=16, T=8, V=16, 3 subsets.
    N, Cin, Cout, T, V, S = 4, 16, 16, 8, 16, 3
    R = Cin // 8  # rel_channels (rel_reduction=8)

    key = jax.random.PRNGKey(0)
    ks = jax.random.split(key, 10)
    # Deterministic synthetic parameters.  Kaiming(fan_out)-scaled conv weights;
    # alpha/gamma are set nonzero/1.0 (the module inits them to 0 / 1e-6) so the
    # whole compute path is numerically exercised.
    params = {
        'w1': jax.random.normal(ks[0], (S, R, Cin), jnp.float32) * np.sqrt(2.0 / R),
        'b1': jax.random.normal(ks[1], (S, R), jnp.float32) * 0.05,
        'w2': jax.random.normal(ks[2], (S, R, Cin), jnp.float32) * np.sqrt(2.0 / R),
        'b2': jax.random.normal(ks[3], (S, R), jnp.float32) * 0.05,
        'w3': jax.random.normal(ks[4], (S, Cout, Cin), jnp.float32) * np.sqrt(2.0 / Cout),
        'b3': jax.random.normal(ks[5], (S, Cout), jnp.float32) * 0.05,
        'w4': jax.random.normal(ks[6], (S, Cout, R), jnp.float32) * np.sqrt(2.0 / Cout),
        'b4': jax.random.normal(ks[7], (S, Cout), jnp.float32) * 0.05,
        'A':  jax.random.normal(ks[8], (S, V, V), jnp.float32) * 0.3,   # PA
        'alpha': jnp.array([0.5], jnp.float32),
        'gamma': jnp.ones((Cout,), jnp.float32),
        'beta':  jnp.zeros((Cout,), jnp.float32),
    }
    x = jax.random.normal(ks[9], (N, Cin, T, V), jnp.float32)

    fwd = jax.jit(unit_gcn_forward)
    out = jax.block_until_ready(fwd(x, params))
    ref = jax.block_until_ready(unit_gcn_reference(x, params))
    np.testing.assert_allclose(np.asarray(out), np.asarray(ref), rtol=5e-4, atol=5e-4)
    print("KERNEL_OK")
</pallas_src>

<mosaic_0001>
module attributes {stable_mosaic.version = 11 : i64} {
  func.func @_ctrgc_sum_kernel(%arg0: i32, %arg1: memref<32x128xf32, #tpu.memory_space<vmem>>, %arg2: memref<3x4x32xf32, #tpu.memory_space<vmem>>, %arg3: memref<3x4x1xf32, #tpu.memory_space<vmem>>, %arg4: memref<3x4x32xf32, #tpu.memory_space<vmem>>, %arg5: memref<3x1x4xf32, #tpu.memory_space<vmem>>, %arg6: memref<3x32x32xf32, #tpu.memory_space<vmem>>, %arg7: memref<3x32x1xf32, #tpu.memory_space<vmem>>, %arg8: memref<3x16x2xf32, #tpu.memory_space<vmem>>, %arg9: memref<3x32x1xf32, #tpu.memory_space<vmem>>, %arg10: memref<128x512xf32, #tpu.memory_space<vmem>>, %arg11: memref<3x1x128xf32, #tpu.memory_space<vmem>>, %arg12: memref<16x128xf32, #tpu.memory_space<vmem>>, %arg13: memref<32x128xf32, #tpu.memory_space<vmem>>, %arg14: memref<1x16x2xf32, #tpu.memory_space<vmem>>, %arg15: memref<32x512xf32, #tpu.memory_space<vmem>>) attributes {dimension_semantics = [#tpu.dimension_semantics<parallel>], iteration_bounds = array<i64: 2>, scalar_prefetch = 0 : i64, scratch_operands = 1 : i64, tpu.core_type = #tpu.core_type<tc>, window_params = [{transform_indices = @transform_0, window_bounds = array<i64: 32, 128>}, {pipeline_mode = #tpu.pipeline_mode<synchronous>, transform_indices = @transform_1, window_bounds = array<i64: 3, 4, 32>}, {pipeline_mode = #tpu.pipeline_mode<synchronous>, transform_indices = @transform_2, window_bounds = array<i64: 3, 4, 1>}, {pipeline_mode = #tpu.pipeline_mode<synchronous>, transform_indices = @transform_3, window_bounds = array<i64: 3, 4, 32>}, {pipeline_mode = #tpu.pipeline_mode<synchronous>, transform_indices = @transform_4, window_bounds = array<i64: 3, 1, 4>}, {pipeline_mode = #tpu.pipeline_mode<synchronous>, transform_indices = @transform_5, window_bounds = array<i64: 3, 32, 32>}, {pipeline_mode = #tpu.pipeline_mode<synchronous>, transform_indices = @transform_6, window_bounds = array<i64: 3, 32, 1>}, {pipeline_mode = #tpu.pipeline_mode<synchronous>, transform_indices = @transform_7, window_bounds = array<i64: 3, 16, 2>}, {pipeline_mode = #tpu.pipeline_mode<synchronous>, transform_indices = @transform_8, window_bounds = array<i64: 3, 32, 1>}, {pipeline_mode = #tpu.pipeline_mode<synchronous>, transform_indices = @transform_9, window_bounds = array<i64: 128, 512>}, {pipeline_mode = #tpu.pipeline_mode<synchronous>, transform_indices = @transform_10, window_bounds = array<i64: 3, 1, 128>}, {pipeline_mode = #tpu.pipeline_mode<synchronous>, transform_indices = @transform_11, window_bounds = array<i64: 16, 128>}, {transform_indices = @transform_12, window_bounds = array<i64: 32, 128>}, {transform_indices = @transform_13, window_bounds = array<i64: 1, 16, 2>}]} {
    %c0 = arith.constant 0 : index
    %c0_0 = arith.constant 0 : index
    %0 = vector.load %arg1[%c0, %c0_0] : memref<32x128xf32, #tpu.memory_space<vmem>>, vector<32x128xf32>
    %c0_1 = arith.constant 0 : index
    %c0_2 = arith.constant 0 : index
    %1 = vector.load %arg10[%c0_1, %c0_2] : memref<128x512xf32, #tpu.memory_space<vmem>>, vector<128x512xf32>
    %cst = arith.constant dense<0.000000e+00> : vector<32x512xf32>
    %2 = tpu.matmul %0, %1, %cst {dimension_numbers = #tpu.dot_dimension_numbers<[1], [0], [0], [1], [0, 0, 1, 1], [], []>} : vector<32x128xf32>, vector<128x512xf32>, vector<32x512xf32> -> vector<32x512xf32>
    %c0_3 = arith.constant 0 : index
    %c0_4 = arith.constant 0 : index
    %3 = vector.load %arg15[%c0_3, %c0_4] : memref<32x512xf32, #tpu.memory_space<vmem>>, vector<32x512xf32>
    tpu.vector_store %arg15[%c0_3, %c0_4], %2 {strides = array<i32>} : memref<32x512xf32, #tpu.memory_space<vmem>>, vector<32x512xf32>,
    %c0_5 = arith.constant 0 : index
    %c0_6 = arith.constant 0 : index
    %4 = vector.load %arg12[%c0_5, %c0_6] : memref<16x128xf32, #tpu.memory_space<vmem>>, vector<16x128xf32>
    %cst_7 = arith.constant dense<0.000000e+00> : vector<16x32xf32>
    %5 = tpu.matmul %4, %0, %cst_7 {dimension_numbers = #tpu.dot_dimension_numbers<[1], [1], [0], [0], [0, 0, 1, 0], [], []>} : vector<16x128xf32>, vector<32x128xf32>, vector<16x32xf32> -> vector<16x32xf32>
    %c0_8 = arith.constant 0 : index
    %c384 = arith.constant 384 : index
    %6 = vector.load %arg10[%c0_8, %c384] : memref<128x512xf32, #tpu.memory_space<vmem>>, vector<128x128xf32>
    %cst_9 = arith.constant 0.000000e+00 : f32
    %7 = vector.broadcast %cst_9 : f32 to vector<32x128xf32>
    %c0_10 = arith.constant 0 : index
    %c0_11 = arith.constant 0 : index
    %8 = vector.load %arg13[%c0_10, %c0_11] : memref<32x128xf32, #tpu.memory_space<vmem>>, vector<32x128xf32>
    tpu.vector_store %arg13[%c0_10, %c0_11], %7 {strides = array<i32>} : memref<32x128xf32, #tpu.memory_space<vmem>>, vector<32x128xf32>,
    %c0_12 = arith.constant 0 : index
    %c0_13 = arith.constant 0 : index
    %c0_14 = arith.constant 0 : index
    %9 = vector.load %arg6[%c0_12, %c0_13, %c0_14] : memref<3x32x32xf32, #tpu.memory_space<vmem>>, vector<1x32x32xf32>
    %10 = vector.shape_cast %9 : vector<1x32x32xf32> to vector<32x32xf32>
    %c0_15 = arith.constant 0 : index
    %c0_16 = arith.constant 0 : index
    %c0_17 = arith.constant 0 : index
    %11 = vector.load %arg7[%c0_15, %c0_16, %c0_17] : memref<3x32x1xf32, #tpu.memory_space<vmem>>, vector<1x32x1xf32>
    %12 = vector.shape_cast %11 : vector<1x32x1xf32> to vector<32x1xf32>
    %c0_18 = arith.constant 0 : index
    %c0_19 = arith.constant 0 : index
    %c0_20 = arith.constant 0 : index
    %13 = vector.load %arg9[%c0_18, %c0_19, %c0_20] : memref<3x32x1xf32, #tpu.memory_space<vmem>>, vector<1x32x1xf32>
    %14 = vector.shape_cast %13 : vector<1x32x1xf32> to vector<32x1xf32>
    %c0_21 = arith.constant 0 : index
    %c0_22 = arith.constant 0 : index
    %c0_23 = arith.constant 0 : index
    %15 = vector.load %arg8[%c0_21, %c0_22, %c0_23] : memref<3x16x2xf32, #tpu.memory_space<vmem>>, vector<1x16x2xf32>
    %16 = vector.shape_cast %15 : vector<1x16x2xf32> to vector<16x2xf32>
    %cst_24 = arith.constant dense<0.000000e+00> : vector<32x128xf32>
    %17 = tpu.matmul %10, %0, %cst_24 {dimension_numbers = #tpu.dot_dimension_numbers<[1], [0], [0], [1], [0, 0, 1, 1], [], []>} : vector<32x32xf32>, vector<32x128xf32>, vector<32x128xf32> -> vector<32x128xf32>
    %18 = vector.broadcast %12 : vector<32x1xf32> to vector<32x128xf32>
    %19 = arith.addf %17, %18 : vector<32x128xf32>
    %c0_25 = arith.constant 0 : index
    %c0_26 = arith.constant 0 : index
    %20 = vector.load %arg15[%c0_25, %c0_26] : memref<32x512xf32, #tpu.memory_space<vmem>>, vector<32x128xf32>
    %cst_27 = arith.constant dense<0.000000e+00> : vector<32x128xf32>
    %21 = tpu.matmul %10, %20, %cst_27 {dimension_numbers = #tpu.dot_dimension_numbers<[1], [0], [0], [1], [0, 0, 1, 1], [], []>} : vector<32x32xf32>, vector<32x128xf32>, vector<32x128xf32> -> vector<32x128xf32>
    %c0_28 = arith.constant 0 : index
    %c0_29 = arith.constant 0 : index
    %c0_30 = arith.constant 0 : index
    %22 = vector.load %arg11[%c0_28, %c0_29, %c0_30] : memref<3x1x128xf32, #tpu.memory_space<vmem>>, vector<1x1x128xf32>
    %23 = vector.shape_cast %22 : vector<1x1x128xf32> to vector<1x128xf32>
    %24 = vector.broadcast %12 : vector<32x1xf32> to vector<32x128xf32>
    %25 = vector.broadcast %23 : vector<1x128xf32> to vector<32x128xf32>
    %26 = arith.mulf %24, %25 : vector<32x128xf32>
    %27 = arith.addf %21, %26 : vector<32x128xf32>
    %c0_31 = arith.constant 0 : index
    %c384_32 = arith.constant 384 : index
    %28 = vector.load %arg15[%c0_31, %c384_32] : memref<32x512xf32, #tpu.memory_space<vmem>>, vector<32x128xf32>
    %cst_33 = arith.constant dense<0.000000e+00> : vector<32x128xf32>
    %29 = tpu.matmul %10, %28, %cst_33 {dimension_numbers = #tpu.dot_dimension_numbers<[1], [0], [0], [1], [0, 0, 1, 1], [], []>} : vector<32x32xf32>, vector<32x128xf32>, vector<32x128xf32> -> vector<32x128xf32>
    %cst_34 = arith.constant 1.600000e+01 : f32
    %30 = vector.broadcast %cst_34 : f32 to vector<32x1xf32>
    %31 = arith.mulf %30, %12 : vector<32x1xf32>
    %32 = vector.broadcast %31 : vector<32x1xf32> to vector<32x128xf32>
    %33 = arith.addf %29, %32 : vector<32x128xf32>
    %34 = vector.broadcast %14 : vector<32x1xf32> to vector<32x128xf32>
    %35 = arith.mulf %34, %33 : vector<32x128xf32>
    %c0_35 = arith.constant 0 : index
    %c0_36 = arith.constant 0 : index
    %36 = vector.load %arg13[%c0_35, %c0_36] : memref<32x128xf32, #tpu.memory_space<vmem>>, vector<32x128xf32>
    %37 = arith.addf %27, %35 : vector<32x128xf32>
    %38 = arith.addf %36, %37 : vector<32x128xf32>
    %c0_37 = arith.constant 0 : index
    %c0_38 = arith.constant 0 : index
    %39 = vector.load %arg13[%c0_37, %c0_38] : memref<32x128xf32, #tpu.memory_space<vmem>>, vector<32x128xf32>
    tpu.vector_store %arg13[%c0_37, %c0_38], %38 {strides = array<i32>} : memref<32x128xf32, #tpu.memory_space<vmem>>, vector<32x128xf32>,
    %c0_39 = arith.constant 0 : index
    %c0_40 = arith.constant 0 : index
    %c0_41 = arith.constant 0 : index
    %40 = vector.load %arg2[%c0_39, %c0_40, %c0_41] : memref<3x4x32xf32, #tpu.memory_space<vmem>>, vector<1x4x32xf32>
    %41 = vector.shape_cast %40 : vector<1x4x32xf32> to vector<4x32xf32>
    %cst_42 = arith.constant dense<0.000000e+00> : vector<4x16xf32>
    %42 = tpu.matmul %41, %5, %cst_42 {dimension_numbers = #tpu.dot_dimension_numbers<[1], [1], [0], [0], [0, 0, 1, 0], [], []>} : vector<4x32xf32>, vector<16x32xf32>, vector<4x16xf32> -> vector<4x16xf32>
    %c0_43 = arith.constant 0 : index
    %c0_44 = arith.constant 0 : index
    %c0_45 = arith.constant 0 : index
    %43 = vector.load %arg3[%c0_43, %c0_44, %c0_45] : memref<3x4x1xf32, #tpu.memory_space<vmem>>, vector<1x4x1xf32>
    %44 = vector.shape_cast %43 : vector<1x4x1xf32> to vector<4x1xf32>
    %45 = vector.broadcast %44 : vector<4x1xf32> to vector<4x16xf32>
    %46 = arith.addf %42, %45 : vector<4x16xf32>
    %c0_46 = arith.constant 0 : index
    %c0_47 = arith.constant 0 : index
    %c0_48 = arith.constant 0 : index
    %47 = vector.load %arg4[%c0_46, %c0_47, %c0_48] : memref<3x4x32xf32, #tpu.memory_space<vmem>>, vector<1x4x32xf32>
    %48 = vector.shape_cast %47 : vector<1x4x32xf32> to vector<4x32xf32>
    %cst_49 = arith.constant dense<0.000000e+00> : vector<16x4xf32>
    %49 = tpu.matmul %5, %48, %cst_49 {dimension_numbers = #tpu.dot_dimension_numbers<[1], [1], [0], [0], [0, 0, 1, 0], [], []>} : vector<16x32xf32>, vector<4x32xf32>, vector<16x4xf32> -> vector<16x4xf32>
    %c0_50 = arith.constant 0 : index
    %c0_51 = arith.constant 0 : index
    %c0_52 = arith.constant 0 : index
    %50 = vector.load %arg5[%c0_50, %c0_51, %c0_52] : memref<3x1x4xf32, #tpu.memory_space<vmem>>, vector<1x1x4xf32>
    %51 = vector.shape_cast %50 : vector<1x1x4xf32> to vector<1x4xf32>
    %52 = vector.broadcast %51 : vector<1x4xf32> to vector<16x4xf32>
    %53 = arith.addf %49, %52 : vector<16x4xf32>
    %54 = vector.extract_strided_slice %19 {offsets = [0, 0], sizes = [16, 128], strides = [1, 1]} : vector<32x128xf32> to vector<16x128xf32>
    %cst_53 = arith.constant 0.000000e+00 : f32
    %55 = vector.broadcast %cst_53 : f32 to vector<16x128xf32>
    %56 = vector.extract_strided_slice %46 {offsets = [0, 0], sizes = [1, 16], strides = [1, 1]} : vector<4x16xf32> to vector<1x16xf32>
    %57 = vector.extract_strided_slice %53 {offsets = [0, 0], sizes = [16, 1], strides = [1, 1]} : vector<16x4xf32> to vector<16x1xf32>
    %58 = vector.broadcast %56 : vector<1x16xf32> to vector<16x16xf32>
    %59 = vector.broadcast %57 : vector<16x1xf32> to vector<16x16xf32>
    %60 = arith.subf %58, %59 : vector<16x16xf32>
    %61 = math.tanh %60 : vector<16x16xf32>
    %62 = tpu.concatenate %61, %61, %61, %61, %61, %61, %61, %61 in 1 : vector<16x16xf32>, vector<16x16xf32>, vector<16x16xf32>, vector<16x16xf32>, vector<16x16xf32>, vector<16x16xf32>, vector<16x16xf32>, vector<16x16xf32> -> vector<16x128xf32>
    %63 = tpu.concatenate %62, %62, %62, %62, %62, %62, %62, %62 in 0 : vector<16x128xf32>, vector<16x128xf32>, vector<16x128xf32>, vector<16x128xf32>, vector<16x128xf32>, vector<16x128xf32>, vector<16x128xf32>, vector<16x128xf32> -> vector<128x128xf32>
    %64 = arith.mulf %6, %63 : vector<128x128xf32>
    %cst_54 = arith.constant dense<0.000000e+00> : vector<16x128xf32>
    %65 = tpu.matmul %54, %64, %cst_54 {dimension_numbers = #tpu.dot_dimension_numbers<[1], [0], [0], [1], [0, 0, 1, 1], [], []>} : vector<16x128xf32>, vector<128x128xf32>, vector<16x128xf32> -> vector<16x128xf32>
    %66 = vector.extract_strided_slice %16 {offsets = [0, 0], sizes = [16, 1], strides = [1, 1]} : vector<16x2xf32> to vector<16x1xf32>
    %67 = vector.broadcast %66 : vector<16x1xf32> to vector<16x128xf32>
    %68 = arith.mulf %67, %65 : vector<16x128xf32>
    %69 = arith.addf %55, %68 : vector<16x128xf32>
    %70 = vector.extract_strided_slice %46 {offsets = [1, 0], sizes = [1, 16], strides = [1, 1]} : vector<4x16xf32> to vector<1x16xf32>
    %71 = vector.extract_strided_slice %53 {offsets = [0, 1], sizes = [16, 1], strides = [1, 1]} : vector<16x4xf32> to vector<16x1xf32>
    %72 = vector.broadcast %70 : vector<1x16xf32> to vector<16x16xf32>
    %73 = vector.broadcast %71 : vector<16x1xf32> to vector<16x16xf32>
    %74 = arith.subf %72, %73 : vector<16x16xf32>
    %75 = math.tanh %74 : vector<16x16xf32>
    %76 = tpu.concatenate %75, %75, %75, %75, %75, %75, %75, %75 in 1 : vector<16x16xf32>, vector<16x16xf32>, vector<16x16xf32>, vector<16x16xf32>, vector<16x16xf32>, vector<16x16xf32>, vector<16x16xf32>, vector<16x16xf32> -> vector<16x128xf32>
    %77 = tpu.concatenate %76, %76, %76, %76, %76, %76, %76, %76 in 0 : vector<16x128xf32>, vector<16x128xf32>, vector<16x128xf32>, vector<16x128xf32>, vector<16x128xf32>, vector<16x128xf32>, vector<16x128xf32>, vector<16x128xf32> -> vector<128x128xf32>
    %78 = arith.mulf %6, %77 : vector<128x128xf32>
    %cst_55 = arith.constant dense<0.000000e+00> : vector<16x128xf32>
    %79 = tpu.matmul %54, %78, %cst_55 {dimension_numbers = #tpu.dot_dimension_numbers<[1], [0], [0], [1], [0, 0, 1, 1], [], []>} : vector<16x128xf32>, vector<128x128xf32>, vector<16x128xf32> -> vector<16x128xf32>
    %80 = vector.extract_strided_slice %16 {offsets = [0, 1], sizes = [16, 1], strides = [1, 1]} : vector<16x2xf32> to vector<16x1xf32>
    %81 = vector.broadcast %80 : vector<16x1xf32> to vector<16x128xf32>
    %82 = arith.mulf %81, %79 : vector<16x128xf32>
    %83 = arith.addf %69, %82 : vector<16x128xf32>
    %c0_56 = arith.constant 0 : index
    %c0_57 = arith.constant 0 : index
    %84 = vector.load %arg13[%c0_56, %c0_57] : memref<32x128xf32, #tpu.memory_space<vmem>>, vector<16x128xf32>
    %85 = arith.addf %84, %83 : vector<16x128xf32>
    %c0_58 = arith.constant 0 : index
    %c0_59 = arith.constant 0 : index
    %86 = vector.load %arg13[%c0_58, %c0_59] : memref<32x128xf32, #tpu.memory_space<vmem>>, vector<16x128xf32>
    tpu.vector_store %arg13[%c0_58, %c0_59], %85 {strides = array<i32>} : memref<32x128xf32, #tpu.memory_space<vmem>>, vector<16x128xf32>,
    %87 = vector.extract_strided_slice %19 {offsets = [16, 0], sizes = [16, 128], strides = [1, 1]} : vector<32x128xf32> to vector<16x128xf32>
    %cst_60 = arith.constant 0.000000e+00 : f32
    %88 = vector.broadcast %cst_60 : f32 to vector<16x128xf32>
    %89 = vector.extract_strided_slice %46 {offsets = [2, 0], sizes = [1, 16], strides = [1, 1]} : vector<4x16xf32> to vector<1x16xf32>
    %90 = vector.extract_strided_slice %53 {offsets = [0, 2], sizes = [16, 1], strides = [1, 1]} : vector<16x4xf32> to vector<16x1xf32>
    %91 = vector.broadcast %89 : vector<1x16xf32> to vector<16x16xf32>
    %92 = vector.broadcast %90 : vector<16x1xf32> to vector<16x16xf32>
    %93 = arith.subf %91, %92 : vector<16x16xf32>
    %94 = math.tanh %93 : vector<16x16xf32>
    %95 = tpu.concatenate %94, %94, %94, %94, %94, %94, %94, %94 in 1 : vector<16x16xf32>, vector<16x16xf32>, vector<16x16xf32>, vector<16x16xf32>, vector<16x16xf32>, vector<16x16xf32>, vector<16x16xf32>, vector<16x16xf32> -> vector<16x128xf32>
    %96 = tpu.concatenate %95, %95, %95, %95, %95, %95, %95, %95 in 0 : vector<16x128xf32>, vector<16x128xf32>, vector<16x128xf32>, vector<16x128xf32>, vector<16x128xf32>, vector<16x128xf32>, vector<16x128xf32>, vector<16x128xf32> -> vector<128x128xf32>
    %97 = arith.mulf %6, %96 : vector<128x128xf32>
    %cst_61 = arith.constant dense<0.000000e+00> : vector<16x128xf32>
    %98 = tpu.matmul %87, %97, %cst_61 {dimension_numbers = #tpu.dot_dimension_numbers<[1], [0], [0], [1], [0, 0, 1, 1], [], []>} : vector<16x128xf32>, vector<128x128xf32>, vector<16x128xf32> -> vector<16x128xf32>
    %99 = vector.extract_strided_slice %16 {offsets = [0, 0], sizes = [16, 1], strides = [1, 1]} : vector<16x2xf32> to vector<16x1xf32>
    %100 = vector.broadcast %99 : vector<16x1xf32> to vector<16x128xf32>
    %101 = arith.mulf %100, %98 : vector<16x128xf32>
    %102 = arith.addf %88, %101 : vector<16x128xf32>
    %103 = vector.extract_strided_slice %46 {offsets = [3, 0], sizes = [1, 16], strides = [1, 1]} : vector<4x16xf32> to vector<1x16xf32>
    %104 = vector.extract_strided_slice %53 {offsets = [0, 3], sizes = [16, 1], strides = [1, 1]} : vector<16x4xf32> to vector<16x1xf32>
    %105 = vector.broadcast %103 : vector<1x16xf32> to vector<16x16xf32>
    %106 = vector.broadcast %104 : vector<16x1xf32> to vector<16x16xf32>
    %107 = arith.subf %105, %106 : vector<16x16xf32>
    %108 = math.tanh %107 : vector<16x16xf32>
    %109 = tpu.concatenate %108, %108, %108, %108, %108, %108, %108, %108 in 1 : vector<16x16xf32>, vector<16x16xf32>, vector<16x16xf32>, vector<16x16xf32>, vector<16x16xf32>, vector<16x16xf32>, vector<16x16xf32>, vector<16x16xf32> -> vector<16x128xf32>
    %110 = tpu.concatenate %109, %109, %109, %109, %109, %109, %109, %109 in 0 : vector<16x128xf32>, vector<16x128xf32>, vector<16x128xf32>, vector<16x128xf32>, vector<16x128xf32>, vector<16x128xf32>, vector<16x128xf32>, vector<16x128xf32> -> vector<128x128xf32>
    %111 = arith.mulf %6, %110 : vector<128x128xf32>
    %cst_62 = arith.constant dense<0.000000e+00> : vector<16x128xf32>
    %112 = tpu.matmul %87, %111, %cst_62 {dimension_numbers = #tpu.dot_dimension_numbers<[1], [0], [0], [1], [0, 0, 1, 1], [], []>} : vector<16x128xf32>, vector<128x128xf32>, vector<16x128xf32> -> vector<16x128xf32>
    %113 = vector.extract_strided_slice %16 {offsets = [0, 1], sizes = [16, 1], strides = [1, 1]} : vector<16x2xf32> to vector<16x1xf32>
    %114 = vector.broadcast %113 : vector<16x1xf32> to vector<16x128xf32>
    %115 = arith.mulf %114, %112 : vector<16x128xf32>
    %116 = arith.addf %102, %115 : vector<16x128xf32>
    %c16 = arith.constant 16 : index
    %c0_63 = arith.constant 0 : index
    %117 = vector.load %arg13[%c16, %c0_63] : memref<32x128xf32, #tpu.memory_space<vmem>>, vector<16x128xf32>
    %118 = arith.addf %117, %116 : vector<16x128xf32>
    %c16_64 = arith.constant 16 : index
    %c0_65 = arith.constant 0 : index
    %119 = vector.load %arg13[%c16_64, %c0_65] : memref<32x128xf32, #tpu.memory_space<vmem>>, vector<16x128xf32>
    tpu.vector_store %arg13[%c16_64, %c0_65], %118 {strides = array<i32>} : memref<32x128xf32, #tpu.memory_space<vmem>>, vector<16x128xf32>,
    %c1 = arith.constant 1 : index
    %c0_66 = arith.constant 0 : index
    %c0_67 = arith.constant 0 : index
    %120 = vector.load %arg6[%c1, %c0_66, %c0_67] : memref<3x32x32xf32, #tpu.memory_space<vmem>>, vector<1x32x32xf32>
    %121 = vector.shape_cast %120 : vector<1x32x32xf32> to vector<32x32xf32>
    %c1_68 = arith.constant 1 : index
    %c0_69 = arith.constant 0 : index
    %c0_70 = arith.constant 0 : index
    %122 = vector.load %arg7[%c1_68, %c0_69, %c0_70] : memref<3x32x1xf32, #tpu.memory_space<vmem>>, vector<1x32x1xf32>
    %123 = vector.shape_cast %122 : vector<1x32x1xf32> to vector<32x1xf32>
    %c1_71 = arith.constant 1 : index
    %c0_72 = arith.constant 0 : index
    %c0_73 = arith.constant 0 : index
    %124 = vector.load %arg9[%c1_71, %c0_72, %c0_73] : memref<3x32x1xf32, #tpu.memory_space<vmem>>, vector<1x32x1xf32>
    %125 = vector.shape_cast %124 : vector<1x32x1xf32> to vector<32x1xf32>
    %c1_74 = arith.constant 1 : index
    %c0_75 = arith.constant 0 : index
    %c0_76 = arith.constant 0 : index
    %126 = vector.load %arg8[%c1_74, %c0_75, %c0_76] : memref<3x16x2xf32, #tpu.memory_space<vmem>>, vector<1x16x2xf32>
    %127 = vector.shape_cast %126 : vector<1x16x2xf32> to vector<16x2xf32>
    %cst_77 = arith.constant dense<0.000000e+00> : vector<32x128xf32>
    %128 = tpu.matmul %121, %0, %cst_77 {dimension_numbers = #tpu.dot_dimension_numbers<[1], [0], [0], [1], [0, 0, 1, 1], [], []>} : vector<32x32xf32>, vector<32x128xf32>, vector<32x128xf32> -> vector<32x128xf32>
    %129 = vector.broadcast %123 : vector<32x1xf32> to vector<32x128xf32>
    %130 = arith.addf %128, %129 : vector<32x128xf32>
    %c0_78 = arith.constant 0 : index
    %c128 = arith.constant 128 : index
    %131 = vector.load %arg15[%c0_78, %c128] : memref<32x512xf32, #tpu.memory_space<vmem>>, vector<32x128xf32>
    %cst_79 = arith.constant dense<0.000000e+00> : vector<32x128xf32>
    %132 = tpu.matmul %121, %131, %cst_79 {dimension_numbers = #tpu.dot_dimension_numbers<[1], [0], [0], [1], [0, 0, 1, 1], [], []>} : vector<32x32xf32>, vector<32x128xf32>, vector<32x128xf32> -> vector<32x128xf32>
    %c1_80 = arith.constant 1 : index
    %c0_81 = arith.constant 0 : index
    %c0_82 = arith.constant 0 : index
    %133 = vector.load %arg11[%c1_80, %c0_81, %c0_82] : memref<3x1x128xf32, #tpu.memory_space<vmem>>, vector<1x1x128xf32>
    %134 = vector.shape_cast %133 : vector<1x1x128xf32> to vector<1x128xf32>
    %135 = vector.broadcast %123 : vector<32x1xf32> to vector<32x128xf32>
    %136 = vector.broadcast %134 : vector<1x128xf32> to vector<32x128xf32>
    %137 = arith.mulf %135, %136 : vector<32x128xf32>
    %138 = arith.addf %132, %137 : vector<32x128xf32>
    %c0_83 = arith.constant 0 : index
    %c384_84 = arith.constant 384 : index
    %139 = vector.load %arg15[%c0_83, %c384_84] : memref<32x512xf32, #tpu.memory_space<vmem>>, vector<32x128xf32>
    %cst_85 = arith.constant dense<0.000000e+00> : vector<32x128xf32>
    %140 = tpu.matmul %121, %139, %cst_85 {dimension_numbers = #tpu.dot_dimension_numbers<[1], [0], [0], [1], [0, 0, 1, 1], [], []>} : vector<32x32xf32>, vector<32x128xf32>, vector<32x128xf32> -> vector<32x128xf32>
    %cst_86 = arith.constant 1.600000e+01 : f32
    %141 = vector.broadcast %cst_86 : f32 to vector<32x1xf32>
    %142 = arith.mulf %141, %123 : vector<32x1xf32>
    %143 = vector.broadcast %142 : vector<32x1xf32> to vector<32x128xf32>
    %144 = arith.addf %140, %143 : vector<32x128xf32>
    %145 = vector.broadcast %125 : vector<32x1xf32> to vector<32x128xf32>
    %146 = arith.mulf %145, %144 : vector<32x128xf32>
    %c0_87 = arith.constant 0 : index
    %c0_88 = arith.constant 0 : index
    %147 = vector.load %arg13[%c0_87, %c0_88] : memref<32x128xf32, #tpu.memory_space<vmem>>, vector<32x128xf32>
    %148 = arith.addf %138, %146 : vector<32x128xf32>
    %149 = arith.addf %147, %148 : vector<32x128xf32>
    %c0_89 = arith.constant 0 : index
    %c0_90 = arith.constant 0 : index
    %150 = vector.load %arg13[%c0_89, %c0_90] : memref<32x128xf32, #tpu.memory_space<vmem>>, vector<32x128xf32>
    tpu.vector_store %arg13[%c0_89, %c0_90], %149 {strides = array<i32>} : memref<32x128xf32, #tpu.memory_space<vmem>>, vector<32x128xf32>,
    %c1_91 = arith.constant 1 : index
    %c0_92 = arith.constant 0 : index
    %c0_93 = arith.constant 0 : index
    %151 = vector.load %arg2[%c1_91, %c0_92, %c0_93] : memref<3x4x32xf32, #tpu.memory_space<vmem>>, vector<1x4x32xf32>
    %152 = vector.shape_cast %151 : vector<1x4x32xf32> to vector<4x32xf32>
    %cst_94 = arith.constant dense<0.000000e+00> : vector<4x16xf32>
    %153 = tpu.matmul %152, %5, %cst_94 {dimension_numbers = #tpu.dot_dimension_numbers<[1], [1], [0], [0], [0, 0, 1, 0], [], []>} : vector<4x32xf32>, vector<16x32xf32>, vector<4x16xf32> -> vector<4x16xf32>
    %c1_95 = arith.constant 1 : index
    %c0_96 = arith.constant 0 : index
    %c0_97 = arith.constant 0 : index
    %154 = vector.load %arg3[%c1_95, %c0_96, %c0_97] : memref<3x4x1xf32, #tpu.memory_space<vmem>>, vector<1x4x1xf32>
    %155 = vector.shape_cast %154 : vector<1x4x1xf32> to vector<4x1xf32>
    %156 = vector.broadcast %155 : vector<4x1xf32> to vector<4x16xf32>
    %157 = arith.addf %153, %156 : vector<4x16xf32>
    %c1_98 = arith.constant 1 : index
    %c0_99 = arith.constant 0 : index
    %c0_100 = arith.constant 0 : index
    %158 = vector.load %arg4[%c1_98, %c0_99, %c0_100] : memref<3x4x32xf32, #tpu.memory_space<vmem>>, vector<1x4x32xf32>
    %159 = vector.shape_cast %158 : vector<1x4x32xf32> to vector<4x32xf32>
    %cst_101 = arith.constant dense<0.000000e+00> : vector<16x4xf32>
    %160 = tpu.matmul %5, %159, %cst_101 {dimension_numbers = #tpu.dot_dimension_numbers<[1], [1], [0], [0], [0, 0, 1, 0], [], []>} : vector<16x32xf32>, vector<4x32xf32>, vector<16x4xf32> -> vector<16x4xf32>
    %c1_102 = arith.constant 1 : index
    %c0_103 = arith.constant 0 : index
    %c0_104 = arith.constant 0 : index
    %161 = vector.load %arg5[%c1_102, %c0_103, %c0_104] : memref<3x1x4xf32, #tpu.memory_space<vmem>>, vector<1x1x4xf32>
    %162 = vector.shape_cast %161 : vector<1x1x4xf32> to vector<1x4xf32>
    %163 = vector.broadcast %162 : vector<1x4xf32> to vector<16x4xf32>
    %164 = arith.addf %160, %163 : vector<16x4xf32>
    %165 = vector.extract_strided_slice %130 {offsets = [0, 0], sizes = [16, 128], strides = [1, 1]} : vector<32x128xf32> to vector<16x128xf32>
    %cst_105 = arith.constant 0.000000e+00 : f32
    %166 = vector.broadcast %cst_105 : f32 to vector<16x128xf32>
    %167 = vector.extract_strided_slice %157 {offsets = [0, 0], sizes = [1, 16], strides = [1, 1]} : vector<4x16xf32> to vector<1x16xf32>
    %168 = vector.extract_strided_slice %164 {offsets = [0, 0], sizes = [16, 1], strides = [1, 1]} : vector<16x4xf32> to vector<16x1xf32>
    %169 = vector.broadcast %167 : vector<1x16xf32> to vector<16x16xf32>
    %170 = vector.broadcast %168 : vector<16x1xf32> to vector<16x16xf32>
    %171 = arith.subf %169, %170 : vector<16x16xf32>
    %172 = math.tanh %171 : vector<16x16xf32>
    %173 = tpu.concatenate %172, %172, %172, %172, %172, %172, %172, %172 in 1 : vector<16x16xf32>, vector<16x16xf32>, vector<16x16xf32>, vector<16x16xf32>, vector<16x16xf32>, vector<16x16xf32>, vector<16x16xf32>, vector<16x16xf32> -> vector<16x128xf32>
    %174 = tpu.concatenate %173, %173, %173, %173, %173, %173, %173, %173 in 0 : vector<16x128xf32>, vector<16x128xf32>, vector<16x128xf32>, vector<16x128xf32>, vector<16x128xf32>, vector<16x128xf32>, vector<16x128xf32>, vector<16x128xf32> -> vector<128x128xf32>
    %175 = arith.mulf %6, %174 : vector<128x128xf32>
    %cst_106 = arith.constant dense<0.000000e+00> : vector<16x128xf32>
    %176 = tpu.matmul %165, %175, %cst_106 {dimension_numbers = #tpu.dot_dimension_numbers<[1], [0], [0], [1], [0, 0, 1, 1], [], []>} : vector<16x128xf32>, vector<128x128xf32>, vector<16x128xf32> -> vector<16x128xf32>
    %177 = vector.extract_strided_slice %127 {offsets = [0, 0], sizes = [16, 1], strides = [1, 1]} : vector<16x2xf32> to vector<16x1xf32>
    %178 = vector.broadcast %177 : vector<16x1xf32> to vector<16x128xf32>
    %179 = arith.mulf %178, %176 : vector<16x128xf32>
    %180 = arith.addf %166, %179 : vector<16x128xf32>
    %181 = vector.extract_strided_slice %157 {offsets = [1, 0], sizes = [1, 16], strides = [1, 1]} : vector<4x16xf32> to vector<1x16xf32>
    %182 = vector.extract_strided_slice %164 {offsets = [0, 1], sizes = [16, 1], strides = [1, 1]} : vector<16x4xf32> to vector<16x1xf32>
    %183 = vector.broadcast %181 : vector<1x16xf32> to vector<16x16xf32>
    %184 = vector.broadcast %182 : vector<16x1xf32> to vector<16x16xf32>
    %185 = arith.subf %183, %184 : vector<16x16xf32>
    %186 = math.tanh %185 : vector<16x16xf32>
    %187 = tpu.concatenate %186, %186, %186, %186, %186, %186, %186, %186 in 1 : vector<16x16xf32>, vector<16x16xf32>, vector<16x16xf32>, vector<16x16xf32>, vector<16x16xf32>, vector<16x16xf32>, vector<16x16xf32>, vector<16x16xf32> -> vector<16x128xf32>
    %188 = tpu.concatenate %187, %187, %187, %187, %187, %187, %187, %187 in 0 : vector<16x128xf32>, vector<16x128xf32>, vector<16x128xf32>, vector<16x128xf32>, vector<16x128xf32>, vector<16x128xf32>, vector<16x128xf32>, vector<16x128xf32> -> vector<128x128xf32>
    %189 = arith.mulf %6, %188 : vector<128x128xf32>
    %cst_107 = arith.constant dense<0.000000e+00> : vector<16x128xf32>
    %190 = tpu.matmul %165, %189, %cst_107 {dimension_numbers = #tpu.dot_dimension_numbers<[1], [0], [0], [1], [0, 0, 1, 1], [], []>} : vector<16x128xf32>, vector<128x128xf32>, vector<16x128xf32> -> vector<16x128xf32>
    %191 = vector.extract_strided_slice %127 {offsets = [0, 1], sizes = [16, 1], strides = [1, 1]} : vector<16x2xf32> to vector<16x1xf32>
    %192 = vector.broadcast %191 : vector<16x1xf32> to vector<16x128xf32>
    %193 = arith.mulf %192, %190 : vector<16x128xf32>
    %194 = arith.addf %180, %193 : vector<16x128xf32>
    %c0_108 = arith.constant 0 : index
    %c0_109 = arith.constant 0 : index
    %195 = vector.load %arg13[%c0_108, %c0_109] : memref<32x128xf32, #tpu.memory_space<vmem>>, vector<16x128xf32>
    %196 = arith.addf %195, %194 : vector<16x128xf32>
    %c0_110 = arith.constant 0 : index
    %c0_111 = arith.constant 0 : index
    %197 = vector.load %arg13[%c0_110, %c0_111] : memref<32x128xf32, #tpu.memory_space<vmem>>, vector<16x128xf32>
    tpu.vector_store %arg13[%c0_110, %c0_111], %196 {strides = array<i32>} : memref<32x128xf32, #tpu.memory_space<vmem>>, vector<16x128xf32>,
    %198 = vector.extract_strided_slice %130 {offsets = [16, 0], sizes = [16, 128], strides = [1, 1]} : vector<32x128xf32> to vector<16x128xf32>
    %cst_112 = arith.constant 0.000000e+00 : f32
    %199 = vector.broadcast %cst_112 : f32 to vector<16x128xf32>
    %200 = vector.extract_strided_slice %157 {offsets = [2, 0], sizes = [1, 16], strides = [1, 1]} : vector<4x16xf32> to vector<1x16xf32>
    %201 = vector.extract_strided_slice %164 {offsets = [0, 2], sizes = [16, 1], strides = [1, 1]} : vector<16x4xf32> to vector<16x1xf32>
    %202 = vector.broadcast %200 : vector<1x16xf32> to vector<16x16xf32>
    %203 = vector.broadcast %201 : vector<16x1xf32> to vector<16x16xf32>
    %204 = arith.subf %202, %203 : vector<16x16xf32>
    %205 = math.tanh %204 : vector<16x16xf32>
    %206 = tpu.concatenate %205, %205, %205, %205, %205, %205, %205, %205 in 1 : vector<16x16xf32>, vector<16x16xf32>, vector<16x16xf32>, vector<16x16xf32>, vector<16x16xf32>, vector<16x16xf32>, vector<16x16xf32>, vector<16x16xf32> -> vector<16x128xf32>
    %207 = tpu.concatenate %206, %206, %206, %206, %206, %206, %206, %206 in 0 : vector<16x128xf32>, vector<16x128xf32>, vector<16x128xf32>, vector<16x128xf32>, vector<16x128xf32>, vector<16x128xf32>, vector<16x128xf32>, vector<16x128xf32> -> vector<128x128xf32>
    %208 = arith.mulf %6, %207 : vector<128x128xf32>
    %cst_113 = arith.constant dense<0.000000e+00> : vector<16x128xf32>
    %209 = tpu.matmul %198, %208, %cst_113 {dimension_numbers = #tpu.dot_dimension_numbers<[1], [0], [0], [1], [0, 0, 1, 1], [], []>} : vector<16x128xf32>, vector<128x128xf32>, vector<16x128xf32> -> vector<16x128xf32>
    %210 = vector.extract_strided_slice %127 {offsets = [0, 0], sizes = [16, 1], strides = [1, 1]} : vector<16x2xf32> to vector<16x1xf32>
    %211 = vector.broadcast %210 : vector<16x1xf32> to vector<16x128xf32>
    %212 = arith.mulf %211, %209 : vector<16x128xf32>
    %213 = arith.addf %199, %212 : vector<16x128xf32>
    %214 = vector.extract_strided_slice %157 {offsets = [3, 0], sizes = [1, 16], strides = [1, 1]} : vector<4x16xf32> to vector<1x16xf32>
    %215 = vector.extract_strided_slice %164 {offsets = [0, 3], sizes = [16, 1], strides = [1, 1]} : vector<16x4xf32> to vector<16x1xf32>
    %216 = vector.broadcast %214 : vector<1x16xf32> to vector<16x16xf32>
    %217 = vector.broadcast %215 : vector<16x1xf32> to vector<16x16xf32>
    %218 = arith.subf %216, %217 : vector<16x16xf32>
    %219 = math.tanh %218 : vector<16x16xf32>
    %220 = tpu.concatenate %219, %219, %219, %219, %219, %219, %219, %219 in 1 : vector<16x16xf32>, vector<16x16xf32>, vector<16x16xf32>, vector<16x16xf32>, vector<16x16xf32>, vector<16x16xf32>, vector<16x16xf32>, vector<16x16xf32> -> vector<16x128xf32>
    %221 = tpu.concatenate %220, %220, %220, %220, %220, %220, %220, %220 in 0 : vector<16x128xf32>, vector<16x128xf32>, vector<16x128xf32>, vector<16x128xf32>, vector<16x128xf32>, vector<16x128xf32>, vector<16x128xf32>, vector<16x128xf32> -> vector<128x128xf32>
    %222 = arith.mulf %6, %221 : vector<128x128xf32>
    %cst_114 = arith.constant dense<0.000000e+00> : vector<16x128xf32>
    %223 = tpu.matmul %198, %222, %cst_114 {dimension_numbers = #tpu.dot_dimension_numbers<[1], [0], [0], [1], [0, 0, 1, 1], [], []>} : vector<16x128xf32>, vector<128x128xf32>, vector<16x128xf32> -> vector<16x128xf32>
    %224 = vector.extract_strided_slice %127 {offsets = [0, 1], sizes = [16, 1], strides = [1, 1]} : vector<16x2xf32> to vector<16x1xf32>
    %225 = vector.broadcast %224 : vector<16x1xf32> to vector<16x128xf32>
    %226 = arith.mulf %225, %223 : vector<16x128xf32>
    %227 = arith.addf %213, %226 : vector<16x128xf32>
    %c16_115 = arith.constant 16 : index
    %c0_116 = arith.constant 0 : index
    %228 = vector.load %arg13[%c16_115, %c0_116] : memref<32x128xf32, #tpu.memory_space<vmem>>, vector<16x128xf32>
    %229 = arith.addf %228, %227 : vector<16x128xf32>
    %c16_117 = arith.constant 16 : index
    %c0_118 = arith.constant 0 : index
    %230 = vector.load %arg13[%c16_117, %c0_118] : memref<32x128xf32, #tpu.memory_space<vmem>>, vector<16x128xf32>
    tpu.vector_store %arg13[%c16_117, %c0_118], %229 {strides = array<i32>} : memref<32x128xf32, #tpu.memory_space<vmem>>, vector<16x128xf32>,
    %c2 = arith.constant 2 : index
    %c0_119 = arith.constant 0 : index
    %c0_120 = arith.constant 0 : index
    %231 = vector.load %arg6[%c2, %c0_119, %c0_120] : memref<3x32x32xf32, #tpu.memory_space<vmem>>, vector<1x32x32xf32>
    %232 = vector.shape_cast %231 : vector<1x32x32xf32> to vector<32x32xf32>
    %c2_121 = arith.constant 2 : index
    %c0_122 = arith.constant 0 : index
    %c0_123 = arith.constant 0 : index
    %233 = vector.load %arg7[%c2_121, %c0_122, %c0_123] : memref<3x32x1xf32, #tpu.memory_space<vmem>>, vector<1x32x1xf32>
    %234 = vector.shape_cast %233 : vector<1x32x1xf32> to vector<32x1xf32>
    %c2_124 = arith.constant 2 : index
    %c0_125 = arith.constant 0 : index
    %c0_126 = arith.constant 0 : index
    %235 = vector.load %arg9[%c2_124, %c0_125, %c0_126] : memref<3x32x1xf32, #tpu.memory_space<vmem>>, vector<1x32x1xf32>
    %236 = vector.shape_cast %235 : vector<1x32x1xf32> to vector<32x1xf32>
    %c2_127 = arith.constant 2 : index
    %c0_128 = arith.constant 0 : index
    %c0_129 = arith.constant 0 : index
    %237 = vector.load %arg8[%c2_127, %c0_128, %c0_129] : memref<3x16x2xf32, #tpu.memory_space<vmem>>, vector<1x16x2xf32>
    %238 = vector.shape_cast %237 : vector<1x16x2xf32> to vector<16x2xf32>
    %cst_130 = arith.constant dense<0.000000e+00> : vector<32x128xf32>
    %239 = tpu.matmul %232, %0, %cst_130 {dimension_numbers = #tpu.dot_dimension_numbers<[1], [0], [0], [1], [0, 0, 1, 1], [], []>} : vector<32x32xf32>, vector<32x128xf32>, vector<32x128xf32> -> vector<32x128xf32>
    %240 = vector.broadcast %234 : vector<32x1xf32> to vector<32x128xf32>
    %241 = arith.addf %239, %240 : vector<32x128xf32>
    %c0_131 = arith.constant 0 : index
    %c256 = arith.constant 256 : index
    %242 = vector.load %arg15[%c0_131, %c256] : memref<32x512xf32, #tpu.memory_space<vmem>>, vector<32x128xf32>
    %cst_132 = arith.constant dense<0.000000e+00> : vector<32x128xf32>
    %243 = tpu.matmul %232, %242, %cst_132 {dimension_numbers = #tpu.dot_dimension_numbers<[1], [0], [0], [1], [0, 0, 1, 1], [], []>} : vector<32x32xf32>, vector<32x128xf32>, vector<32x128xf32> -> vector<32x128xf32>
    %c2_133 = arith.constant 2 : index
    %c0_134 = arith.constant 0 : index
    %c0_135 = arith.constant 0 : index
    %244 = vector.load %arg11[%c2_133, %c0_134, %c0_135] : memref<3x1x128xf32, #tpu.memory_space<vmem>>, vector<1x1x128xf32>
    %245 = vector.shape_cast %244 : vector<1x1x128xf32> to vector<1x128xf32>
    %246 = vector.broadcast %234 : vector<32x1xf32> to vector<32x128xf32>
    %247 = vector.broadcast %245 : vector<1x128xf32> to vector<32x128xf32>
    %248 = arith.mulf %246, %247 : vector<32x128xf32>
    %249 = arith.addf %243, %248 : vector<32x128xf32>
    %c0_136 = arith.constant 0 : index
    %c384_137 = arith.constant 384 : index
    %250 = vector.load %arg15[%c0_136, %c384_137] : memref<32x512xf32, #tpu.memory_space<vmem>>, vector<32x128xf32>
    %cst_138 = arith.constant dense<0.000000e+00> : vector<32x128xf32>
    %251 = tpu.matmul %232, %250, %cst_138 {dimension_numbers = #tpu.dot_dimension_numbers<[1], [0], [0], [1], [0, 0, 1, 1], [], []>} : vector<32x32xf32>, vector<32x128xf32>, vector<32x128xf32> -> vector<32x128xf32>
    %cst_139 = arith.constant 1.600000e+01 : f32
    %252 = vector.broadcast %cst_139 : f32 to vector<32x1xf32>
    %253 = arith.mulf %252, %234 : vector<32x1xf32>
    %254 = vector.broadcast %253 : vector<32x1xf32> to vector<32x128xf32>
    %255 = arith.addf %251, %254 : vector<32x128xf32>
    %256 = vector.broadcast %236 : vector<32x1xf32> to vector<32x128xf32>
    %257 = arith.mulf %256, %255 : vector<32x128xf32>
    %c0_140 = arith.constant 0 : index
    %c0_141 = arith.constant 0 : index
    %258 = vector.load %arg13[%c0_140, %c0_141] : memref<32x128xf32, #tpu.memory_space<vmem>>, vector<32x128xf32>
    %259 = arith.addf %249, %257 : vector<32x128xf32>
    %260 = arith.addf %258, %259 : vector<32x128xf32>
    %c0_142 = arith.constant 0 : index
    %c0_143 = arith.constant 0 : index
    %261 = vector.load %arg13[%c0_142, %c0_143] : memref<32x128xf32, #tpu.memory_space<vmem>>, vector<32x128xf32>
    tpu.vector_store %arg13[%c0_142, %c0_143], %260 {strides = array<i32>} : memref<32x128xf32, #tpu.memory_space<vmem>>, vector<32x128xf32>,
    %c2_144 = arith.constant 2 : index
    %c0_145 = arith.constant 0 : index
    %c0_146 = arith.constant 0 : index
    %262 = vector.load %arg2[%c2_144, %c0_145, %c0_146] : memref<3x4x32xf32, #tpu.memory_space<vmem>>, vector<1x4x32xf32>
    %263 = vector.shape_cast %262 : vector<1x4x32xf32> to vector<4x32xf32>
    %cst_147 = arith.constant dense<0.000000e+00> : vector<4x16xf32>
    %264 = tpu.matmul %263, %5, %cst_147 {dimension_numbers = #tpu.dot_dimension_numbers<[1], [1], [0], [0], [0, 0, 1, 0], [], []>} : vector<4x32xf32>, vector<16x32xf32>, vector<4x16xf32> -> vector<4x16xf32>
    %c2_148 = arith.constant 2 : index
    %c0_149 = arith.constant 0 : index
    %c0_150 = arith.constant 0 : index
    %265 = vector.load %arg3[%c2_148, %c0_149, %c0_150] : memref<3x4x1xf32, #tpu.memory_space<vmem>>, vector<1x4x1xf32>
    %266 = vector.shape_cast %265 : vector<1x4x1xf32> to vector<4x1xf32>
    %267 = vector.broadcast %266 : vector<4x1xf32> to vector<4x16xf32>
    %268 = arith.addf %264, %267 : vector<4x16xf32>
    %c2_151 = arith.constant 2 : index
    %c0_152 = arith.constant 0 : index
    %c0_153 = arith.constant 0 : index
    %269 = vector.load %arg4[%c2_151, %c0_152, %c0_153] : memref<3x4x32xf32, #tpu.memory_space<vmem>>, vector<1x4x32xf32>
    %270 = vector.shape_cast %269 : vector<1x4x32xf32> to vector<4x32xf32>
    %cst_154 = arith.constant dense<0.000000e+00> : vector<16x4xf32>
    %271 = tpu.matmul %5, %270, %cst_154 {dimension_numbers = #tpu.dot_dimension_numbers<[1], [1], [0], [0], [0, 0, 1, 0], [], []>} : vector<16x32xf32>, vector<4x32xf32>, vector<16x4xf32> -> vector<16x4xf32>
    %c2_155 = arith.constant 2 : index
    %c0_156 = arith.constant 0 : index
    %c0_157 = arith.constant 0 : index
    %272 = vector.load %arg5[%c2_155, %c0_156, %c0_157] : memref<3x1x4xf32, #tpu.memory_space<vmem>>, vector<1x1x4xf32>
    %273 = vector.shape_cast %272 : vector<1x1x4xf32> to vector<1x4xf32>
    %274 = vector.broadcast %273 : vector<1x4xf32> to vector<16x4xf32>
    %275 = arith.addf %271, %274 : vector<16x4xf32>
    %276 = vector.extract_strided_slice %241 {offsets = [0, 0], sizes = [16, 128], strides = [1, 1]} : vector<32x128xf32> to vector<16x128xf32>
    %cst_158 = arith.constant 0.000000e+00 : f32
    %277 = vector.broadcast %cst_158 : f32 to vector<16x128xf32>
    %278 = vector.extract_strided_slice %268 {offsets = [0, 0], sizes = [1, 16], strides = [1, 1]} : vector<4x16xf32> to vector<1x16xf32>
    %279 = vector.extract_strided_slice %275 {offsets = [0, 0], sizes = [16, 1], strides = [1, 1]} : vector<16x4xf32> to vector<16x1xf32>
    %280 = vector.broadcast %278 : vector<1x16xf32> to vector<16x16xf32>
    %281 = vector.broadcast %279 : vector<16x1xf32> to vector<16x16xf32>
    %282 = arith.subf %280, %281 : vector<16x16xf32>
    %283 = math.tanh %282 : vector<16x16xf32>
    %284 = tpu.concatenate %283, %283, %283, %283, %283, %283, %283, %283 in 1 : vector<16x16xf32>, vector<16x16xf32>, vector<16x16xf32>, vector<16x16xf32>, vector<16x16xf32>, vector<16x16xf32>, vector<16x16xf32>, vector<16x16xf32> -> vector<16x128xf32>
    %285 = tpu.concatenate %284, %284, %284, %284, %284, %284, %284, %284 in 0 : vector<16x128xf32>, vector<16x128xf32>, vector<16x128xf32>, vector<16x128xf32>, vector<16x128xf32>, vector<16x128xf32>, vector<16x128xf32>, vector<16x128xf32> -> vector<128x128xf32>
    %286 = arith.mulf %6, %285 : vector<128x128xf32>
    %cst_159 = arith.constant dense<0.000000e+00> : vector<16x128xf32>
    %287 = tpu.matmul %276, %286, %cst_159 {dimension_numbers = #tpu.dot_dimension_numbers<[1], [0], [0], [1], [0, 0, 1, 1], [], []>} : vector<16x128xf32>, vector<128x128xf32>, vector<16x128xf32> -> vector<16x128xf32>
    %288 = vector.extract_strided_slice %238 {offsets = [0, 0], sizes = [16, 1], strides = [1, 1]} : vector<16x2xf32> to vector<16x1xf32>
    %289 = vector.broadcast %288 : vector<16x1xf32> to vector<16x128xf32>
    %290 = arith.mulf %289, %287 : vector<16x128xf32>
    %291 = arith.addf %277, %290 : vector<16x128xf32>
    %292 = vector.extract_strided_slice %268 {offsets = [1, 0], sizes = [1, 16], strides = [1, 1]} : vector<4x16xf32> to vector<1x16xf32>
    %293 = vector.extract_strided_slice %275 {offsets = [0, 1], sizes = [16, 1], strides = [1, 1]} : vector<16x4xf32> to vector<16x1xf32>
    %294 = vector.broadcast %292 : vector<1x16xf32> to vector<16x16xf32>
    %295 = vector.broadcast %293 : vector<16x1xf32> to vector<16x16xf32>
    %296 = arith.subf %294, %295 : vector<16x16xf32>
    %297 = math.tanh %296 : vector<16x16xf32>
    %298 = tpu.concatenate %297, %297, %297, %297, %297, %297, %297, %297 in 1 : vector<16x16xf32>, vector<16x16xf32>, vector<16x16xf32>, vector<16x16xf32>, vector<16x16xf32>, vector<16x16xf32>, vector<16x16xf32>, vector<16x16xf32> -> vector<16x128xf32>
    %299 = tpu.concatenate %298, %298, %298, %298, %298, %298, %298, %298 in 0 : vector<16x128xf32>, vector<16x128xf32>, vector<16x128xf32>, vector<16x128xf32>, vector<16x128xf32>, vector<16x128xf32>, vector<16x128xf32>, vector<16x128xf32> -> vector<128x128xf32>
    %300 = arith.mulf %6, %299 : vector<128x128xf32>
    %cst_160 = arith.constant dense<0.000000e+00> : vector<16x128xf32>
    %301 = tpu.matmul %276, %300, %cst_160 {dimension_numbers = #tpu.dot_dimension_numbers<[1], [0], [0], [1], [0, 0, 1, 1], [], []>} : vector<16x128xf32>, vector<128x128xf32>, vector<16x128xf32> -> vector<16x128xf32>
    %302 = vector.extract_strided_slice %238 {offsets = [0, 1], sizes = [16, 1], strides = [1, 1]} : vector<16x2xf32> to vector<16x1xf32>
    %303 = vector.broadcast %302 : vector<16x1xf32> to vector<16x128xf32>
    %304 = arith.mulf %303, %301 : vector<16x128xf32>
    %305 = arith.addf %291, %304 : vector<16x128xf32>
    %c0_161 = arith.constant 0 : index
    %c0_162 = arith.constant 0 : index
    %306 = vector.load %arg13[%c0_161, %c0_162] : memref<32x128xf32, #tpu.memory_space<vmem>>, vector<16x128xf32>
    %307 = arith.addf %306, %305 : vector<16x128xf32>
    %c0_163 = arith.constant 0 : index
    %c0_164 = arith.constant 0 : index
    %308 = vector.load %arg13[%c0_163, %c0_164] : memref<32x128xf32, #tpu.memory_space<vmem>>, vector<16x128xf32>
    tpu.vector_store %arg13[%c0_163, %c0_164], %307 {strides = array<i32>} : memref<32x128xf32, #tpu.memory_space<vmem>>, vector<16x128xf32>,
    %309 = vector.extract_strided_slice %241 {offsets = [16, 0], sizes = [16, 128], strides = [1, 1]} : vector<32x128xf32> to vector<16x128xf32>
    %cst_165 = arith.constant 0.000000e+00 : f32
    %310 = vector.broadcast %cst_165 : f32 to vector<16x128xf32>
    %311 = vector.extract_strided_slice %268 {offsets = [2, 0], sizes = [1, 16], strides = [1, 1]} : vector<4x16xf32> to vector<1x16xf32>
    %312 = vector.extract_strided_slice %275 {offsets = [0, 2], sizes = [16, 1], strides = [1, 1]} : vector<16x4xf32> to vector<16x1xf32>
    %313 = vector.broadcast %311 : vector<1x16xf32> to vector<16x16xf32>
    %314 = vector.broadcast %312 : vector<16x1xf32> to vector<16x16xf32>
    %315 = arith.subf %313, %314 : vector<16x16xf32>
    %316 = math.tanh %315 : vector<16x16xf32>
    %317 = tpu.concatenate %316, %316, %316, %316, %316, %316, %316, %316 in 1 : vector<16x16xf32>, vector<16x16xf32>, vector<16x16xf32>, vector<16x16xf32>, vector<16x16xf32>, vector<16x16xf32>, vector<16x16xf32>, vector<16x16xf32> -> vector<16x128xf32>
    %318 = tpu.concatenate %317, %317, %317, %317, %317, %317, %317, %317 in 0 : vector<16x128xf32>, vector<16x128xf32>, vector<16x128xf32>, vector<16x128xf32>, vector<16x128xf32>, vector<16x128xf32>, vector<16x128xf32>, vector<16x128xf32> -> vector<128x128xf32>
    %319 = arith.mulf %6, %318 : vector<128x128xf32>
    %cst_166 = arith.constant dense<0.000000e+00> : vector<16x128xf32>
    %320 = tpu.matmul %309, %319, %cst_166 {dimension_numbers = #tpu.dot_dimension_numbers<[1], [0], [0], [1], [0, 0, 1, 1], [], []>} : vector<16x128xf32>, vector<128x128xf32>, vector<16x128xf32> -> vector<16x128xf32>
    %321 = vector.extract_strided_slice %238 {offsets = [0, 0], sizes = [16, 1], strides = [1, 1]} : vector<16x2xf32> to vector<16x1xf32>
    %322 = vector.broadcast %321 : vector<16x1xf32> to vector<16x128xf32>
    %323 = arith.mulf %322, %320 : vector<16x128xf32>
    %324 = arith.addf %310, %323 : vector<16x128xf32>
    %325 = vector.extract_strided_slice %268 {offsets = [3, 0], sizes = [1, 16], strides = [1, 1]} : vector<4x16xf32> to vector<1x16xf32>
    %326 = vector.extract_strided_slice %275 {offsets = [0, 3], sizes = [16, 1], strides = [1, 1]} : vector<16x4xf32> to vector<16x1xf32>
    %327 = vector.broadcast %325 : vector<1x16xf32> to vector<16x16xf32>
    %328 = vector.broadcast %326 : vector<16x1xf32> to vector<16x16xf32>
    %329 = arith.subf %327, %328 : vector<16x16xf32>
    %330 = math.tanh %329 : vector<16x16xf32>
    %331 = tpu.concatenate %330, %330, %330, %330, %330, %330, %330, %330 in 1 : vector<16x16xf32>, vector<16x16xf32>, vector<16x16xf32>, vector<16x16xf32>, vector<16x16xf32>, vector<16x16xf32>, vector<16x16xf32>, vector<16x16xf32> -> vector<16x128xf32>
    %332 = tpu.concatenate %331, %331, %331, %331, %331, %331, %331, %331 in 0 : vector<16x128xf32>, vector<16x128xf32>, vector<16x128xf32>, vector<16x128xf32>, vector<16x128xf32>, vector<16x128xf32>, vector<16x128xf32>, vector<16x128xf32> -> vector<128x128xf32>
    %333 = arith.mulf %6, %332 : vector<128x128xf32>
    %cst_167 = arith.constant dense<0.000000e+00> : vector<16x128xf32>
    %334 = tpu.matmul %309, %333, %cst_167 {dimension_numbers = #tpu.dot_dimension_numbers<[1], [0], [0], [1], [0, 0, 1, 1], [], []>} : vector<16x128xf32>, vector<128x128xf32>, vector<16x128xf32> -> vector<16x128xf32>
    %335 = vector.extract_strided_slice %238 {offsets = [0, 1], sizes = [16, 1], strides = [1, 1]} : vector<16x2xf32> to vector<16x1xf32>
    %336 = vector.broadcast %335 : vector<16x1xf32> to vector<16x128xf32>
    %337 = arith.mulf %336, %334 : vector<16x128xf32>
    %338 = arith.addf %324, %337 : vector<16x128xf32>
    %c16_168 = arith.constant 16 : index
    %c0_169 = arith.constant 0 : index
    %339 = vector.load %arg13[%c16_168, %c0_169] : memref<32x128xf32, #tpu.memory_space<vmem>>, vector<16x128xf32>
    %340 = arith.addf %339, %338 : vector<16x128xf32>
    %c16_170 = arith.constant 16 : index
    %c0_171 = arith.constant 0 : index
    %341 = vector.load %arg13[%c16_170, %c0_171] : memref<32x128xf32, #tpu.memory_space<vmem>>, vector<16x128xf32>
    tpu.vector_store %arg13[%c16_170, %c0_171], %340 {strides = array<i32>} : memref<32x128xf32, #tpu.memory_space<vmem>>, vector<16x128xf32>,
    %cst_172 = arith.constant 0.000000e+00 : f32
    %342 = vector.broadcast %cst_172 : f32 to vector<16x1xf32>
    %cst_173 = arith.constant 0.000000e+00 : f32
    %343 = vector.broadcast %cst_173 : f32 to vector<16x1xf32>
    %c0_174 = arith.constant 0 : index
    %c0_175 = arith.constant 0 : index
    %344 = vector.load %arg13[%c0_174, %c0_175] : memref<32x128xf32, #tpu.memory_space<vmem>>, vector<16x128xf32>
    %cst_176 = arith.constant dense<0.000000e+00> : vector<16xf32>
    %345 = vector.multi_reduction <add>, %344, %cst_176 [1] : vector<16x128xf32> to vector<16xf32>
    %346 = vector.shape_cast %345 : vector<16xf32> to vector<16x1xf32>
    %347 = arith.addf %342, %346 : vector<16x1xf32>
    %348 = arith.mulf %344, %344 : vector<16x128xf32>
    %cst_177 = arith.constant dense<0.000000e+00> : vector<16xf32>
    %349 = vector.multi_reduction <add>, %348, %cst_177 [1] : vector<16x128xf32> to vector<16xf32>
    %350 = vector.shape_cast %349 : vector<16xf32> to vector<16x1xf32>
    %351 = arith.addf %343, %350 : vector<16x1xf32>
    %c16_178 = arith.constant 16 : index
    %c0_179 = arith.constant 0 : index
    %352 = vector.load %arg13[%c16_178, %c0_179] : memref<32x128xf32, #tpu.memory_space<vmem>>, vector<16x128xf32>
    %cst_180 = arith.constant dense<0.000000e+00> : vector<16xf32>
    %353 = vector.multi_reduction <add>, %352, %cst_180 [1] : vector<16x128xf32> to vector<16xf32>
    %354 = vector.shape_cast %353 : vector<16xf32> to vector<16x1xf32>
    %355 = arith.addf %347, %354 : vector<16x1xf32>
    %356 = arith.mulf %352, %352 : vector<16x128xf32>
    %cst_181 = arith.constant dense<0.000000e+00> : vector<16xf32>
    %357 = vector.multi_reduction <add>, %356, %cst_181 [1] : vector<16x128xf32> to vector<16xf32>
    %358 = vector.shape_cast %357 : vector<16xf32> to vector<16x1xf32>
    %359 = arith.addf %351, %358 : vector<16x1xf32>
    %360 = tpu.concatenate %355, %359 in 1 : vector<16x1xf32>, vector<16x1xf32> -> vector<16x2xf32>
    %c0_182 = arith.constant 0 : index
    %c0_183 = arith.constant 0 : index
    %c0_184 = arith.constant 0 : index
    %361 = vector.load %arg14[%c0_182, %c0_183, %c0_184] : memref<1x16x2xf32, #tpu.memory_space<vmem>>, vector<1x16x2xf32>
    %362 = vector.shape_cast %361 : vector<1x16x2xf32> to vector<16x2xf32>
    %363 = vector.shape_cast %360 : vector<16x2xf32> to vector<1x16x2xf32>
    tpu.vector_store %arg14[%c0_182, %c0_183, %c0_184], %363 {strides = array<i32>} : memref<1x16x2xf32, #tpu.memory_space<vmem>>, vector<1x16x2xf32>,
    return
  }
  func.func @transform_0(%arg0: i32) -> (i32, i32) {
    %c0_i32 = arith.constant 0 : i32
    %c0_i32_0 = arith.constant 0 : i32
    return %arg0, %c0_i32 : i32, i32
  }
  func.func @transform_1(%arg0: i32) -> (i32, i32, i32) {
    %c0_i32 = arith.constant 0 : i32
    %c0_i32_0 = arith.constant 0 : i32
    %c0_i32_1 = arith.constant 0 : i32
    %c0_i32_2 = arith.constant 0 : i32
    return %c0_i32, %c0_i32_0, %c0_i32_1 : i32, i32, i32
  }
  func.func @transform_2(%arg0: i32) -> (i32, i32, i32) {
    %c0_i32 = arith.constant 0 : i32
    %c0_i32_0 = arith.constant 0 : i32
    %c0_i32_1 = arith.constant 0 : i32
    %c0_i32_2 = arith.constant 0 : i32
    return %c0_i32, %c0_i32_0, %c0_i32_1 : i32, i32, i32
  }
  func.func @transform_3(%arg0: i32) -> (i32, i32, i32) {
    %c0_i32 = arith.constant 0 : i32
    %c0_i32_0 = arith.constant 0 : i32
    %c0_i32_1 = arith.constant 0 : i32
    %c0_i32_2 = arith.constant 0 : i32
    return %c0_i32, %c0_i32_0, %c0_i32_1 : i32, i32, i32
  }
  func.func @transform_4(%arg0: i32) -> (i32, i32, i32) {
    %c0_i32 = arith.constant 0 : i32
    %c0_i32_0 = arith.constant 0 : i32
    %c0_i32_1 = arith.constant 0 : i32
    %c0_i32_2 = arith.constant 0 : i32
    return %c0_i32, %c0_i32_0, %c0_i32_1 : i32, i32, i32
  }
  func.func @transform_5(%arg0: i32) -> (i32, i32, i32) {
    %c0_i32 = arith.constant 0 : i32
    %c0_i32_0 = arith.constant 0 : i32
    %c0_i32_1 = arith.constant 0 : i32
    %c0_i32_2 = arith.constant 0 : i32
    return %c0_i32, %c0_i32_0, %c0_i32_1 : i32, i32, i32
  }
  func.func @transform_6(%arg0: i32) -> (i32, i32, i32) {
    %c0_i32 = arith.constant 0 : i32
    %c0_i32_0 = arith.constant 0 : i32
    %c0_i32_1 = arith.constant 0 : i32
    %c0_i32_2 = arith.constant 0 : i32
    return %c0_i32, %c0_i32_0, %c0_i32_1 : i32, i32, i32
  }
  func.func @transform_7(%arg0: i32) -> (i32, i32, i32) {
    %c0_i32 = arith.constant 0 : i32
    %c0_i32_0 = arith.constant 0 : i32
    %c0_i32_1 = arith.constant 0 : i32
    %c0_i32_2 = arith.constant 0 : i32
    return %c0_i32, %c0_i32_0, %c0_i32_1 : i32, i32, i32
  }
  func.func @transform_8(%arg0: i32) -> (i32, i32, i32) {
    %c0_i32 = arith.constant 0 : i32
    %c0_i32_0 = arith.constant 0 : i32
    %c0_i32_1 = arith.constant 0 : i32
    %c0_i32_2 = arith.constant 0 : i32
    return %c0_i32, %c0_i32_0, %c0_i32_1 : i32, i32, i32
  }
  func.func @transform_9(%arg0: i32) -> (i32, i32) {
    %c0_i32 = arith.constant 0 : i32
    %c0_i32_0 = arith.constant 0 : i32
    %c0_i32_1 = arith.constant 0 : i32
    return %c0_i32, %c0_i32_0 : i32, i32
  }
  func.func @transform_10(%arg0: i32) -> (i32, i32, i32) {
    %c0_i32 = arith.constant 0 : i32
    %c0_i32_0 = arith.constant 0 : i32
    %c0_i32_1 = arith.constant 0 : i32
    %c0_i32_2 = arith.constant 0 : i32
    return %c0_i32, %c0_i32_0, %c0_i32_1 : i32, i32, i32
  }
  func.func @transform_11(%arg0: i32) -> (i32, i32) {
    %c0_i32 = arith.constant 0 : i32
    %c0_i32_0 = arith.constant 0 : i32
    %c0_i32_1 = arith.constant 0 : i32
    return %c0_i32, %c0_i32_0 : i32, i32
  }
  func.func @transform_12(%arg0: i32) -> (i32, i32) {
    %c0_i32 = arith.constant 0 : i32
    %c0_i32_0 = arith.constant 0 : i32
    return %arg0, %c0_i32 : i32, i32
  }
  func.func @transform_13(%arg0: i32) -> (i32, i32, i32) {
    %c0_i32 = arith.constant 0 : i32
    %c0_i32_0 = arith.constant 0 : i32
    %c0_i32_1 = arith.constant 0 : i32
    return %arg0, %c0_i32, %c0_i32_0 : i32, i32, i32
  }
}

module attributes {stable_mosaic.version = 11 : i64} {
  func.func @_bn_residual_relu_kernel(%arg0: i32, %arg1: memref<64x128xf32, #tpu.memory_space<vmem>>, %arg2: memref<64x128xf32, #tpu.memory_space<vmem>>, %arg3: memref<64x1xf32, #tpu.memory_space<vmem>>, %arg4: memref<64x1xf32, #tpu.memory_space<vmem>>, %arg5: memref<64x128xf32, #tpu.memory_space<vmem>>) attributes {dimension_semantics = [#tpu.dimension_semantics<parallel>], iteration_bounds = array<i64: 1>, scalar_prefetch = 0 : i64, scratch_operands = 0 : i64, tpu.core_type = #tpu.core_type<tc>, window_params = [{transform_indices = @transform_0, window_bounds = array<i64: 64, 128>}, {transform_indices = @transform_1, window_bounds = array<i64: 64, 128>}, {transform_indices = @transform_2, window_bounds = array<i64: 64, 1>}, {transform_indices = @transform_3, window_bounds = array<i64: 64, 1>}, {transform_indices = @transform_4, window_bounds = array<i64: 64, 128>}]} {
    %c0 = arith.constant 0 : index
    %c0_0 = arith.constant 0 : index
    %0 = vector.load %arg1[%c0, %c0_0] : memref<64x128xf32, #tpu.memory_space<vmem>>, vector<64x128xf32>
    %c0_1 = arith.constant 0 : index
    %c0_2 = arith.constant 0 : index
    %1 = vector.load %arg3[%c0_1, %c0_2] : memref<64x1xf32, #tpu.memory_space<vmem>>, vector<64x1xf32>
    %2 = vector.broadcast %1 : vector<64x1xf32> to vector<64x128xf32>
    %3 = arith.mulf %0, %2 : vector<64x128xf32>
    %c0_3 = arith.constant 0 : index
    %c0_4 = arith.constant 0 : index
    %4 = vector.load %arg4[%c0_3, %c0_4] : memref<64x1xf32, #tpu.memory_space<vmem>>, vector<64x1xf32>
    %5 = vector.broadcast %4 : vector<64x1xf32> to vector<64x128xf32>
    %6 = arith.addf %3, %5 : vector<64x128xf32>
    %c0_5 = arith.constant 0 : index
    %c0_6 = arith.constant 0 : index
    %7 = vector.load %arg2[%c0_5, %c0_6] : memref<64x128xf32, #tpu.memory_space<vmem>>, vector<64x128xf32>
    %8 = arith.addf %6, %7 : vector<64x128xf32>
    %cst = arith.constant 0.000000e+00 : f32
    %9 = vector.broadcast %cst : f32 to vector<64x128xf32>
    %10 = arith.maximumf %8, %9 : vector<64x128xf32>
    %c0_7 = arith.constant 0 : index
    %c0_8 = arith.constant 0 : index
    %11 = vector.load %arg5[%c0_7, %c0_8] : memref<64x128xf32, #tpu.memory_space<vmem>>, vector<64x128xf32>
    tpu.vector_store %arg5[%c0_7, %c0_8], %10 {strides = array<i32>} : memref<64x128xf32, #tpu.memory_space<vmem>>, vector<64x128xf32>,
    return
  }
  func.func @transform_0(%arg0: i32) -> (i32, i32) {
    %c0_i32 = arith.constant 0 : i32
    %c0_i32_0 = arith.constant 0 : i32
    return %arg0, %c0_i32 : i32, i32
  }
  func.func @transform_1(%arg0: i32) -> (i32, i32) {
    %c0_i32 = arith.constant 0 : i32
    %c0_i32_0 = arith.constant 0 : i32
    return %arg0, %c0_i32 : i32, i32
  }
  func.func @transform_2(%arg0: i32) -> (i32, i32) {
    %c0_i32 = arith.constant 0 : i32
    %c0_i32_0 = arith.constant 0 : i32
    return %arg0, %c0_i32 : i32, i32
  }
  func.func @transform_3(%arg0: i32) -> (i32, i32) {
    %c0_i32 = arith.constant 0 : i32
    %c0_i32_0 = arith.constant 0 : i32
    return %arg0, %c0_i32 : i32, i32
  }
  func.func @transform_4(%arg0: i32) -> (i32, i32) {
    %c0_i32 = arith.constant 0 : i32
    %c0_i32_0 = arith.constant 0 : i32
    return %arg0, %c0_i32 : i32, i32
  }
}

</mosaic_0001>

<llo_original>
// kernel: tile.98
$region0: #{tile.98}
  #allocation0 [shape = 's32[1]{0}', space=sflag, size = 0x4, scoped, tag = 'scoped memory for tile.98']
  %s0 = inlined_call_operand.vmem [shape: f32[16], index: 0, kind: input, shape index: {}]
  %s1 = inlined_call_operand.vmem [shape: f32[2,16], index: 1, kind: output, shape index: {}]
  // Predicated region
  $region2: #{tile.98} parent=0 // pred_check
    _
  $region3: #{tile.98} parent=0 // pred_check_branch
    %3 = sbr.rel (0) target = $region5
  $region4: #{tile.98} parent=0 // pred_region
    _
  $region5: #{tile.98} parent=0 // pred_fallthru
    _
  %v4 = vld [vmem:[%s0] ss:$0 sm:$0xff]
  %5 = vst [vmem:[%s1] sm:$0x3] %v4

// kernel: tile.107
$region0: #{tile.107}
  %s0 = inlined_call_operand.vmem [shape: f32[2,16], index: 0, kind: input, shape index: {}]
  %s1 = inlined_call_operand.vmem [shape: f32[1,32,1], index: 1, kind: output, shape index: {}]
  $region1: #{tile.107} parent=0
    #allocation0 [shape = 'u8[4096]{0}', space=vmem, size = 0x1000, scoped, tag = 'scoped mem for output reshape']
    #allocation1 [shape = 'u8[4096]{0}', space=vmem, size = 0x1000, scoped, tag = 'scoped mem for input reshape']
    %s3 = sshllo.u32 0, 2
    %v4 = vld [vmem:[%s0] sm:%s3]
    %5 = vst [vmem:[#allocation1] sm:%s3] %v4
    %v6 = vld [vmem:[#allocation1] sm:$0x1]
    %vm7 = vcmask 130048
    %8 = vst.msk [vmem:[#allocation0] sm:$0x1] %vm7, %v6
    %s9 = scalar_lea.vmem [#allocation1], 1
    %v10 = vld [vmem:[%s9] sm:$0x1]
    %11 = vrot.lane.b32.xlu0 %v10, 16
    %v12 = vpop.permute.xlu0 %11
    %vm13 = vcmask 261248
    %14 = vst.msk [vmem:[#allocation0] sm:$0x1] %vm13, %v12
    %s16 = sshllo.u32 0, 1
    %v18 = vld [vmem:[#allocation0] sm:%s16]
    %s19 = sshllo.u32 0, 1
    %20 = vst [vmem:[%s1] sm:%s19] %v18

// kernel: tile.61
$region0: #{tile.61}
  #allocation0 [shape = 's32[1]{0}', space=sflag, size = 0x4, scoped, tag = 'scoped memory for tile.61']
  %s0 = inlined_call_operand.vmem [shape: f32[2], index: 0, kind: input, shape index: {}]
  %s1 = inlined_call_operand.vmem [shape: f32[2,2], index: 1, kind: output, shape index: {}]
  // Predicated region
  $region2: #{tile.61} parent=0 // pred_check
    _
  $region3: #{tile.61} parent=0 // pred_check_branch
    %3 = sbr.rel (0) target = $region5
  $region4: #{tile.61} parent=0 // pred_region
    _
  $region5: #{tile.61} parent=0 // pred_fallthru
    _
  %v4 = vld [vmem:[%s0] ss:$0 sm:$0xff]
  %5 = vst [vmem:[%s1] sm:$0x3] %v4

// kernel: tile.68
$region0: #{tile.68}
  %s0 = inlined_call_operand.vmem [shape: f32[2,2], index: 0, kind: input, shape index: {}]
  %s1 = inlined_call_operand.vmem [shape: f32[1,4,1], index: 1, kind: output, shape index: {}]
  $region1: #{tile.68} parent=0
    #allocation0 [shape = 'u8[4096]{0}', space=vmem, size = 0x1000, scoped, tag = 'scoped mem for output reshape']
    #allocation1 [shape = 'u8[4096]{0}', space=vmem, size = 0x1000, scoped, tag = 'scoped mem for input reshape']
    %s3 = sshllo.u32 0, 2
    %v4 = vld [vmem:[%s0] sm:%s3]
    %5 = vst [vmem:[#allocation1] sm:%s3] %v4
    %v6 = vld [vmem:[#allocation1] sm:$0x1]
    %vm7 = vcmask 15360
    %8 = vst.msk [vmem:[#allocation0] sm:$0x1] %vm7, %v6
    %s9 = scalar_lea.vmem [#allocation1], 1
    %v10 = vld [vmem:[%s9] sm:$0x1]
    %11 = vrot.lane.b32.xlu0 %v10, 2
    %v12 = vpop.permute.xlu0 %11
    %vm13 = vcmask 31760
    %14 = vst.msk [vmem:[#allocation0] sm:$0x1] %vm13, %v12
    %s16 = sshllo.u32 0, 1
    %v18 = vld [vmem:[#allocation0] sm:%s16]
    %s19 = sshllo.u32 0, 1
    %20 = vst [vmem:[%s1] sm:%s19] %v18

// kernel: tile.80
$region0: #{tile.80}
  %s0 = inlined_call_operand.vmem [shape: f32[2,2], index: 0, kind: input, shape index: {}]
  %s1 = inlined_call_operand.vmem [shape: f32[1,1,4], index: 1, kind: output, shape index: {}]
  $region1: #{tile.80} parent=0
    #allocation0 [shape = 'u8[4096]{0}', space=vmem, size = 0x1000, scoped, tag = 'scoped mem for output reshape']
    #allocation1 [shape = 'u8[4096]{0}', space=vmem, size = 0x1000, scoped, tag = 'scoped mem for input reshape']
    %s3 = sshllo.u32 0, 2
    %v4 = vld [vmem:[%s0] sm:%s3]
    %5 = vst [vmem:[#allocation1] sm:%s3] %v4
    %v6 = vld [vmem:[#allocation1] sm:$0x1]
    %vm7 = vcmask 15360
    %8 = vst.msk [vmem:[#allocation0] sm:$0x1] %vm7, %v6
    %s9 = scalar_lea.vmem [#allocation1], 1
    %v10 = vld [vmem:[%s9] sm:$0x1]
    %11 = vrot.lane.b32.xlu0 %v10, 2
    %v12 = vpop.permute.xlu0 %11
    %vm13 = vcmask 31760
    %14 = vst.msk [vmem:[#allocation0] sm:$0x1] %vm13, %v12
    %s16 = sshllo.u32 0, 1
    %v18 = vld [vmem:[#allocation0] sm:%s16]
    %s19 = sshllo.u32 0, 1
    %20 = vst [vmem:[%s1] sm:%s19] %v18

// kernel: tile.112
$region0: #{tile.112}
  #allocation0 [shape = 's32[1]{0}', space=sflag, size = 0x4, scoped, tag = 'scoped memory for tile.112']
  %s0 = inlined_call_operand.vmem [shape: f32[16], index: 0, kind: input, shape index: {}]
  %s1 = inlined_call_operand.vmem [shape: f32[4,1,1,16], index: 1, kind: output, shape index: {}]
  // Predicated region
  $region2: #{tile.112} parent=0 // pred_check
    _
  $region3: #{tile.112} parent=0 // pred_check_branch
    %3 = sbr.rel (0) target = $region5
  $region4: #{tile.112} parent=0 // pred_region
    _
  $region5: #{tile.112} parent=0 // pred_fallthru
    _
  %v4 = vld [vmem:[%s0] ss:$0 sm:$0xff]
  %5 = vst [vmem:[%s1] sm:$0xf] %v4

// kernel: tile.0
$region0: #{tile.0}
  %s0 = inlined_call_operand.vmem [shape: f32[4,1,1,16], index: 0, kind: input, shape index: {}]
  %s1 = inlined_call_operand.vmem [shape: f32[64,1], index: 1, kind: output, shape index: {}]
  $region1: #{tile.0} parent=0
    #allocation0 [shape = 'u8[4096]{0}', space=vmem, size = 0x1000, scoped, tag = 'scoped mem for input reshape']
    %s3 = sshllo.u32 0, 4
    %v4 = vld [vmem:[%s0] sm:%s3]
    %5 = vst [vmem:[#allocation0] sm:%s3] %v4
    %v6 = vld [vmem:[#allocation0] sm:$0xf]
    %vm7 = vcmask 7168
    %8 = vst.msk [vmem:[%s1] ss:$16 sm:$0x3] %vm7, %v6
    %9 = vst.msk [vmem:[%s1] ss:$16 sm:$0xc] %vm7, %v6
    %v10 = vld [vmem:[#allocation0] sm:$0xf]
    %11 = vrot.lane.b32.xlu0 %v10, 127
    %v12 = vpop.permute.xlu0 %11
    %vm13 = vcmask 7168
    %s14 = scalar_lea.vmem %s1, 1
    %15 = vst.msk [vmem:[%s14] ss:$16 sm:$0x3] %vm13, %v12
    %s16 = scalar_lea.vmem %s1, 1
    %17 = vst.msk [vmem:[%s16] ss:$16 sm:$0xc] %vm13, %v12
    %v18 = vld [vmem:[#allocation0] sm:$0xf]
    %19 = vrot.lane.b32.xlu0 %v18, 126
    %v20 = vpop.permute.xlu0 %19
    %vm21 = vcmask 7168
    %s22 = scalar_lea.vmem %s1, 2
    %23 = vst.msk [vmem:[%s22] ss:$16 sm:$0x3] %vm21, %v20
    %s24 = scalar_lea.vmem %s1, 2
    %25 = vst.msk [vmem:[%s24] ss:$16 sm:$0xc] %vm21, %v20
    %v26 = vld [vmem:[#allocation0] sm:$0xf]
    %27 = vrot.lane.b32.xlu0 %v26, 125
    %v28 = vpop.permute.xlu0 %27
    %vm29 = vcmask 7168
    %s30 = scalar_lea.vmem %s1, 3
    %31 = vst.msk [vmem:[%s30] ss:$16 sm:$0x3] %vm29, %v28
    %s32 = scalar_lea.vmem %s1, 3
    %33 = vst.msk [vmem:[%s32] ss:$16 sm:$0xc] %vm29, %v28
    %v34 = vld [vmem:[#allocation0] sm:$0xf]
    %35 = vrot.lane.b32.xlu0 %v34, 124
    %v36 = vpop.permute.xlu0 %35
    %vm37 = vcmask 7168
    %s38 = scalar_lea.vmem %s1, 4
    %39 = vst.msk [vmem:[%s38] ss:$16 sm:$0x3] %vm37, %v36
    %s40 = scalar_lea.vmem %s1, 4
    %41 = vst.msk [vmem:[%s40] ss:$16 sm:$0xc] %vm37, %v36
    %v42 = vld [vmem:[#allocation0] sm:$0xf]
    %43 = vrot.lane.b32.xlu0 %v42, 123
    %v44 = vpop.permute.xlu0 %43
    %vm45 = vcmask 7168
    %s46 = scalar_lea.vmem %s1, 5
    %47 = vst.msk [vmem:[%s46] ss:$16 sm:$0x3] %vm45, %v44
    %s48 = scalar_lea.vmem %s1, 5
    %49 = vst.msk [vmem:[%s48] ss:$16 sm:$0xc] %vm45, %v44
    %v50 = vld [vmem:[#allocation0] sm:$0xf]
    %51 = vrot.lane.b32.xlu0 %v50, 122
    %v52 = vpop.permute.xlu0 %51
    %vm53 = vcmask 7168
    %s54 = scalar_lea.vmem %s1, 6
    %55 = vst.msk [vmem:[%s54] ss:$16 sm:$0x3] %vm53, %v52
    %s56 = scalar_lea.vmem %s1, 6
    %57 = vst.msk [vmem:[%s56] ss:$16 sm:$0xc] %vm53, %v52
    %v58 = vld [vmem:[#allocation0] sm:$0xf]
    %59 = vrot.lane.b32.xlu0 %v58, 121
    %v60 = vpop.permute.xlu0 %59
    %vm61 = vcmask 7168
    %s62 = scalar_lea.vmem %s1, 7
    %63 = vst.msk [vmem:[%s62] ss:$16 sm:$0x3] %vm61, %v60
    %s64 = scalar_lea.vmem %s1, 7
    %65 = vst.msk [vmem:[%s64] ss:$16 sm:$0xc] %vm61, %v60
    %v66 = vld [vmem:[#allocation0] sm:$0xf]
    %67 = vrot.lane.b32.xlu0 %v66, 120
    %v68 = vpop.permute.xlu0 %67
    %vm69 = vcmask 7168
    %s70 = scalar_lea.vmem %s1, 8
    %71 = vst.msk [vmem:[%s70] ss:$16 sm:$0x3] %vm69, %v68
    %s72 = scalar_lea.vmem %s1, 8
    %73 = vst.msk [vmem:[%s72] ss:$16 sm:$0xc] %vm69, %v68
    %v74 = vld [vmem:[#allocation0] sm:$0xf]
    %75 = vrot.lane.b32.xlu0 %v74, 119
    %v76 = vpop.permute.xlu0 %75
    %vm77 = vcmask 7168
    %s78 = scalar_lea.vmem %s1, 9
    %79 = vst.msk [vmem:[%s78] ss:$16 sm:$0x3] %vm77, %v76
    %s80 = scalar_lea.vmem %s1, 9
    %81 = vst.msk [vmem:[%s80] ss:$16 sm:$0xc] %vm77, %v76
    %v82 = vld [vmem:[#allocation0] sm:$0xf]
    %83 = vrot.lane.b32.xlu0 %v82, 118
    %v84 = vpop.permute.xlu0 %83
    %vm85 = vcmask 7168
    %s86 = scalar_lea.vmem %s1, 10
    %87 = vst.msk [vmem:[%s86] ss:$16 sm:$0x3] %vm85, %v84
    %s88 = scalar_lea.vmem %s1, 10
    %89 = vst.msk [vmem:[%s88] ss:$16 sm:$0xc] %vm85, %v84
    %v90 = vld [vmem:[#allocation0] sm:$0xf]
    %91 = vrot.lane.b32.xlu0 %v90, 117
    %v92 = vpop.permute.xlu0 %91
    %vm93 = vcmask 7168
    %s94 = scalar_lea.vmem %s1, 11
    %95 = vst.msk [vmem:[%s94] ss:$16 sm:$0x3] %vm93, %v92
    %s96 = scalar_lea.vmem %s1, 11
    %97 = vst.msk [vmem:[%s96] ss:$16 sm:$0xc] %vm93, %v92
    %v98 = vld [vmem:[#allocation0] sm:$0xf]
    %99 = vrot.lane.b32.xlu0 %v98, 116
    %v100 = vpop.permute.xlu0 %99
    %vm101 = vcmask 7168
    %s102 = scalar_lea.vmem %s1, 12
    %103 = vst.msk [vmem:[%s102] ss:$16 sm:$0x3] %vm101, %v100
    %s104 = scalar_lea.vmem %s1, 12
    %105 = vst.msk [vmem:[%s104] ss:$16 sm:$0xc] %vm101, %v100
    %v106 = vld [vmem:[#allocation0] sm:$0xf]
    %107 = vrot.lane.b32.xlu0 %v106, 115
    %v108 = vpop.permute.xlu0 %107
    %vm109 = vcmask 7168
    %s110 = scalar_lea.vmem %s1, 13
    %111 = vst.msk [vmem:[%s110] ss:$16 sm:$0x3] %vm109, %v108
    %s112 = scalar_lea.vmem %s1, 13
    %113 = vst.msk [vmem:[%s112] ss:$16 sm:$0xc] %vm109, %v108
    %v114 = vld [vmem:[#allocation0] sm:$0xf]
    %115 = vrot.lane.b32.xlu0 %v114, 114
    %v116 = vpop.permute.xlu0 %115
    %vm117 = vcmask 7168
    %s118 = scalar_lea.vmem %s1, 14
    %119 = vst.msk [vmem:[%s118] ss:$16 sm:$0x3] %vm117, %v116
    %s120 = scalar_lea.vmem %s1, 14
    %121 = vst.msk [vmem:[%s120] ss:$16 sm:$0xc] %vm117, %v116
    %v122 = vld [vmem:[#allocation0] sm:$0xf]
    %123 = vrot.lane.b32.xlu0 %v122, 113
    %v124 = vpop.permute.xlu0 %123
    %vm125 = vcmask 7168
    %s126 = scalar_lea.vmem %s1, 15
    %127 = vst.msk [vmem:[%s126] ss:$16 sm:$0x3] %vm125, %v124
    %s128 = scalar_lea.vmem %s1, 15
    %129 = vst.msk [vmem:[%s128] ss:$16 sm:$0xc] %vm125, %v124

// kernel: unit_gcn_forward.3
$region0: #{unit_gcn_forward.3}
  #allocation0 [shape = 'u32[]', space=smem, size = 0x4, offset = 0x4, fixed_abs, tag = 'smem constant byte address 0x4 - core index']
  #allocation1 [shape = 'u32[144,128]{1,0:T(1,128)}', space=vmem, size = 0x12000, scoped, tag = 'internal scratch']
  %s0 = inlined_call_operand.vmem [shape: f32[64,128], index: 0, kind: input, shape index: {}, may-alias: {0,4}]
  %s1 = inlined_call_operand.vmem [shape: f32[64,128], index: 1, kind: input, shape index: {}]
  %s2 = inlined_call_operand.vmem [shape: f32[64,1], index: 2, kind: input, shape index: {}]
  %s3 = inlined_call_operand.vmem [shape: f32[64,1], index: 3, kind: input, shape index: {}]
  %s4 = inlined_call_operand.vmem [shape: f32[64,128], index: 4, kind: output, shape index: {}, may-alias: {0,4}]
  %s5 = sld [smem:[#allocation0]]
  $region26: #{unit_gcn_forward.3} parent=0
    _
  %s7 = ssub.s32 1, %s5
  %s8 = scalar_select 0, %s7, %s5
  // Predicated region
  $region2: #{unit_gcn_forward.3} parent=0 // pred_check
    _
  $region3: #{unit_gcn_forward.3} parent=0 // pred_check_branch
    %10 = sbr.rel (0) target = $region5
  $region4: #{unit_gcn_forward.3} parent=0 // pred_region
    _
  $region5: #{unit_gcn_forward.3} parent=0 // pred_fallthru
    _
  // Predicated region
  $region6: #{unit_gcn_forward.3} parent=0 // pred_check
    _
  $region7: #{unit_gcn_forward.3} parent=0 // pred_check_branch
    %12 = sbr.rel (0) target = $region9
  $region8: #{unit_gcn_forward.3} parent=0 // pred_region
    _
  $region9: #{unit_gcn_forward.3} parent=0 // pred_fallthru
    _
  // Predicated region
  $region10: #{unit_gcn_forward.3} parent=0 // pred_check
    _
  $region11: #{unit_gcn_forward.3} parent=0 // pred_check_branch
    %14 = sbr.rel (0) target = $region13
  $region12: #{unit_gcn_forward.3} parent=0 // pred_region
    _
  $region13: #{unit_gcn_forward.3} parent=0 // pred_fallthru
    _
  // Predicated region
  $region14: #{unit_gcn_forward.3} parent=0 // pred_check
    _
  $region15: #{unit_gcn_forward.3} parent=0 // pred_check_branch
    %16 = sbr.rel (0) target = $region17
  $region16: #{unit_gcn_forward.3} parent=0 // pred_region
    _
  $region17: #{unit_gcn_forward.3} parent=0 // pred_fallthru
    _
  %v17 = vld [vmem:[%s0] sm:$0xff]
  %v18 = vld [vmem:[%s0 + $0x8] sm:$0xff]
  %v19 = vld [vmem:[%s0 + $0x10] sm:$0xff]
  %v20 = vld [vmem:[%s0 + $0x18] sm:$0xff]
  %v21 = vld [vmem:[%s0 + $0x20] sm:$0xff]
  %v22 = vld [vmem:[%s0 + $0x28] sm:$0xff]
  %v23 = vld [vmem:[%s0 + $0x30] sm:$0xff]
  %v24 = vld [vmem:[%s0 + $0x38] sm:$0xff]
  %v25 = vld [vmem:[%s2] sm:$0xff]
  %v26 = vld [vmem:[%s2 + $0x8] sm:$0xff]
  %v27 = vld [vmem:[%s2 + $0x10] sm:$0xff]
  %v28 = vld [vmem:[%s2 + $0x18] sm:$0xff]
  %v29 = vld [vmem:[%s2 + $0x20] sm:$0xff]
  %v30 = vld [vmem:[%s2 + $0x28] sm:$0xff]
  %v31 = vld [vmem:[%s2 + $0x30] sm:$0xff]
  %v32 = vld [vmem:[%s2 + $0x38] sm:$0xff]
  %34 = vset.pattern.permute.xlu0 0
  %35 = vperm.xlu0 %34, %v25
  %v36 = vpop.permute.xlu0 %35
  %39 = vset.pattern.permute.xlu0 0
  %40 = vperm.xlu0 %39, %v26
  %v41 = vpop.permute.xlu0 %40
  %44 = vset.pattern.permute.xlu0 0
  %45 = vperm.xlu0 %44, %v27
  %v46 = vpop.permute.xlu0 %45
  %49 = vset.pattern.permute.xlu0 0
  %50 = vperm.xlu0 %49, %v28
  %v51 = vpop.permute.xlu0 %50
  %54 = vset.pattern.permute.xlu0 0
  %55 = vperm.xlu0 %54, %v29
  %v56 = vpop.permute.xlu0 %55
  %59 = vset.pattern.permute.xlu0 0
  %60 = vperm.xlu0 %59, %v30
  %v61 = vpop.permute.xlu0 %60
  %64 = vset.pattern.permute.xlu0 0
  %65 = vperm.xlu0 %64, %v31
  %v66 = vpop.permute.xlu0 %65
  %69 = vset.pattern.permute.xlu0 0
  %70 = vperm.xlu0 %69, %v32
  %v71 = vpop.permute.xlu0 %70
  %v73 = vmul.f32 %v17, %v36
  %v74 = vmul.f32 %v18, %v41
  %v75 = vmul.f32 %v19, %v46
  %v76 = vmul.f32 %v20, %v51
  %v77 = vmul.f32 %v21, %v56
  %v78 = vmul.f32 %v22, %v61
  %v79 = vmul.f32 %v23, %v66
  %v80 = vmul.f32 %v24, %v71
  %v81 = vld [vmem:[%s3] sm:$0xff]
  %v82 = vld [vmem:[%s3 + $0x8] sm:$0xff]
  %v83 = vld [vmem:[%s3 + $0x10] sm:$0xff]
  %v84 = vld [vmem:[%s3 + $0x18] sm:$0xff]
  %v85 = vld [vmem:[%s3 + $0x20] sm:$0xff]
  %v86 = vld [vmem:[%s3 + $0x28] sm:$0xff]
  %v87 = vld [vmem:[%s3 + $0x30] sm:$0xff]
  %v88 = vld [vmem:[%s3 + $0x38] sm:$0xff]
  %90 = vset.pattern.permute.xlu0 0
  %91 = vperm.xlu0 %90, %v81
  %v92 = vpop.permute.xlu0 %91
  %95 = vset.pattern.permute.xlu0 0
  %96 = vperm.xlu0 %95, %v82
  %v97 = vpop.permute.xlu0 %96
  %100 = vset.pattern.permute.xlu0 0
  %101 = vperm.xlu0 %100, %v83
  %v102 = vpop.permute.xlu0 %101
  %105 = vset.pattern.permute.xlu0 0
  %106 = vperm.xlu0 %105, %v84
  %v107 = vpop.permute.xlu0 %106
  %110 = vset.pattern.permute.xlu0 0
  %111 = vperm.xlu0 %110, %v85
  %v112 = vpop.permute.xlu0 %111
  %115 = vset.pattern.permute.xlu0 0
  %116 = vperm.xlu0 %115, %v86
  %v117 = vpop.permute.xlu0 %116
  %120 = vset.pattern.permute.xlu0 0
  %121 = vperm.xlu0 %120, %v87
  %v122 = vpop.permute.xlu0 %121
  %125 = vset.pattern.permute.xlu0 0
  %126 = vperm.xlu0 %125, %v88
  %v127 = vpop.permute.xlu0 %126
  %v129 = vadd.f32 %v73, %v92
  %v130 = vadd.f32 %v74, %v97
  %v131 = vadd.f32 %v75, %v102
  %v132 = vadd.f32 %v76, %v107
  %v133 = vadd.f32 %v77, %v112
  %v134 = vadd.f32 %v78, %v117
  %v135 = vadd.f32 %v79, %v122
  %v136 = vadd.f32 %v80, %v127
  %v137 = vld [vmem:[%s1] sm:$0xff]
  %v138 = vld [vmem:[%s1 + $0x8] sm:$0xff]
  %v139 = vld [vmem:[%s1 + $0x10] sm:$0xff]
  %v140 = vld [vmem:[%s1 + $0x18] sm:$0xff]
  %v141 = vld [vmem:[%s1 + $0x20] sm:$0xff]
  %v142 = vld [vmem:[%s1 + $0x28] sm:$0xff]
  %v143 = vld [vmem:[%s1 + $0x30] sm:$0xff]
  %v144 = vld [vmem:[%s1 + $0x38] sm:$0xff]
  %v145 = vadd.f32 %v129, %v137
  %v146 = vadd.f32 %v130, %v138
  %v147 = vadd.f32 %v131, %v139
  %v148 = vadd.f32 %v132, %v140
  %v149 = vadd.f32 %v133, %v141
  %v150 = vadd.f32 %v134, %v142
  %v151 = vadd.f32 %v135, %v143
  %v152 = vadd.f32 %v136, %v144
  %v153 = vmax.f32 %v145, 0.0
  %v154 = vmax.f32 %v146, 0.0
  %v155 = vmax.f32 %v147, 0.0
  %v156 = vmax.f32 %v148, 0.0
  %v157 = vmax.f32 %v149, 0.0
  %v158 = vmax.f32 %v150, 0.0
  %v159 = vmax.f32 %v151, 0.0
  %v160 = vmax.f32 %v152, 0.0
  %161 = vst [vmem:[%s4] sm:$0xff] %v153
  %162 = vst [vmem:[%s4 + $0x8] sm:$0xff] %v154
  %163 = vst [vmem:[%s4 + $0x10] sm:$0xff] %v155
  %164 = vst [vmem:[%s4 + $0x18] sm:$0xff] %v156
  %165 = vst [vmem:[%s4 + $0x20] sm:$0xff] %v157
  %166 = vst [vmem:[%s4 + $0x28] sm:$0xff] %v158
  %167 = vst [vmem:[%s4 + $0x30] sm:$0xff] %v159
  %168 = vst [vmem:[%s4 + $0x38] sm:$0xff] %v160
  // Predicated region
  $region18: #{unit_gcn_forward.3} parent=0 // pred_check
    _
  $region19: #{unit_gcn_forward.3} parent=0 // pred_check_branch
    %170 = sbr.rel (0) target = $region21
  $region20: #{unit_gcn_forward.3} parent=0 // pred_region
    _
  $region21: #{unit_gcn_forward.3} parent=0 // pred_fallthru
    _
  // Predicated region
  $region22: #{unit_gcn_forward.3} parent=0 // pred_check
    _
  $region23: #{unit_gcn_forward.3} parent=0 // pred_check_branch
    %172 = sbr.rel (0) target = $region25
  $region24: #{unit_gcn_forward.3} parent=0 // pred_region
    _
  $region25: #{unit_gcn_forward.3} parent=0 // pred_fallthru
    _

// kernel: unit_gcn_forward.2
$region0: #{unit_gcn_forward.2}
  #allocation0 [shape = 'u32[]', space=smem, size = 0x4, offset = 0x4, fixed_abs, tag = 'smem constant byte address 0x4 - core index']
  #allocation1 [shape = 'u32[144,128]{1,0:T(1,128)}', space=vmem, size = 0x12000, scoped, tag = 'internal scratch']
  #allocation2 [shape = 'f32[32,512]{1,0:T(8,128)}', space=vmem, size = 0x10000, scoped, tag = 'scratch operand']
  %s0 = inlined_call_operand.vmem [shape: f32[64,128], index: 0, kind: input, shape index: {}]
  %s1 = inlined_call_operand.vmem [shape: f32[3,4,32], index: 1, kind: input, shape index: {}]
  %s2 = inlined_call_operand.vmem [shape: f32[3,4,1], index: 2, kind: input, shape index: {}]
  %s3 = inlined_call_operand.vmem [shape: f32[3,4,32], index: 3, kind: input, shape index: {}]
  %s4 = inlined_call_operand.vmem [shape: f32[3,1,4], index: 4, kind: input, shape index: {}]
  %s5 = inlined_call_operand.vmem [shape: f32[3,32,32], index: 5, kind: input, shape index: {}]
  %s6 = inlined_call_operand.vmem [shape: f32[3,32,1], index: 6, kind: input, shape index: {}]
  %s7 = inlined_call_operand.vmem [shape: f32[3,16,2], index: 7, kind: input, shape index: {}]
  %s8 = inlined_call_operand.vmem [shape: f32[3,32,1], index: 8, kind: input, shape index: {}]
  %s9 = inlined_call_operand.vmem [shape: f32[128,512], index: 9, kind: input, shape index: {}]
  %s10 = inlined_call_operand.vmem [shape: f32[3,1,128], index: 10, kind: input, shape index: {}]
  %s11 = inlined_call_operand.vmem [shape: f32[16,128], index: 11, kind: input, shape index: {}]
  %s12 = inlined_call_operand.vmem [shape: f32[64,128], index: 12, kind: output, shape index: {0}]
  %s13 = inlined_call_operand.vmem [shape: f32[2,16,2], index: 13, kind: output, shape index: {1}]
  %14 = xla_tuple %s12, %s13
  %s15 = sld [smem:[#allocation0]]
  $region89: #{unit_gcn_forward.2} parent=0
    _
  %s17 = ssub.s32 1, %s15
  %s18 = scalar_select 0, %s17, %s15
  loop: start=0, step=1, limit=4
  $region2: #{unit_gcn_forward.2} parent=0 // loop_pre_header
    _
  $region3: #{unit_gcn_forward.2} parent=0 // loop_header
    %s20 = sphi 0, %s24
    %p21 = scmp.ge.s32.totalorder %s20, 4
    %s30 = sphi 0, %s32
    %s33 = sphi 0, %s30
    %s34 = sphi 0, %s33
    %s50 = sphi 0, %s34
    %s54 = sphi 0, %s54
    %s56 = sphi 0, %s54
    %s57 = sphi 0, %s56
    %s71 = sphi 0, %s57
    %s75 = sphi 0, %s75
    %s77 = sphi 0, %s75
    %s78 = sphi 0, %s77
    %s92 = sphi 0, %s78
    %s96 = sphi 0, %s96
    %s98 = sphi 0, %s96
    %s99 = sphi 0, %s98
    %s113 = sphi 0, %s99
    %s117 = sphi 0, %s117
    %s119 = sphi 0, %s117
    %s120 = sphi 0, %s119
    %s134 = sphi 0, %s120
    %s138 = sphi 0, %s138
    %s140 = sphi 0, %s138
    %s141 = sphi 0, %s140
    %s155 = sphi 0, %s141
    %s159 = sphi 0, %s159
    %s161 = sphi 0, %s159
    %s162 = sphi 0, %s161
    %s176 = sphi 0, %s162
    %s180 = sphi 0, %s180
    %s182 = sphi 0, %s180
    %s183 = sphi 0, %s182
    %s197 = sphi 0, %s183
    %s201 = sphi 0, %s201
    %s203 = sphi 0, %s201
    %s204 = sphi 0, %s203
    %s218 = sphi 0, %s204
    %s222 = sphi 0, %s222
    %s224 = sphi 0, %s222
    %s225 = sphi 0, %s224
    %s239 = sphi 0, %s225
    %s243 = sphi 0, %s243
    %s245 = sphi 0, %s243
    %s246 = sphi 0, %s245
    %s260 = sphi 0, %s246
    %s264 = sphi 0, %s264
    %s266 = sphi 0, %s264
    %s267 = sphi 0, %s266
    %s281 = sphi 0, %s267
    %s287 = sphi 0, %s289
    %s290 = sphi 0, %s287
    %s291 = sphi 0, %s290
    %s307 = sphi 0, %s291
    %s313 = sphi 0, %s315
    %s316 = sphi 0, %s313
    %s317 = sphi 0, %s316
    %s333 = sphi 0, %s317
  $region4: #{unit_gcn_forward.2} parent=0 // loop_header_branch
    %23 = sbr.rel (%p21) target = $region8
  $region5: #{unit_gcn_forward.2} parent=0 // loop_body
    %s25 = ssub.s32 %s20, 1
    %s26 = ssub.s32 %s20, 2
    %s27 = sadd.s32 %s20, 1
    %s28 = ssub.s32 %s20, %s27
    %p29 = scmp.eq.s32.totalorder %s28, 0
    %s31 = sadd.s32 %s30, 1
    %s32 = scalar_select %p29, %s30, %s31
    %p35 = pneg %p29
    %p36 = scmp.eq.s32.totalorder %s20, 1
    %p37 = por %p35, %p36
    %p38 = scmp.ne.s32.totalorder %s30, %s33
    %p39 = scmp.eq.s32.totalorder %s20, 0
    %p40 = por %p38, %p39
    %p41 = scmp.ne.s32.totalorder %s30, %s33
    %p42 = scmp.eq.s32.totalorder %s25, 1
    %p43 = por %p41, %p42
    %p44 = scmp.ne.s32.totalorder %s33, %s34
    %p45 = scmp.eq.s32.totalorder %s25, 0
    %p46 = por %p44, %p45
    %p47 = scmp.ne.s32.totalorder %s33, %s34
    %p48 = scmp.eq.s32.totalorder %s26, 1
    %p49 = por %p47, %p48
    %p51 = scmp.ne.s32.totalorder %s34, %s50
    %p52 = scmp.eq.s32.totalorder %s26, 0
    %p53 = por %p51, %p52
    %s55 = sadd.s32 %s54, 1
    %p58 = scmp.eq.s32.totalorder %s20, 1
    %p59 = scmp.ne.s32.totalorder %s54, %s56
    %p60 = scmp.eq.s32.totalorder %s20, 0
    %p61 = por %p59, %p60
    %p62 = scmp.ne.s32.totalorder %s54, %s56
    %p63 = scmp.eq.s32.totalorder %s25, 1
    %p64 = por %p62, %p63
    %p65 = scmp.ne.s32.totalorder %s56, %s57
    %p66 = scmp.eq.s32.totalorder %s25, 0
    %p67 = por %p65, %p66
    %p68 = scmp.ne.s32.totalorder %s56, %s57
    %p69 = scmp.eq.s32.totalorder %s26, 1
    %p70 = por %p68, %p69
    %p72 = scmp.ne.s32.totalorder %s57, %s71
    %p73 = scmp.eq.s32.totalorder %s26, 0
    %p74 = por %p72, %p73
    %s76 = sadd.s32 %s75, 1
    %p79 = scmp.eq.s32.totalorder %s20, 1
    %p80 = scmp.ne.s32.totalorder %s75, %s77
    %p81 = scmp.eq.s32.totalorder %s20, 0
    %p82 = por %p80, %p81
    %p83 = scmp.ne.s32.totalorder %s75, %s77
    %p84 = scmp.eq.s32.totalorder %s25, 1
    %p85 = por %p83, %p84
    %p86 = scmp.ne.s32.totalorder %s77, %s78
    %p87 = scmp.eq.s32.totalorder %s25, 0
    %p88 = por %p86, %p87
    %p89 = scmp.ne.s32.totalorder %s77, %s78
    %p90 = scmp.eq.s32.totalorder %s26, 1
    %p91 = por %p89, %p90
    %p93 = scmp.ne.s32.totalorder %s78, %s92
    %p94 = scmp.eq.s32.totalorder %s26, 0
    %p95 = por %p93, %p94
    %s97 = sadd.s32 %s96, 1
    %p100 = scmp.eq.s32.totalorder %s20, 1
    %p101 = scmp.ne.s32.totalorder %s96, %s98
    %p102 = scmp.eq.s32.totalorder %s20, 0
    %p103 = por %p101, %p102
    %p104 = scmp.ne.s32.totalorder %s96, %s98
    %p105 = scmp.eq.s32.totalorder %s25, 1
    %p106 = por %p104, %p105
    %p107 = scmp.ne.s32.totalorder %s98, %s99
    %p108 = scmp.eq.s32.totalorder %s25, 0
    %p109 = por %p107, %p108
    %p110 = scmp.ne.s32.totalorder %s98, %s99
    %p111 = scmp.eq.s32.totalorder %s26, 1
    %p112 = por %p110, %p111
    %p114 = scmp.ne.s32.totalorder %s99, %s113
    %p115 = scmp.eq.s32.totalorder %s26, 0
    %p116 = por %p114, %p115
    %s118 = sadd.s32 %s117, 1
    %p121 = scmp.eq.s32.totalorder %s20, 1
    %p122 = scmp.ne.s32.totalorder %s117, %s119
    %p123 = scmp.eq.s32.totalorder %s20, 0
    %p124 = por %p122, %p123
    %p125 = scmp.ne.s32.totalorder %s117, %s119
    %p126 = scmp.eq.s32.totalorder %s25, 1
    %p127 = por %p125, %p126
    %p128 = scmp.ne.s32.totalorder %s119, %s120
    %p129 = scmp.eq.s32.totalorder %s25, 0
    %p130 = por %p128, %p129
    %p131 = scmp.ne.s32.totalorder %s119, %s120
    %p132 = scmp.eq.s32.totalorder %s26, 1
    %p133 = por %p131, %p132
    %p135 = scmp.ne.s32.totalorder %s120, %s134
    %p136 = scmp.eq.s32.totalorder %s26, 0
    %p137 = por %p135, %p136
    %s139 = sadd.s32 %s138, 1
    %p142 = scmp.eq.s32.totalorder %s20, 1
    %p143 = scmp.ne.s32.totalorder %s138, %s140
    %p144 = scmp.eq.s32.totalorder %s20, 0
    %p145 = por %p143, %p144
    %p146 = scmp.ne.s32.totalorder %s138, %s140
    %p147 = scmp.eq.s32.totalorder %s25, 1
    %p148 = por %p146, %p147
    %p149 = scmp.ne.s32.totalorder %s140, %s141
    %p150 = scmp.eq.s32.totalorder %s25, 0
    %p151 = por %p149, %p150
    %p152 = scmp.ne.s32.totalorder %s140, %s141
    %p153 = scmp.eq.s32.totalorder %s26, 1
    %p154 = por %p152, %p153
    %p156 = scmp.ne.s32.totalorder %s141, %s155
    %p157 = scmp.eq.s32.totalorder %s26, 0
    %p158 = por %p156, %p157
    %s160 = sadd.s32 %s159, 1
    %p163 = scmp.eq.s32.totalorder %s20, 1
    %p164 = scmp.ne.s32.totalorder %s159, %s161
    %p165 = scmp.eq.s32.totalorder %s20, 0
    %p166 = por %p164, %p165
    %p167 = scmp.ne.s32.totalorder %s159, %s161
    %p168 = scmp.eq.s32.totalorder %s25, 1
    %p169 = por %p167, %p168
    %p170 = scmp.ne.s32.totalorder %s161, %s162
    %p171 = scmp.eq.s32.totalorder %s25, 0
    %p172 = por %p170, %p171
    %p173 = scmp.ne.s32.totalorder %s161, %s162
    %p174 = scmp.eq.s32.totalorder %s26, 1
    %p175 = por %p173, %p174
    %p177 = scmp.ne.s32.totalorder %s162, %s176
    %p178 = scmp.eq.s32.totalorder %s26, 0
    %p179 = por %p177, %p178
    %s181 = sadd.s32 %s180, 1
    %p184 = scmp.eq.s32.totalorder %s20, 1
    %p185 = scmp.ne.s32.totalorder %s180, %s182
    %p186 = scmp.eq.s32.totalorder %s20, 0
    %p187 = por %p185, %p186
    %p188 = scmp.ne.s32.totalorder %s180, %s182
    %p189 = scmp.eq.s32.totalorder %s25, 1
    %p190 = por %p188, %p189
    %p191 = scmp.ne.s32.totalorder %s182, %s183
    %p192 = scmp.eq.s32.totalorder %s25, 0
    %p193 = por %p191, %p192
    %p194 = scmp.ne.s32.totalorder %s182, %s183
    %p195 = scmp.eq.s32.totalorder %s26, 1
    %p196 = por %p194, %p195
    %p198 = scmp.ne.s32.totalorder %s183, %s197
    %p199 = scmp.eq.s32.totalorder %s26, 0
    %p200 = por %p198, %p199
    %s202 = sadd.s32 %s201, 1
    %p205 = scmp.eq.s32.totalorder %s20, 1
    %p206 = scmp.ne.s32.totalorder %s201, %s203
    %p207 = scmp.eq.s32.totalorder %s20, 0
    %p208 = por %p206, %p207
    %p209 = scmp.ne.s32.totalorder %s201, %s203
    %p210 = scmp.eq.s32.totalorder %s25, 1
    %p211 = por %p209, %p210
    %p212 = scmp.ne.s32.totalorder %s203, %s204
    %p213 = scmp.eq.s32.totalorder %s25, 0
    %p214 = por %p212, %p213
    %p215 = scmp.ne.s32.totalorder %s203, %s204
    %p216 = scmp.eq.s32.totalorder %s26, 1
    %p217 = por %p215, %p216
    %p219 = scmp.ne.s32.totalorder %s204, %s218
    %p220 = scmp.eq.s32.totalorder %s26, 0
    %p221 = por %p219, %p220
    %s223 = sadd.s32 %s222, 1
    %p226 = scmp.eq.s32.totalorder %s20, 1
    %p227 = scmp.ne.s32.totalorder %s222, %s224
    %p228 = scmp.eq.s32.totalorder %s20, 0
    %p229 = por %p227, %p228
    %p230 = scmp.ne.s32.totalorder %s222, %s224
    %p231 = scmp.eq.s32.totalorder %s25, 1
    %p232 = por %p230, %p231
    %p233 = scmp.ne.s32.totalorder %s224, %s225
    %p234 = scmp.eq.s32.totalorder %s25, 0
    %p235 = por %p233, %p234
    %p236 = scmp.ne.s32.totalorder %s224, %s225
    %p237 = scmp.eq.s32.totalorder %s26, 1
    %p238 = por %p236, %p237
    %p240 = scmp.ne.s32.totalorder %s225, %s239
    %p241 = scmp.eq.s32.totalorder %s26, 0
    %p242 = por %p240, %p241
    %s244 = sadd.s32 %s243, 1
    %p247 = scmp.eq.s32.totalorder %s20, 1
    %p248 = scmp.ne.s32.totalorder %s243, %s245
    %p249 = scmp.eq.s32.totalorder %s20, 0
    %p250 = por %p248, %p249
    %p251 = scmp.ne.s32.totalorder %s243, %s245
    %p252 = scmp.eq.s32.totalorder %s25, 1
    %p253 = por %p251, %p252
    %p254 = scmp.ne.s32.totalorder %s245, %s246
    %p255 = scmp.eq.s32.totalorder %s25, 0
    %p256 = por %p254, %p255
    %p257 = scmp.ne.s32.totalorder %s245, %s246
    %p258 = scmp.eq.s32.totalorder %s26, 1
    %p259 = por %p257, %p258
    %p261 = scmp.ne.s32.totalorder %s246, %s260
    %p262 = scmp.eq.s32.totalorder %s26, 0
    %p263 = por %p261, %p262
    %s265 = sadd.s32 %s264, 1
    %p268 = scmp.eq.s32.totalorder %s20, 1
    %p269 = scmp.ne.s32.totalorder %s264, %s266
    %p270 = scmp.eq.s32.totalorder %s20, 0
    %p271 = por %p269, %p270
    %p272 = scmp.ne.s32.totalorder %s264, %s266
    %p273 = scmp.eq.s32.totalorder %s25, 1
    %p274 = por %p272, %p273
    %p275 = scmp.ne.s32.totalorder %s266, %s267
    %p276 = scmp.eq.s32.totalorder %s25, 0
    %p277 = por %p275, %p276
    %p278 = scmp.ne.s32.totalorder %s266, %s267
    %p279 = scmp.eq.s32.totalorder %s26, 1
    %p280 = por %p278, %p279
    %p282 = scmp.ne.s32.totalorder %s267, %s281
    %p283 = scmp.eq.s32.totalorder %s26, 0
    %p284 = por %p282, %p283
    %s285 = ssub.s32 %s20, %s27
    %p286 = scmp.eq.s32.totalorder %s285, 0
    %s288 = sadd.s32 %s287, 1
    %s289 = scalar_select %p286, %s287, %s288
    %p292 = pneg %p286
    %p293 = scmp.eq.s32.totalorder %s20, 1
    %p294 = por %p292, %p293
    %p295 = scmp.ne.s32.totalorder %s287, %s290
    %p296 = scmp.eq.s32.totalorder %s20, 0
    %p297 = por %p295, %p296
    %p298 = scmp.ne.s32.totalorder %s287, %s290
    %p299 = scmp.eq.s32.totalorder %s25, 1
    %p300 = por %p298, %p299
    %p301 = scmp.ne.s32.totalorder %s290, %s291
    %p302 = scmp.eq.s32.totalorder %s25, 0
    %p303 = por %p301, %p302
    %p304 = scmp.ne.s32.totalorder %s290, %s291
    %p305 = scmp.eq.s32.totalorder %s26, 1
    %p306 = por %p304, %p305
    %p308 = scmp.ne.s32.totalorder %s291, %s307
    %p309 = scmp.eq.s32.totalorder %s26, 0
    %p310 = por %p308, %p309
    %s311 = ssub.s32 %s20, %s27
    %p312 = scmp.eq.s32.totalorder %s311, 0
    %s314 = sadd.s32 %s313, 1
    %s315 = scalar_select %p312, %s313, %s314
    %p318 = pneg %p312
    %p319 = scmp.eq.s32.totalorder %s20, 1
    %p320 = por %p318, %p319
    %p321 = scmp.ne.s32.totalorder %s313, %s316
    %p322 = scmp.eq.s32.totalorder %s20, 0
    %p323 = por %p321, %p322
    %p324 = scmp.ne.s32.totalorder %s313, %s316
    %p325 = scmp.eq.s32.totalorder %s25, 1
    %p326 = por %p324, %p325
    %p327 = scmp.ne.s32.totalorder %s316, %s317
    %p328 = scmp.eq.s32.totalorder %s25, 0
    %p329 = por %p327, %p328
    %p330 = scmp.ne.s32.totalorder %s316, %s317
    %p331 = scmp.eq.s32.totalorder %s26, 1
    %p332 = por %p330, %p331
    %p334 = scmp.ne.s32.totalorder %s317, %s333
    %p335 = scmp.eq.s32.totalorder %s26, 0
    %p336 = por %p334, %p335
    %p337 = scmp.le.s32.totalorder 1, %s20
    %p338 = scmp.lt.s32.totalorder %s20, 3
    %p339 = pnand %p337, %p338
    %p340 = pneg %p339
    // Predicated region
    $region9: #{unit_gcn_forward.2} parent=5 // pred_check
      _
    $region10: #{unit_gcn_forward.2} parent=5 // pred_check_branch
      %342 = sbr.rel (%p339) target = $region12
    $region11: #{unit_gcn_forward.2} parent=5 // pred_region
      %s343 = ssub.s32 %s20, 1
      // Predicated region
      $region13: #{unit_gcn_forward.2} parent=11 // pred_check
        %p344 = pneg %p67
      $region14: #{unit_gcn_forward.2} parent=11 // pred_check_branch
        %346 = sbr.rel (%p344) target = $region16
      $region15: #{unit_gcn_forward.2} parent=11 // pred_region
        _
      $region16: #{unit_gcn_forward.2} parent=11 // pred_fallthru
        _
      // Predicated region
      $region17: #{unit_gcn_forward.2} parent=11 // pred_check
        %p347 = pneg %p88
      $region18: #{unit_gcn_forward.2} parent=11 // pred_check_branch
        %349 = sbr.rel (%p347) target = $region20
      $region19: #{unit_gcn_forward.2} parent=11 // pred_region
        _
      $region20: #{unit_gcn_forward.2} parent=11 // pred_fallthru
        _
      // Predicated region
      $region21: #{unit_gcn_forward.2} parent=11 // pred_check
        %p350 = pneg %p109
      $region22: #{unit_gcn_forward.2} parent=11 // pred_check_branch
        %352 = sbr.rel (%p350) target = $region24
      $region23: #{unit_gcn_forward.2} parent=11 // pred_region
        _
      $region24: #{unit_gcn_forward.2} parent=11 // pred_fallthru
        _
      // Predicated region
      $region25: #{unit_gcn_forward.2} parent=11 // pred_check
        %p353 = pneg %p130
      $region26: #{unit_gcn_forward.2} parent=11 // pred_check_branch
        %355 = sbr.rel (%p353) target = $region28
      $region27: #{unit_gcn_forward.2} parent=11 // pred_region
        _
      $region28: #{unit_gcn_forward.2} parent=11 // pred_fallthru
        _
      // Predicated region
      $region29: #{unit_gcn_forward.2} parent=11 // pred_check
        %p356 = pneg %p151
      $region30: #{unit_gcn_forward.2} parent=11 // pred_check_branch
        %358 = sbr.rel (%p356) target = $region32
      $region31: #{unit_gcn_forward.2} parent=11 // pred_region
        _
      $region32: #{unit_gcn_forward.2} parent=11 // pred_fallthru
        _
      // Predicated region
      $region33: #{unit_gcn_forward.2} parent=11 // pred_check
        %p359 = pneg %p172
      $region34: #{unit_gcn_forward.2} parent=11 // pred_check_branch
        %361 = sbr.rel (%p359) target = $region36
      $region35: #{unit_gcn_forward.2} parent=11 // pred_region
        _
      $region36: #{unit_gcn_forward.2} parent=11 // pred_fallthru
        _
      // Predicated region
      $region37: #{unit_gcn_forward.2} parent=11 // pred_check
        %p362 = pneg %p193
      $region38: #{unit_gcn_forward.2} parent=11 // pred_check_branch
        %364 = sbr.rel (%p362) target = $region40
      $region39: #{unit_gcn_forward.2} parent=11 // pred_region
        _
      $region40: #{unit_gcn_forward.2} parent=11 // pred_fallthru
        _
      // Predicated region
      $region41: #{unit_gcn_forward.2} parent=11 // pred_check
        %p365 = pneg %p214
      $region42: #{unit_gcn_forward.2} parent=11 // pred_check_branch
        %367 = sbr.rel (%p365) target = $region44
      $region43: #{unit_gcn_forward.2} parent=11 // pred_region
        _
      $region44: #{unit_gcn_forward.2} parent=11 // pred_fallthru
        _
      // Predicated region
      $region45: #{unit_gcn_forward.2} parent=11 // pred_check
        %p368 = pneg %p235
      $region46: #{unit_gcn_forward.2} parent=11 // pred_check_branch
        %370 = sbr.rel (%p368) target = $region48
      $region47: #{unit_gcn_forward.2} parent=11 // pred_region
        _
      $region48: #{unit_gcn_forward.2} parent=11 // pred_fallthru
        _
      // Predicated region
      $region49: #{unit_gcn_forward.2} parent=11 // pred_check
        %p371 = pneg %p256
      $region50: #{unit_gcn_forward.2} parent=11 // pred_check_branch
        %373 = sbr.rel (%p371) target = $region52
      $region51: #{unit_gcn_forward.2} parent=11 // pred_region
        _
      $region52: #{unit_gcn_forward.2} parent=11 // pred_fallthru
        _
      // Predicated region
      $region53: #{unit_gcn_forward.2} parent=11 // pred_check
        %p374 = pneg %p277
      $region54: #{unit_gcn_forward.2} parent=11 // pred_check_branch
        %376 = sbr.rel (%p374) target = $region56
      $region55: #{unit_gcn_forward.2} parent=11 // pred_region
        _
      $region56: #{unit_gcn_forward.2} parent=11 // pred_fallthru
        _
    $region12: #{unit_gcn_forward.2} parent=5 // pred_fallthru
      _
    %p377 = scmp.lt.s32.totalorder %s20, 2
    // Predicated region
    $region57: #{unit_gcn_forward.2} parent=5 // pred_check
      %p378 = pneg %p377
    $region58: #{unit_gcn_forward.2} parent=5 // pred_check_branch
      %380 = sbr.rel (%p378) target = $region60
    $region59: #{unit_gcn_forward.2} parent=5 // pred_region
      // Predicated region
      $region61: #{unit_gcn_forward.2} parent=59 // pred_check
        %p381 = pneg %p40
      $region62: #{unit_gcn_forward.2} parent=59 // pred_check_branch
        %383 = sbr.rel (%p381) target = $region64
      $region63: #{unit_gcn_forward.2} parent=59 // pred_region
        %s384 = smul.u32 4, %s20
        %p385 = scmp.lt.s32.totalorder %s384, 7
        %s386 = scalar_select %p385, %s384, 7
        %s387 = smul.addr %s386, 8
        %s388 = scalar_lea.vmem %s0, %s387
        %s389 = smul.u32 4, %s20
      $region64: #{unit_gcn_forward.2} parent=59 // pred_fallthru
        _
    $region60: #{unit_gcn_forward.2} parent=5 // pred_fallthru
      _
    %p390 = scmp.le.s32.totalorder 1, %s20
    %p391 = scmp.lt.s32.totalorder %s20, 3
    %p392 = pnand %p390, %p391
    %p393 = pneg %p392
    // Predicated region
    $region65: #{unit_gcn_forward.2} parent=5 // pred_check
      _
    $region66: #{unit_gcn_forward.2} parent=5 // pred_check_branch
      %395 = sbr.rel (%p392) target = $region68
    $region67: #{unit_gcn_forward.2} parent=5 // pred_region
      %s396 = ssub.s32 %s20, 1
      %s397 = smul.u32 4, %s25
      %p398 = scmp.lt.s32.totalorder %s397, 7
      %s399 = scalar_select %p398, %s397, 7
      %s400 = smul.addr %s399, 8
      %s401 = scalar_lea.vmem %s0, %s400
      %p402 = pneg %p46
      %p403 = pneg %p43
      %p404 = pneg %p67
      %p405 = pneg %p64
      %p406 = pneg %p88
      %p407 = pneg %p85
      %p408 = pneg %p109
      %p409 = pneg %p106
      %p410 = pneg %p130
      %p411 = pneg %p127
      %p412 = pneg %p151
      %p413 = pneg %p148
      %p414 = pneg %p172
      %p415 = pneg %p169
      %p416 = pneg %p193
      %p417 = pneg %p190
      %p418 = pneg %p214
      %p419 = pneg %p211
      %p420 = pneg %p235
      %p421 = pneg %p232
      %p422 = pneg %p256
      %p423 = pneg %p253
      %p424 = pneg %p277
      %p425 = pneg %p274
      %p426 = pneg %p303
      %p427 = pneg %p300
      %s428 = smul.u32 4, %s25
      %p429 = scmp.lt.s32.totalorder %s428, 7
      %s430 = scalar_select %p429, %s428, 7
      %s431 = smul.addr %s430, 8
      %s432 = scalar_lea.vmem %s12, %s431
      %p433 = pneg %p329
      %p434 = pneg %p326
      %p435 = scmp.lt.s32.totalorder %s25, 1
      %s436 = scalar_select %p435, %s25, 1
      %s437 = smul.addr %s436, 2
      %s438 = smul.addr %s437, 8
      %s439 = scalar_lea.vmem %s13, %s438
      %s440 = smul.u32 4, %s25
      %p441 = scmp.lt.s32.totalorder %s440, 7
      %s442 = scalar_select %p441, %s440, 7
      %s443 = smul.addr %s442, 8
      %s444 = scalar_lea.vmem %s0, %s443
      %s445 = smul.u32 4, %s25
      %s446 = smul.u32 4, %s25
      %p447 = scmp.lt.s32.totalorder %s446, 7
      %s448 = scalar_select %p447, %s446, 7
      %s449 = smul.addr %s448, 8
      %s450 = scalar_lea.vmem %s12, %s449
      %s451 = smul.u32 4, %s25
      %p452 = scmp.lt.s32.totalorder %s25, 1
      %s453 = scalar_select %p452, %s25, 1
      %s454 = smul.addr %s453, 2
      %s455 = smul.addr %s454, 8
      %s456 = scalar_lea.vmem %s13, %s455
      %v457 = vld [vmem:[%s444] sm:$0xff]
      %v458 = vld [vmem:[%s444 + $0x8] sm:$0xff]
      %v459 = vld [vmem:[%s444 + $0x10] sm:$0xff]
      %v460 = vld [vmem:[%s444 + $0x18] sm:$0xff]
      %v461 = vld [vmem:[%s9] sm:$0xff]
      %v462 = vld [vmem:[%s9 + $0x8] sm:$0xff]
      %v463 = vld [vmem:[%s9 + $0x10] sm:$0xff]
      %v464 = vld [vmem:[%s9 + $0x18] sm:$0xff]
      %v465 = vld [vmem:[%s9 + $0x20] sm:$0xff]
      %v466 = vld [vmem:[%s9 + $0x28] sm:$0xff]
      %v467 = vld [vmem:[%s9 + $0x30] sm:$0xff]
      %v468 = vld [vmem:[%s9 + $0x38] sm:$0xff]
      %v469 = vld [vmem:[%s9 + $0x40] sm:$0xff]
      %v470 = vld [vmem:[%s9 + $0x48] sm:$0xff]
      %v471 = vld [vmem:[%s9 + $0x50] sm:$0xff]
      %v472 = vld [vmem:[%s9 + $0x58] sm:$0xff]
      %v473 = vld [vmem:[%s9 + $0x60] sm:$0xff]
      %v474 = vld [vmem:[%s9 + $0x68] sm:$0xff]
      %v475 = vld [vmem:[%s9 + $0x70] sm:$0xff]
      %v476 = vld [vmem:[%s9 + $0x78] sm:$0xff]
      %v477 = vld [vmem:[%s9 + $0x80] sm:$0xff]
      %v478 = vld [vmem:[%s9 + $0x88] sm:$0xff]
      %v479 = vld [vmem:[%s9 + $0x90] sm:$0xff]
      %v480 = vld [vmem:[%s9 + $0x98] sm:$0xff]
      %v481 = vld [vmem:[%s9 + $0xa0] sm:$0xff]
      %v482 = vld [vmem:[%s9 + $0xa8] sm:$0xff]
      %v483 = vld [vmem:[%s9 + $0xb0] sm:$0xff]
      %v484 = vld [vmem:[%s9 + $0xb8] sm:$0xff]
      %v485 = vld [vmem:[%s9 + $0xc0] sm:$0xff]
      %v486 = vld [vmem:[%s9 + $0xc8] sm:$0xff]
      %v487 = vld [vmem:[%s9 + $0xd0] sm:$0xff]
      %v488 = vld [vmem:[%s9 + $0xd8] sm:$0xff]
      %v489 = vld [vmem:[%s9 + $0xe0] sm:$0xff]
      %v490 = vld [vmem:[%s9 + $0xe8] sm:$0xff]
      %v491 = vld [vmem:[%s9 + $0xf0] sm:$0xff]
      %v492 = vld [vmem:[%s9 + $0xf8] sm:$0xff]
      %v493 = vld [vmem:[%s9 + $0x100] sm:$0xff]
      %v494 = vld [vmem:[%s9 + $0x108] sm:$0xff]
      %v495 = vld [vmem:[%s9 + $0x110] sm:$0xff]
      %v496 = vld [vmem:[%s9 + $0x118] sm:$0xff]
      %v497 = vld [vmem:[%s9 + $0x120] sm:$0xff]
      %v498 = vld [vmem:[%s9 + $0x128] sm:$0xff]
      %v499 = vld [vmem:[%s9 + $0x130] sm:$0xff]
      %v500 = vld [vmem:[%s9 + $0x138] sm:$0xff]
      %v501 = vld [vmem:[%s9 + $0x140] sm:$0xff]
      %v502 = vld [vmem:[%s9 + $0x148] sm:$0xff]
      %v503 = vld [vmem:[%s9 + $0x150] sm:$0xff]
      %v504 = vld [vmem:[%s9 + $0x158] sm:$0xff]
      %v505 = vld [vmem:[%s9 + $0x160] sm:$0xff]
      %v506 = vld [vmem:[%s9 + $0x168] sm:$0xff]
      %v507 = vld [vmem:[%s9 + $0x170] sm:$0xff]
      %v508 = vld [vmem:[%s9 + $0x178] sm:$0xff]
      %v509 = vld [vmem:[%s9 + $0x180] sm:$0xff]
      %v510 = vld [vmem:[%s9 + $0x188] sm:$0xff]
      %v511 = vld [vmem:[%s9 + $0x190] sm:$0xff]
      %v512 = vld [vmem:[%s9 + $0x198] sm:$0xff]
      %v513 = vld [vmem:[%s9 + $0x1a0] sm:$0xff]
      %v514 = vld [vmem:[%s9 + $0x1a8] sm:$0xff]
      %v515 = vld [vmem:[%s9 + $0x1b0] sm:$0xff]
      %v516 = vld [vmem:[%s9 + $0x1b8] sm:$0xff]
      %v517 = vld [vmem:[%s9 + $0x1c0] sm:$0xff]
      %v518 = vld [vmem:[%s9 + $0x1c8] sm:$0xff]
      %v519 = vld [vmem:[%s9 + $0x1d0] sm:$0xff]
      %v520 = vld [vmem:[%s9 + $0x1d8] sm:$0xff]
      %v521 = vld [vmem:[%s9 + $0x1e0] sm:$0xff]
      %v522 = vld [vmem:[%s9 + $0x1e8] sm:$0xff]
      %v523 = vld [vmem:[%s9 + $0x1f0] sm:$0xff]
      %v524 = vld [vmem:[%s9 + $0x1f8] sm:$0xff]
      %525 = vmatprep.subr.mxu0 %v462
      %526 = vmatpush1.msra.mxu0 %v461
      %527 = vmatprep.subr.mxu0 %v466
      %528 = vmatpush1.msra.mxu0 %v465
      %529 = vmatprep.subr.mxu0 %v470
      %530 = vmatpush1.msra.mxu0 %v469
      %531 = vmatprep.subr.mxu0 %v474
      %532 = vmatpush1.msra.mxu0 %v473
      %533 = vmatprep.subr.mxu0 %v478
      %534 = vmatpush1.msra.mxu0 %v477
      %535 = vmatprep.subr.mxu0 %v482
      %536 = vmatpush1.msra.mxu0 %v481
      %537 = vmatprep.subr.mxu0 %v486
      %538 = vmatpush1.msra.mxu0 %v485
      %539 = vmatprep.subr.mxu0 %v490
      %540 = vmatpush1.msra.mxu0 %v489
      %541 = vmatprep.subr.mxu0 %v494
      %542 = vmatpush1.msra.mxu0 %v493
      %543 = vmatprep.subr.mxu0 %v498
      %544 = vmatpush1.msra.mxu0 %v497
      %545 = vmatprep.subr.mxu0 %v502
      %546 = vmatpush1.msra.mxu0 %v501
      %547 = vmatprep.subr.mxu0 %v506
      %548 = vmatpush1.msra.mxu0 %v505
      %549 = vmatprep.subr.mxu0 %v510
      %550 = vmatpush1.msra.mxu0 %v509
      %551 = vmatprep.subr.mxu0 %v514
      %552 = vmatpush1.msra.mxu0 %v513
      %553 = vmatprep.subr.mxu0 %v518
      %554 = vmatpush1.msra.mxu0 %v517
      %555 = vmatprep.subr.mxu0 %v522
      %556 = vmatpush1.msra.mxu0 %v521
      %557 = vmatprep.subr.mxu0 0.0
      %558 = vmatpush1.msra.mxu0 0.0
      %559 = vmatprep.subr.mxu0 0.0
      %560 = vmatpush1.msra.mxu0 0.0
      %561 = vmatprep.subr.mxu0 0.0
      %562 = vmatpush1.msra.mxu0 0.0
      %563 = vmatprep.subr.mxu0 0.0
      %564 = vmatpush1.msra.mxu0 0.0
      %565 = vmatprep.subr.mxu0 0.0
      %566 = vmatpush1.msra.mxu0 0.0
      %567 = vmatprep.subr.mxu0 0.0
      %568 = vmatpush1.msra.mxu0 0.0
      %569 = vmatprep.subr.mxu0 0.0
      %570 = vmatpush1.msra.mxu0 0.0
      %571 = vmatprep.subr.mxu0 0.0
      %572 = vmatpush1.msra.mxu0 0.0
      %573 = vmatprep.subr.mxu0 0.0
      %574 = vmatpush1.msra.mxu0 0.0
      %575 = vmatprep.subr.mxu0 0.0
      %576 = vmatpush1.msra.mxu0 0.0
      %577 = vmatprep.subr.mxu0 0.0
      %578 = vmatpush1.msra.mxu0 0.0
      %579 = vmatprep.subr.mxu0 0.0
      %580 = vmatpush1.msra.mxu0 0.0
      %581 = vmatprep.subr.mxu0 0.0
      %582 = vmatpush1.msra.mxu0 0.0
      %583 = vmatprep.subr.mxu0 0.0
      %584 = vmatpush1.msra.mxu0 0.0
      %585 = vmatprep.subr.mxu0 0.0
      %586 = vmatpush1.msra.mxu0 0.0
      %587 = vmatprep.subr.mxu0 0.0
      %588 = vmatpush1.msra.mxu0 0.0
      %589 = vmatprep.mubr.f32.mxu0 0.0
      %590 = vmatmul.mubr.f32.gmra.mrb[0].mxu0 %v457
      %v591 = vpop.f32.mrb[0].mxu0
      %v592 = vadd.f32 0.0, %v591
      %v593 = vpop.f32.mrb[0].mxu0
      %v594 = vadd.f32 0.0, %v593
      %595 = vmatprep.mubr.f32.mxu0 0.0
      %596 = vmatmul.mubr.f32.gmra.mrb[0].mxu0 %v458
      %v597 = vpop.f32.mrb[0].mxu0
      %v598 = vadd.f32 0.0, %v597
      %v599 = vpop.f32.mrb[0].mxu0
      %v600 = vadd.f32 0.0, %v599
      %601 = vmatprep.mubr.f32.mxu0 0.0
      %602 = vmatmul.mubr.f32.gmra.mrb[0].mxu0 %v459
      %v603 = vpop.f32.mrb[0].mxu0
      %v604 = vadd.f32 0.0, %v603
      %v605 = vpop.f32.mrb[0].mxu0
      %v606 = vadd.f32 0.0, %v605
      %607 = vmatprep.mubr.f32.mxu0 0.0
      %608 = vmatmul.mubr.f32.gmra.mrb[0].mxu0 %v460
      %v609 = vpop.f32.mrb[0].mxu0
      %v610 = vadd.f32 0.0, %v609
      %v611 = vpop.f32.mrb[0].mxu0
      %v612 = vadd.f32 0.0, %v611
      %613 = vdwg.mxu0
      %614 = vmatprep.subr.mxu0 %v464
      %615 = vmatpush1.msra.mxu0 %v463
      %616 = vmatprep.subr.mxu0 %v468
      %617 = vmatpush1.msra.mxu0 %v467
      %618 = vmatprep.subr.mxu0 %v472
      %619 = vmatpush1.msra.mxu0 %v471
      %620 = vmatprep.subr.mxu0 %v476
      %621 = vmatpush1.msra.mxu0 %v475
      %622 = vmatprep.subr.mxu0 %v480
      %623 = vmatpush1.msra.mxu0 %v479
      %624 = vmatprep.subr.mxu0 %v484
      %625 = vmatpush1.msra.mxu0 %v483
      %626 = vmatprep.subr.mxu0 %v488
      %627 = vmatpush1.msra.mxu0 %v487
      %628 = vmatprep.subr.mxu0 %v492
      %629 = vmatpush1.msra.mxu0 %v491
      %630 = vmatprep.subr.mxu0 %v496
      %631 = vmatpush1.msra.mxu0 %v495
      %632 = vmatprep.subr.mxu0 %v500
      %633 = vmatpush1.msra.mxu0 %v499
      %634 = vmatprep.subr.mxu0 %v504
      %635 = vmatpush1.msra.mxu0 %v503
      %636 = vmatprep.subr.mxu0 %v508
      %637 = vmatpush1.msra.mxu0 %v507
      %638 = vmatprep.subr.mxu0 %v512
      %639 = vmatpush1.msra.mxu0 %v511
      %640 = vmatprep.subr.mxu0 %v516
      %641 = vmatpush1.msra.mxu0 %v515
      %642 = vmatprep.subr.mxu0 %v520
      %643 = vmatpush1.msra.mxu0 %v519
      %644 = vmatprep.subr.mxu0 %v524
      %645 = vmatpush1.msra.mxu0 %v523
      %646 = vmatprep.subr.mxu0 0.0
      %647 = vmatpush1.msra.mxu0 0.0
      %648 = vmatprep.subr.mxu0 0.0
      %649 = vmatpush1.msra.mxu0 0.0
      %650 = vmatprep.subr.mxu0 0.0
      %651 = vmatpush1.msra.mxu0 0.0
      %652 = vmatprep.subr.mxu0 0.0
      %653 = vmatpush1.msra.mxu0 0.0
      %654 = vmatprep.subr.mxu0 0.0
      %655 = vmatpush1.msra.mxu0 0.0
      %656 = vmatprep.subr.mxu0 0.0
      %657 = vmatpush1.msra.mxu0 0.0
      %658 = vmatprep.subr.mxu0 0.0
      %659 = vmatpush1.msra.mxu0 0.0
      %660 = vmatprep.subr.mxu0 0.0
      %661 = vmatpush1.msra.mxu0 0.0
      %662 = vmatprep.subr.mxu0 0.0
      %663 = vmatpush1.msra.mxu0 0.0
      %664 = vmatprep.subr.mxu0 0.0
      %665 = vmatpush1.msra.mxu0 0.0
      %666 = vmatprep.subr.mxu0 0.0
      %667 = vmatpush1.msra.mxu0 0.0
      %668 = vmatprep.subr.mxu0 0.0
      %669 = vmatpush1.msra.mxu0 0.0
      %670 = vmatprep.subr.mxu0 0.0
      %671 = vmatpush1.msra.mxu0 0.0
      %672 = vmatprep.subr.mxu0 0.0
      %673 = vmatpush1.msra.mxu0 0.0
      %674 = vmatprep.subr.mxu0 0.0
      %675 = vmatpush1.msra.mxu0 0.0
      %676 = vmatprep.subr.mxu0 0.0
      %677 = vmatpush1.msra.mxu0 0.0
      %678 = vmatprep.mubr.f32.mxu0 0.0
      %679 = vmatmul.mubr.f32.gmra.mrb[0].mxu0 %v457
      %v680 = vpop.f32.mrb[0].mxu0
      %v681 = vadd.f32 0.0, %v680
      %v682 = vpop.f32.mrb[0].mxu0
      %v683 = vadd.f32 0.0, %v682
      %684 = vmatprep.mubr.f32.mxu0 0.0
      %685 = vmatmul.mubr.f32.gmra.mrb[0].mxu0 %v458
      %v686 = vpop.f32.mrb[0].mxu0
      %v687 = vadd.f32 0.0, %v686
      %v688 = vpop.f32.mrb[0].mxu0
      %v689 = vadd.f32 0.0, %v688
      %690 = vmatprep.mubr.f32.mxu0 0.0
      %691 = vmatmul.mubr.f32.gmra.mrb[0].mxu0 %v459
      %v692 = vpop.f32.mrb[0].mxu0
      %v693 = vadd.f32 0.0, %v692
      %v694 = vpop.f32.mrb[0].mxu0
      %v695 = vadd.f32 0.0, %v694
      %696 = vmatprep.mubr.f32.mxu0 0.0
      %697 = vmatmul.mubr.f32.gmra.mrb[0].mxu0 %v460
      %v698 = vpop.f32.mrb[0].mxu0
      %v699 = vadd.f32 0.0, %v698
      %v700 = vpop.f32.mrb[0].mxu0
      %v701 = vadd.f32 0.0, %v700
      %702 = vdwg.mxu0
      %703 = vst [vmem:[#allocation2] sm:$0xff] %v592
      %704 = vst [vmem:[#allocation2 + $0x8] sm:$0xff] %v594
      %705 = vst [vmem:[#allocation2 + $0x10] sm:$0xff] %v681
      %706 = vst [vmem:[#allocation2 + $0x18] sm:$0xff] %v683
      %707 = vst [vmem:[#allocation2 + $0x20] sm:$0xff] %v598
      %708 = vst [vmem:[#allocation2 + $0x28] sm:$0xff] %v600
      %709 = vst [vmem:[#allocation2 + $0x30] sm:$0xff] %v687
      %710 = vst [vmem:[#allocation2 + $0x38] sm:$0xff] %v689
      %711 = vst [vmem:[#allocation2 + $0x40] sm:$0xff] %v604
      %712 = vst [vmem:[#allocation2 + $0x48] sm:$0xff] %v606
      %713 = vst [vmem:[#allocation2 + $0x50] sm:$0xff] %v693
      %714 = vst [vmem:[#allocation2 + $0x58] sm:$0xff] %v695
      %715 = vst [vmem:[#allocation2 + $0x60] sm:$0xff] %v610
      %716 = vst [vmem:[#allocation2 + $0x68] sm:$0xff] %v612
      %717 = vst [vmem:[#allocation2 + $0x70] sm:$0xff] %v699
      %718 = vst [vmem:[#allocation2 + $0x78] sm:$0xff] %v701
      %v719 = vld [vmem:[%s11] sm:$0xff]
      %v720 = vld [vmem:[%s11 + $0x8] sm:$0xff]
      %721 = vmatprep.subr.mxu0 0.0
      %722 = vmatpush1.xpose.msra.mxu0 %v457
      %723 = vmatprep.subr.mxu0 0.0
      %724 = vmatpush1.xpose.msra.mxu0 %v458
      %725 = vmatprep.subr.mxu0 0.0
      %726 = vmatpush1.xpose.msra.mxu0 %v459
      %727 = vmatprep.subr.mxu0 0.0
      %728 = vmatpush1.xpose.msra.mxu0 %v460
      %729 = vmatprep.subr.mxu0 0.0
      %730 = vmatpush1.xpose.msra.mxu0 0.0
      %731 = vmatprep.subr.mxu0 0.0
      %732 = vmatpush1.xpose.msra.mxu0 0.0
      %733 = vmatprep.subr.mxu0 0.0
      %734 = vmatpush1.xpose.msra.mxu0 0.0
      %735 = vmatprep.subr.mxu0 0.0
      %736 = vmatpush1.xpose.msra.mxu0 0.0
      %737 = vmatprep.subr.mxu0 0.0
      %738 = vmatpush1.xpose.msra.mxu0 0.0
      %739 = vmatprep.subr.mxu0 0.0
      %740 = vmatpush1.xpose.msra.mxu0 0.0
      %741 = vmatprep.subr.mxu0 0.0
      %742 = vmatpush1.xpose.msra.mxu0 0.0
      %743 = vmatprep.subr.mxu0 0.0
      %744 = vmatpush1.xpose.msra.mxu0 0.0
      %745 = vmatprep.subr.mxu0 0.0
      %746 = vmatpush1.xpose.msra.mxu0 0.0
      %747 = vmatprep.subr.mxu0 0.0
      %748 = vmatpush1.xpose.msra.mxu0 0.0
      %749 = vmatprep.subr.mxu0 0.0
      %750 = vmatpush1.xpose.msra.mxu0 0.0
      %751 = vmatprep.subr.mxu0 0.0
      %752 = vmatpush1.xpose.msra.mxu0 0.0
      %753 = vmatprep.subr.mxu0 0.0
      %754 = vmatpush1.xpose.msra.mxu0 0.0
      %755 = vmatprep.subr.mxu0 0.0
      %756 = vmatpush1.xpose.msra.mxu0 0.0
      %757 = vmatprep.subr.mxu0 0.0
      %758 = vmatpush1.xpose.msra.mxu0 0.0
      %759 = vmatprep.subr.mxu0 0.0
      %760 = vmatpush1.xpose.msra.mxu0 0.0
      %761 = vmatprep.subr.mxu0 0.0
      %762 = vmatpush1.xpose.msra.mxu0 0.0
      %763 = vmatprep.subr.mxu0 0.0
      %764 = vmatpush1.xpose.msra.mxu0 0.0
      %765 = vmatprep.subr.mxu0 0.0
      %766 = vmatpush1.xpose.msra.mxu0 0.0
      %767 = vmatprep.subr.mxu0 0.0
      %768 = vmatpush1.xpose.msra.mxu0 0.0
      %769 = vmatprep.subr.mxu0 0.0
      %770 = vmatpush1.xpose.msra.mxu0 0.0
      %771 = vmatprep.subr.mxu0 0.0
      %772 = vmatpush1.xpose.msra.mxu0 0.0
      %773 = vmatprep.subr.mxu0 0.0
      %774 = vmatpush1.xpose.msra.mxu0 0.0
      %775 = vmatprep.subr.mxu0 0.0
      %776 = vmatpush1.xpose.msra.mxu0 0.0
      %777 = vmatprep.subr.mxu0 0.0
      %778 = vmatpush1.xpose.msra.mxu0 0.0
      %779 = vmatprep.subr.mxu0 0.0
      %780 = vmatpush1.xpose.msra.mxu0 0.0
      %781 = vmatprep.subr.mxu0 0.0
      %782 = vmatpush1.xpose.msra.mxu0 0.0
      %783 = vmatprep.subr.mxu0 0.0
      %784 = vmatpush1.xpose.msra.mxu0 0.0
      %785 = vmatprep.mubr.f32.mxu0 0.0
      %786 = vmatmul.mubr.f32.gmra.mrb[0].mxu0 %v719
      %v787 = vpop.f32.mrb[0].mxu0
      %v788 = vadd.f32 0.0, %v787
      %v789 = vpop.f32.mrb[0].mxu0
      %790 = vmatprep.mubr.f32.mxu0 0.0
      %791 = vmatmul.mubr.f32.gmra.mrb[0].mxu0 %v720
      %v792 = vpop.f32.mrb[0].mxu0
      %v793 = vadd.f32 0.0, %v792
      %v794 = vpop.f32.mrb[0].mxu0
      %795 = vdwg.mxu0
      %v796 = vld [vmem:[%s9 + $0x18] sm:$0xff]
      %v797 = vld [vmem:[%s9 + $0x38] sm:$0xff]
      %v798 = vld [vmem:[%s9 + $0x58] sm:$0xff]
      %v799 = vld [vmem:[%s9 + $0x78] sm:$0xff]
      %v800 = vld [vmem:[%s9 + $0x98] sm:$0xff]
      %v801 = vld [vmem:[%s9 + $0xb8] sm:$0xff]
      %v802 = vld [vmem:[%s9 + $0xd8] sm:$0xff]
      %v803 = vld [vmem:[%s9 + $0xf8] sm:$0xff]
      %v804 = vld [vmem:[%s9 + $0x118] sm:$0xff]
      %v805 = vld [vmem:[%s9 + $0x138] sm:$0xff]
      %v806 = vld [vmem:[%s9 + $0x158] sm:$0xff]
      %v807 = vld [vmem:[%s9 + $0x178] sm:$0xff]
      %v808 = vld [vmem:[%s9 + $0x198] sm:$0xff]
      %v809 = vld [vmem:[%s9 + $0x1b8] sm:$0xff]
      %v810 = vld [vmem:[%s9 + $0x1d8] sm:$0xff]
      %v811 = vld [vmem:[%s9 + $0x1f8] sm:$0xff]
      %812 = vst [vmem:[%s450] sm:$0xff] 0.0
      %813 = vst [vmem:[%s450 + $0x8] sm:$0xff] 0.0
      %814 = vst [vmem:[%s450 + $0x10] sm:$0xff] 0.0
      %815 = vst [vmem:[%s450 + $0x18] sm:$0xff] 0.0
      %v816 = vld [vmem:[%s5] sm:$0xff]
      %v817 = vld [vmem:[%s5 + $0x8] sm:$0xff]
      %v818 = vld [vmem:[%s5 + $0x10] sm:$0xff]
      %v819 = vld [vmem:[%s5 + $0x18] sm:$0xff]
      %v820 = vld [vmem:[%s6] sm:$0xff]
      %v821 = vld [vmem:[%s6 + $0x8] sm:$0xff]
      %v822 = vld [vmem:[%s6 + $0x10] sm:$0xff]
      %v823 = vld [vmem:[%s6 + $0x18] sm:$0xff]
      %v824 = vld [vmem:[%s8] sm:$0xff]
      %v825 = vld [vmem:[%s8 + $0x8] sm:$0xff]
      %v826 = vld [vmem:[%s8 + $0x10] sm:$0xff]
      %v827 = vld [vmem:[%s8 + $0x18] sm:$0xff]
      %v828 = vld [vmem:[%s7] sm:$0xff]
      %v829 = vld [vmem:[%s7 + $0x8] sm:$0xff]
      %831 = vset.pattern.permute.xlu0 0
      %832 = vperm.xlu0 %831, %v820
      %v833 = vpop.permute.xlu0 %832
      %836 = vset.pattern.permute.xlu0 0
      %837 = vperm.xlu0 %836, %v821
      %v838 = vpop.permute.xlu0 %837
      %841 = vset.pattern.permute.xlu0 0
      %842 = vperm.xlu0 %841, %v822
      %v843 = vpop.permute.xlu0 %842
      %846 = vset.pattern.permute.xlu0 0
      %847 = vperm.xlu0 %846, %v823
      %v848 = vpop.permute.xlu0 %847
      %vm850 = vcmask 261120
      %v852 = vsel %vm850, %v816, 0
      %v855 = vsel %vm850, %v817, 0
      %v858 = vsel %vm850, %v818, 0
      %v861 = vsel %vm850, %v819, 0
      %863 = vmatprep.subr.mxu0 0.0
      %864 = vmatpush1.msra.mxu0 %v457
      %865 = vmatprep.subr.mxu0 0.0
      %866 = vmatpush1.msra.mxu0 %v458
      %867 = vmatprep.subr.mxu0 0.0
      %868 = vmatpush1.msra.mxu0 %v459
      %869 = vmatprep.subr.mxu0 0.0
      %870 = vmatpush1.msra.mxu0 %v460
      %871 = vmatprep.subr.mxu0 0.0
      %872 = vmatpush1.msra.mxu0 0.0
      %873 = vmatprep.subr.mxu0 0.0
      %874 = vmatpush1.msra.mxu0 0.0
      %875 = vmatprep.subr.mxu0 0.0
      %876 = vmatpush1.msra.mxu0 0.0
      %877 = vmatprep.subr.mxu0 0.0
      %878 = vmatpush1.msra.mxu0 0.0
      %879 = vmatprep.subr.mxu0 0.0
      %880 = vmatpush1.msra.mxu0 0.0
      %881 = vmatprep.subr.mxu0 0.0
      %882 = vmatpush1.msra.mxu0 0.0
      %883 = vmatprep.subr.mxu0 0.0
      %884 = vmatpush1.msra.mxu0 0.0
      %885 = vmatprep.subr.mxu0 0.0
      %886 = vmatpush1.msra.mxu0 0.0
      %887 = vmatprep.subr.mxu0 0.0
      %888 = vmatpush1.msra.mxu0 0.0
      %889 = vmatprep.subr.mxu0 0.0
      %890 = vmatpush1.msra.mxu0 0.0
      %891 = vmatprep.subr.mxu0 0.0
      %892 = vmatpush1.msra.mxu0 0.0
      %893 = vmatprep.subr.mxu0 0.0
      %894 = vmatpush1.msra.mxu0 0.0
      %895 = vmatprep.subr.mxu0 0.0
      %896 = vmatpush1.msra.mxu0 0.0
      %897 = vmatprep.subr.mxu0 0.0
      %898 = vmatpush1.msra.mxu0 0.0
      %899 = vmatprep.subr.mxu0 0.0
      %900 = vmatpush1.msra.mxu0 0.0
      %901 = vmatprep.subr.mxu0 0.0
      %902 = vmatpush1.msra.mxu0 0.0
      %903 = vmatprep.subr.mxu0 0.0
      %904 = vmatpush1.msra.mxu0 0.0
      %905 = vmatprep.subr.mxu0 0.0
      %906 = vmatpush1.msra.mxu0 0.0
      %907 = vmatprep.subr.mxu0 0.0
      %908 = vmatpush1.msra.mxu0 0.0
      %909 = vmatprep.subr.mxu0 0.0
      %910 = vmatpush1.msra.mxu0 0.0
      %911 = vmatprep.subr.mxu0 0.0
      %912 = vmatpush1.msra.mxu0 0.0
      %913 = vmatprep.subr.mxu0 0.0
      %914 = vmatpush1.msra.mxu0 0.0
      %915 = vmatprep.subr.mxu0 0.0
      %916 = vmatpush1.msra.mxu0 0.0
      %917 = vmatprep.subr.mxu0 0.0
      %918 = vmatpush1.msra.mxu0 0.0
      %919 = vmatprep.subr.mxu0 0.0
      %920 = vmatpush1.msra.mxu0 0.0
      %921 = vmatprep.subr.mxu0 0.0
      %922 = vmatpush1.msra.mxu0 0.0
      %923 = vmatprep.subr.mxu0 0.0
      %924 = vmatpush1.msra.mxu0 0.0
      %925 = vmatprep.subr.mxu0 0.0
      %926 = vmatpush1.msra.mxu0 0.0
      %927 = vmatprep.mubr.f32.mxu0 0.0
      %928 = vmatmul.mubr.f32.gmra.mrb[0].mxu0 %v852
      %v929 = vpop.f32.mrb[0].mxu0
      %v930 = vadd.f32 %v833, %v929
      %v931 = vpop.f32.mrb[0].mxu0
      %932 = vmatprep.mubr.f32.mxu0 0.0
      %933 = vmatmul.mubr.f32.gmra.mrb[0].mxu0 %v855
      %v934 = vpop.f32.mrb[0].mxu0
      %v935 = vadd.f32 %v838, %v934
      %v936 = vpop.f32.mrb[0].mxu0
      %937 = vmatprep.mubr.f32.mxu0 0.0
      %938 = vmatmul.mubr.f32.gmra.mrb[0].mxu0 %v858
      %v939 = vpop.f32.mrb[0].mxu0
      %v940 = vadd.f32 %v843, %v939
      %v941 = vpop.f32.mrb[0].mxu0
      %942 = vmatprep.mubr.f32.mxu0 0.0
      %943 = vmatmul.mubr.f32.gmra.mrb[0].mxu0 %v861
      %v944 = vpop.f32.mrb[0].mxu0
      %v945 = vadd.f32 %v848, %v944
      %v946 = vpop.f32.mrb[0].mxu0
      %947 = vdwg.mxu0
      %v948 = vld [vmem:[#allocation2] sm:$0xff]
      %v949 = vld [vmem:[#allocation2 + $0x20] sm:$0xff]
      %v950 = vld [vmem:[#allocation2 + $0x40] sm:$0xff]
      %v951 = vld [vmem:[#allocation2 + $0x60] sm:$0xff]
      %v952 = vld [vmem:[%s10] sm:$0x1]
      %v954 = vlaneseq
      %v955 = vshrl.u32 %v954, 7
      %v956 = vsub.s32 0, %v955
      %v957 = vrot.slane %v952, %v956
      %v959 = vmul.f32 %v833, %v957
      %v960 = vmul.f32 %v838, %v957
      %v961 = vmul.f32 %v843, %v957
      %v962 = vmul.f32 %v848, %v957
      %963 = vmatprep.subr.mxu0 0.0
      %964 = vmatpush1.msra.mxu0 %v948
      %965 = vmatprep.subr.mxu0 0.0
      %966 = vmatpush1.msra.mxu0 %v949
      %967 = vmatprep.subr.mxu0 0.0
      %968 = vmatpush1.msra.mxu0 %v950
      %969 = vmatprep.subr.mxu0 0.0
      %970 = vmatpush1.msra.mxu0 %v951
      %971 = vmatprep.subr.mxu0 0.0
      %972 = vmatpush1.msra.mxu0 0.0
      %973 = vmatprep.subr.mxu0 0.0
      %974 = vmatpush1.msra.mxu0 0.0
      %975 = vmatprep.subr.mxu0 0.0
      %976 = vmatpush1.msra.mxu0 0.0
      %977 = vmatprep.subr.mxu0 0.0
      %978 = vmatpush1.msra.mxu0 0.0
      %979 = vmatprep.subr.mxu0 0.0
      %980 = vmatpush1.msra.mxu0 0.0
      %981 = vmatprep.subr.mxu0 0.0
      %982 = vmatpush1.msra.mxu0 0.0
      %983 = vmatprep.subr.mxu0 0.0
      %984 = vmatpush1.msra.mxu0 0.0
      %985 = vmatprep.subr.mxu0 0.0
      %986 = vmatpush1.msra.mxu0 0.0
      %987 = vmatprep.subr.mxu0 0.0
      %988 = vmatpush1.msra.mxu0 0.0
      %989 = vmatprep.subr.mxu0 0.0
      %990 = vmatpush1.msra.mxu0 0.0
      %991 = vmatprep.subr.mxu0 0.0
      %992 = vmatpush1.msra.mxu0 0.0
      %993 = vmatprep.subr.mxu0 0.0
      %994 = vmatpush1.msra.mxu0 0.0
      %995 = vmatprep.subr.mxu0 0.0
      %996 = vmatpush1.msra.mxu0 0.0
      %997 = vmatprep.subr.mxu0 0.0
      %998 = vmatpush1.msra.mxu0 0.0
      %999 = vmatprep.subr.mxu0 0.0
      %1000 = vmatpush1.msra.mxu0 0.0
      %1001 = vmatprep.subr.mxu0 0.0
      %1002 = vmatpush1.msra.mxu0 0.0
      %1003 = vmatprep.subr.mxu0 0.0
      %1004 = vmatpush1.msra.mxu0 0.0
      %1005 = vmatprep.subr.mxu0 0.0
      %1006 = vmatpush1.msra.mxu0 0.0
      %1007 = vmatprep.subr.mxu0 0.0
      %1008 = vmatpush1.msra.mxu0 0.0
      %1009 = vmatprep.subr.mxu0 0.0
      %1010 = vmatpush1.msra.mxu0 0.0
      %1011 = vmatprep.subr.mxu0 0.0
      %1012 = vmatpush1.msra.mxu0 0.0
      %1013 = vmatprep.subr.mxu0 0.0
      %1014 = vmatpush1.msra.mxu0 0.0
      %1015 = vmatprep.subr.mxu0 0.0
      %1016 = vmatpush1.msra.mxu0 0.0
      %1017 = vmatprep.subr.mxu0 0.0
      %1018 = vmatpush1.msra.mxu0 0.0
      %1019 = vmatprep.subr.mxu0 0.0
      %1020 = vmatpush1.msra.mxu0 0.0
      %1021 = vmatprep.subr.mxu0 0.0
      %1022 = vmatpush1.msra.mxu0 0.0
      %1023 = vmatprep.subr.mxu0 0.0
      %1024 = vmatpush1.msra.mxu0 0.0
      %1025 = vmatprep.subr.mxu0 0.0
      %1026 = vmatpush1.msra.mxu0 0.0
      %1027 = vmatprep.mubr.f32.mxu0 0.0
      %1028 = vmatmul.mubr.f32.gmra.mrb[0].mxu0 %v852
      %v1029 = vpop.f32.mrb[0].mxu0
      %v1030 = vadd.f32 %v959, %v1029
      %v1031 = vpop.f32.mrb[0].mxu0
      %1032 = vmatprep.mubr.f32.mxu0 0.0
      %1033 = vmatmul.mubr.f32.gmra.mrb[0].mxu0 %v855
      %v1034 = vpop.f32.mrb[0].mxu0
      %v1035 = vadd.f32 %v960, %v1034
      %v1036 = vpop.f32.mrb[0].mxu0
      %1037 = vmatprep.mubr.f32.mxu0 0.0
      %1038 = vmatmul.mubr.f32.gmra.mrb[0].mxu0 %v858
      %v1039 = vpop.f32.mrb[0].mxu0
      %v1040 = vadd.f32 %v961, %v1039
      %v1041 = vpop.f32.mrb[0].mxu0
      %1042 = vmatprep.mubr.f32.mxu0 0.0
      %1043 = vmatmul.mubr.f32.gmra.mrb[0].mxu0 %v861
      %v1044 = vpop.f32.mrb[0].mxu0
      %v1045 = vadd.f32 %v962, %v1044
      %v1046 = vpop.f32.mrb[0].mxu0
      %1047 = vdwg.mxu0
      %v1048 = vld [vmem:[#allocation2 + $0x18] sm:$0xff]
      %v1049 = vld [vmem:[#allocation2 + $0x38] sm:$0xff]
      %v1050 = vld [vmem:[#allocation2 + $0x58] sm:$0xff]
      %v1051 = vld [vmem:[#allocation2 + $0x78] sm:$0xff]
      %v1052 = vmul.f32 %v820, 16.0
      %v1053 = vmul.f32 %v821, 16.0
      %v1054 = vmul.f32 %v822, 16.0
      %v1055 = vmul.f32 %v823, 16.0
      %1057 = vset.pattern.permute.xlu0 0
      %1058 = vperm.xlu0 %1057, %v1052
      %v1059 = vpop.permute.xlu0 %1058
      %1062 = vset.pattern.permute.xlu0 0
      %1063 = vperm.xlu0 %1062, %v1053
      %v1064 = vpop.permute.xlu0 %1063
      %1067 = vset.pattern.permute.xlu0 0
      %1068 = vperm.xlu0 %1067, %v1054
      %v1069 = vpop.permute.xlu0 %1068
      %1072 = vset.pattern.permute.xlu0 0
      %1073 = vperm.xlu0 %1072, %v1055
      %v1074 = vpop.permute.xlu0 %1073
      %1076 = vmatprep.subr.mxu0 0.0
      %1077 = vmatpush1.msra.mxu0 %v1048
      %1078 = vmatprep.subr.mxu0 0.0
      %1079 = vmatpush1.msra.mxu0 %v1049
      %1080 = vmatprep.subr.mxu0 0.0
      %1081 = vmatpush1.msra.mxu0 %v1050
      %1082 = vmatprep.subr.mxu0 0.0
      %1083 = vmatpush1.msra.mxu0 %v1051
      %1084 = vmatprep.subr.mxu0 0.0
      %1085 = vmatpush1.msra.mxu0 0.0
      %1086 = vmatprep.subr.mxu0 0.0
      %1087 = vmatpush1.msra.mxu0 0.0
      %1088 = vmatprep.subr.mxu0 0.0
      %1089 = vmatpush1.msra.mxu0 0.0
      %1090 = vmatprep.subr.mxu0 0.0
      %1091 = vmatpush1.msra.mxu0 0.0
      %1092 = vmatprep.subr.mxu0 0.0
      %1093 = vmatpush1.msra.mxu0 0.0
      %1094 = vmatprep.subr.mxu0 0.0
      %1095 = vmatpush1.msra.mxu0 0.0
      %1096 = vmatprep.subr.mxu0 0.0
      %1097 = vmatpush1.msra.mxu0 0.0
      %1098 = vmatprep.subr.mxu0 0.0
      %1099 = vmatpush1.msra.mxu0 0.0
      %1100 = vmatprep.subr.mxu0 0.0
      %1101 = vmatpush1.msra.mxu0 0.0
      %1102 = vmatprep.subr.mxu0 0.0
      %1103 = vmatpush1.msra.mxu0 0.0
      %1104 = vmatprep.subr.mxu0 0.0
      %1105 = vmatpush1.msra.mxu0 0.0
      %1106 = vmatprep.subr.mxu0 0.0
      %1107 = vmatpush1.msra.mxu0 0.0
      %1108 = vmatprep.subr.mxu0 0.0
      %1109 = vmatpush1.msra.mxu0 0.0
      %1110 = vmatprep.subr.mxu0 0.0
      %1111 = vmatpush1.msra.mxu0 0.0
      %1112 = vmatprep.subr.mxu0 0.0
      %1113 = vmatpush1.msra.mxu0 0.0
      %1114 = vmatprep.subr.mxu0 0.0
      %1115 = vmatpush1.msra.mxu0 0.0
      %1116 = vmatprep.subr.mxu0 0.0
      %1117 = vmatpush1.msra.mxu0 0.0
      %1118 = vmatprep.subr.mxu0 0.0
      %1119 = vmatpush1.msra.mxu0 0.0
      %1120 = vmatprep.subr.mxu0 0.0
      %1121 = vmatpush1.msra.mxu0 0.0
      %1122 = vmatprep.subr.mxu0 0.0
      %1123 = vmatpush1.msra.mxu0 0.0
      %1124 = vmatprep.subr.mxu0 0.0
      %1125 = vmatpush1.msra.mxu0 0.0
      %1126 = vmatprep.subr.mxu0 0.0
      %1127 = vmatpush1.msra.mxu0 0.0
      %1128 = vmatprep.subr.mxu0 0.0
      %1129 = vmatpush1.msra.mxu0 0.0
      %1130 = vmatprep.subr.mxu0 0.0
      %1131 = vmatpush1.msra.mxu0 0.0
      %1132 = vmatprep.subr.mxu0 0.0
      %1133 = vmatpush1.msra.mxu0 0.0
      %1134 = vmatprep.subr.mxu0 0.0
      %1135 = vmatpush1.msra.mxu0 0.0
      %1136 = vmatprep.subr.mxu0 0.0
      %1137 = vmatpush1.msra.mxu0 0.0
      %1138 = vmatprep.subr.mxu0 0.0
      %1139 = vmatpush1.msra.mxu0 0.0
      %1140 = vmatprep.mubr.f32.mxu0 0.0
      %1141 = vmatmul.mubr.f32.gmra.mrb[0].mxu0 %v852
      %v1142 = vpop.f32.mrb[0].mxu0
      %v1143 = vadd.f32 %v1059, %v1142
      %v1144 = vpop.f32.mrb[0].mxu0
      %1145 = vmatprep.mubr.f32.mxu0 0.0
      %1146 = vmatmul.mubr.f32.gmra.mrb[0].mxu0 %v855
      %v1147 = vpop.f32.mrb[0].mxu0
      %v1148 = vadd.f32 %v1064, %v1147
      %v1149 = vpop.f32.mrb[0].mxu0
      %1150 = vmatprep.mubr.f32.mxu0 0.0
      %1151 = vmatmul.mubr.f32.gmra.mrb[0].mxu0 %v858
      %v1152 = vpop.f32.mrb[0].mxu0
      %v1153 = vadd.f32 %v1069, %v1152
      %v1154 = vpop.f32.mrb[0].mxu0
      %1155 = vmatprep.mubr.f32.mxu0 0.0
      %1156 = vmatmul.mubr.f32.gmra.mrb[0].mxu0 %v861
      %v1157 = vpop.f32.mrb[0].mxu0
      %v1158 = vadd.f32 %v1074, %v1157
      %v1159 = vpop.f32.mrb[0].mxu0
      %1160 = vdwg.mxu0
      %1162 = vset.pattern.permute.xlu0 0
      %1163 = vperm.xlu0 %1162, %v824
      %v1164 = vpop.permute.xlu0 %1163
      %1167 = vset.pattern.permute.xlu0 0
      %1168 = vperm.xlu0 %1167, %v825
      %v1169 = vpop.permute.xlu0 %1168
      %1172 = vset.pattern.permute.xlu0 0
      %1173 = vperm.xlu0 %1172, %v826
      %v1174 = vpop.permute.xlu0 %1173
      %1177 = vset.pattern.permute.xlu0 0
      %1178 = vperm.xlu0 %1177, %v827
      %v1179 = vpop.permute.xlu0 %1178
      %v1181 = vmul.f32 %v1164, %v1143
      %v1182 = vmul.f32 %v1169, %v1148
      %v1183 = vmul.f32 %v1174, %v1153
      %v1184 = vmul.f32 %v1179, %v1158
      %v1185 = vld [vmem:[%s450] sm:$0xff]
      %v1186 = vld [vmem:[%s450 + $0x8] sm:$0xff]
      %v1187 = vld [vmem:[%s450 + $0x10] sm:$0xff]
      %v1188 = vld [vmem:[%s450 + $0x18] sm:$0xff]
      %v1189 = vadd.f32 %v1030, %v1181
      %v1190 = vadd.f32 %v1035, %v1182
      %v1191 = vadd.f32 %v1040, %v1183
      %v1192 = vadd.f32 %v1045, %v1184
      %v1193 = vadd.f32 %v1185, %v1189
      %v1194 = vadd.f32 %v1186, %v1190
      %v1195 = vadd.f32 %v1187, %v1191
      %v1196 = vadd.f32 %v1188, %v1192
      %1197 = vst [vmem:[%s450] sm:$0xff] %v1193
      %1198 = vst [vmem:[%s450 + $0x8] sm:$0xff] %v1194
      %1199 = vst [vmem:[%s450 + $0x10] sm:$0xff] %v1195
      %1200 = vst [vmem:[%s450 + $0x18] sm:$0xff] %v1196
      %v1201 = vld [vmem:[%s1] sm:$0xf]
      %v1202 = vld [vmem:[%s2] sm:$0xf]
      %1204 = vset.pattern.permute.xlu0 0
      %1205 = vperm.xlu0 %1204, %v1202
      %v1206 = vpop.permute.xlu0 %1205
      %v1209 = vsel %vm850, %v1201, 0
      %v1212 = vsel %vm850, %v788, 0
      %v1215 = vsel %vm850, %v793, 0
      %1217 = vmatprep.subr.mxu0 0.0
      %1218 = vmatpush1.xpose.msra.mxu0 %v1212
      %1219 = vmatprep.subr.mxu0 0.0
      %1220 = vmatpush1.xpose.msra.mxu0 %v1215
      %1221 = vmatprep.subr.mxu0 0.0
      %1222 = vmatpush1.xpose.msra.mxu0 0.0
      %1223 = vmatprep.subr.mxu0 0.0
      %1224 = vmatpush1.xpose.msra.mxu0 0.0
      %1225 = vmatprep.subr.mxu0 0.0
      %1226 = vmatpush1.xpose.msra.mxu0 0.0
      %1227 = vmatprep.subr.mxu0 0.0
      %1228 = vmatpush1.xpose.msra.mxu0 0.0
      %1229 = vmatprep.subr.mxu0 0.0
      %1230 = vmatpush1.xpose.msra.mxu0 0.0
      %1231 = vmatprep.subr.mxu0 0.0
      %1232 = vmatpush1.xpose.msra.mxu0 0.0
      %1233 = vmatprep.subr.mxu0 0.0
      %1234 = vmatpush1.xpose.msra.mxu0 0.0
      %1235 = vmatprep.subr.mxu0 0.0
      %1236 = vmatpush1.xpose.msra.mxu0 0.0
      %1237 = vmatprep.subr.mxu0 0.0
      %1238 = vmatpush1.xpose.msra.mxu0 0.0
      %1239 = vmatprep.subr.mxu0 0.0
      %1240 = vmatpush1.xpose.msra.mxu0 0.0
      %1241 = vmatprep.subr.mxu0 0.0
      %1242 = vmatpush1.xpose.msra.mxu0 0.0
      %1243 = vmatprep.subr.mxu0 0.0
      %1244 = vmatpush1.xpose.msra.mxu0 0.0
      %1245 = vmatprep.subr.mxu0 0.0
      %1246 = vmatpush1.xpose.msra.mxu0 0.0
      %1247 = vmatprep.subr.mxu0 0.0
      %1248 = vmatpush1.xpose.msra.mxu0 0.0
      %1249 = vmatprep.subr.mxu0 0.0
      %1250 = vmatpush1.xpose.msra.mxu0 0.0
      %1251 = vmatprep.subr.mxu0 0.0
      %1252 = vmatpush1.xpose.msra.mxu0 0.0
      %1253 = vmatprep.subr.mxu0 0.0
      %1254 = vmatpush1.xpose.msra.mxu0 0.0
      %1255 = vmatprep.subr.mxu0 0.0
      %1256 = vmatpush1.xpose.msra.mxu0 0.0
      %1257 = vmatprep.subr.mxu0 0.0
      %1258 = vmatpush1.xpose.msra.mxu0 0.0
      %1259 = vmatprep.subr.mxu0 0.0
      %1260 = vmatpush1.xpose.msra.mxu0 0.0
      %1261 = vmatprep.subr.mxu0 0.0
      %1262 = vmatpush1.xpose.msra.mxu0 0.0
      %1263 = vmatprep.subr.mxu0 0.0
      %1264 = vmatpush1.xpose.msra.mxu0 0.0
      %1265 = vmatprep.subr.mxu0 0.0
      %1266 = vmatpush1.xpose.msra.mxu0 0.0
      %1267 = vmatprep.subr.mxu0 0.0
      %1268 = vmatpush1.xpose.msra.mxu0 0.0
      %1269 = vmatprep.subr.mxu0 0.0
      %1270 = vmatpush1.xpose.msra.mxu0 0.0
      %1271 = vmatprep.subr.mxu0 0.0
      %1272 = vmatpush1.xpose.msra.mxu0 0.0
      %1273 = vmatprep.subr.mxu0 0.0
      %1274 = vmatpush1.xpose.msra.mxu0 0.0
      %1275 = vmatprep.subr.mxu0 0.0
      %1276 = vmatpush1.xpose.msra.mxu0 0.0
      %1277 = vmatprep.subr.mxu0 0.0
      %1278 = vmatpush1.xpose.msra.mxu0 0.0
      %1279 = vmatprep.subr.mxu0 0.0
      %1280 = vmatpush1.xpose.msra.mxu0 0.0
      %1281 = vmatprep.mubr.f32.mxu0 0.0
      %1282 = vmatmul.mubr.f32.gmra.mrb[0].mxu0 %v1209
      %v1283 = vpop.f32.mrb[0].mxu0
      %v1284 = vadd.f32 %v1206, %v1283
      %v1285 = vpop.f32.mrb[0].mxu0
      %1286 = vdwg.mxu0
      %v1287 = vld [vmem:[%s3] sm:$0xf]
      %v1288 = vld [vmem:[%s4] sm:$0x1]
      %v1290 = vlaneseq
      %v1291 = vshrl.u32 %v1290, 7
      %v1292 = vsub.s32 0, %v1291
      %v1293 = vrot.slane %v1288, %v1292
      %v1296 = vsel %vm850, %v1287, 0
      %1298 = vmatprep.subr.mxu0 0.0
      %1299 = vmatpush1.xpose.msra.mxu0 %v1296
      %1300 = vmatprep.subr.mxu0 0.0
      %1301 = vmatpush1.xpose.msra.mxu0 0.0
      %1302 = vmatprep.subr.mxu0 0.0
      %1303 = vmatpush1.xpose.msra.mxu0 0.0
      %1304 = vmatprep.subr.mxu0 0.0
      %1305 = vmatpush1.xpose.msra.mxu0 0.0
      %1306 = vmatprep.subr.mxu0 0.0
      %1307 = vmatpush1.xpose.msra.mxu0 0.0
      %1308 = vmatprep.subr.mxu0 0.0
      %1309 = vmatpush1.xpose.msra.mxu0 0.0
      %1310 = vmatprep.subr.mxu0 0.0
      %1311 = vmatpush1.xpose.msra.mxu0 0.0
      %1312 = vmatprep.subr.mxu0 0.0
      %1313 = vmatpush1.xpose.msra.mxu0 0.0
      %1314 = vmatprep.subr.mxu0 0.0
      %1315 = vmatpush1.xpose.msra.mxu0 0.0
      %1316 = vmatprep.subr.mxu0 0.0
      %1317 = vmatpush1.xpose.msra.mxu0 0.0
      %1318 = vmatprep.subr.mxu0 0.0
      %1319 = vmatpush1.xpose.msra.mxu0 0.0
      %1320 = vmatprep.subr.mxu0 0.0
      %1321 = vmatpush1.xpose.msra.mxu0 0.0
      %1322 = vmatprep.subr.mxu0 0.0
      %1323 = vmatpush1.xpose.msra.mxu0 0.0
      %1324 = vmatprep.subr.mxu0 0.0
      %1325 = vmatpush1.xpose.msra.mxu0 0.0
      %1326 = vmatprep.subr.mxu0 0.0
      %1327 = vmatpush1.xpose.msra.mxu0 0.0
      %1328 = vmatprep.subr.mxu0 0.0
      %1329 = vmatpush1.xpose.msra.mxu0 0.0
      %1330 = vmatprep.subr.mxu0 0.0
      %1331 = vmatpush1.xpose.msra.mxu0 0.0
      %1332 = vmatprep.subr.mxu0 0.0
      %1333 = vmatpush1.xpose.msra.mxu0 0.0
      %1334 = vmatprep.subr.mxu0 0.0
      %1335 = vmatpush1.xpose.msra.mxu0 0.0
      %1336 = vmatprep.subr.mxu0 0.0
      %1337 = vmatpush1.xpose.msra.mxu0 0.0
      %1338 = vmatprep.subr.mxu0 0.0
      %1339 = vmatpush1.xpose.msra.mxu0 0.0
      %1340 = vmatprep.subr.mxu0 0.0
      %1341 = vmatpush1.xpose.msra.mxu0 0.0
      %1342 = vmatprep.subr.mxu0 0.0
      %1343 = vmatpush1.xpose.msra.mxu0 0.0
      %1344 = vmatprep.subr.mxu0 0.0
      %1345 = vmatpush1.xpose.msra.mxu0 0.0
      %1346 = vmatprep.subr.mxu0 0.0
      %1347 = vmatpush1.xpose.msra.mxu0 0.0
      %1348 = vmatprep.subr.mxu0 0.0
      %1349 = vmatpush1.xpose.msra.mxu0 0.0
      %1350 = vmatprep.subr.mxu0 0.0
      %1351 = vmatpush1.xpose.msra.mxu0 0.0
      %1352 = vmatprep.subr.mxu0 0.0
      %1353 = vmatpush1.xpose.msra.mxu0 0.0
      %1354 = vmatprep.subr.mxu0 0.0
      %1355 = vmatpush1.xpose.msra.mxu0 0.0
      %1356 = vmatprep.subr.mxu0 0.0
      %1357 = vmatpush1.xpose.msra.mxu0 0.0
      %1358 = vmatprep.subr.mxu0 0.0
      %1359 = vmatpush1.xpose.msra.mxu0 0.0
      %1360 = vmatprep.subr.mxu0 0.0
      %1361 = vmatpush1.xpose.msra.mxu0 0.0
      %1362 = vmatprep.mubr.f32.mxu0 0.0
      %1363 = vmatmul.mubr.f32.gmra.mrb[0].mxu0 %v1212
      %v1364 = vpop.f32.mrb[0].mxu0
      %v1365 = vadd.f32 %v1293, %v1364
      %v1366 = vpop.f32.mrb[0].mxu0
      %1367 = vmatprep.mubr.f32.mxu0 0.0
      %1368 = vmatmul.mubr.f32.gmra.mrb[0].mxu0 %v1215
      %v1369 = vpop.f32.mrb[0].mxu0
      %v1370 = vadd.f32 %v1293, %v1369
      %v1371 = vpop.f32.mrb[0].mxu0
      %1372 = vdwg.mxu0
      %v1373 = vlaneseq
      %v1374 = vshrl.u32 %v1373, 7
      %v1375 = vsub.s32 0, %v1374
      %v1376 = vrot.slane %v1284, %v1375
      %1378 = vset.pattern.permute.xlu0 0
      %1379 = vperm.xlu0 %1378, %v1365
      %v1380 = vpop.permute.xlu0 %1379
      %1383 = vset.pattern.permute.xlu0 0
      %1384 = vperm.xlu0 %1383, %v1370
      %v1385 = vpop.permute.xlu0 %1384
      %v1387 = vsub.f32 %v1376, %v1380
      %v1388 = vsub.f32 %v1376, %v1385
      %v1389 = vtanh.pop %v1387
      %v1390 = vtanh.pop %v1388
      %1393 = vrot.lane.b32.xlu0 %v1389, 16
      %v1394 = vpop.permute.xlu0 %1393
      %1395 = vrot.lane.b32.xlu0 %v1390, 16
      %v1396 = vpop.permute.xlu0 %1395
      %1399 = vrot.lane.b32.xlu0 %v1389, 32
      %v1400 = vpop.permute.xlu0 %1399
      %1401 = vrot.lane.b32.xlu0 %v1390, 32
      %v1402 = vpop.permute.xlu0 %1401
      %1405 = vrot.lane.b32.xlu0 %v1389, 48
      %v1406 = vpop.permute.xlu0 %1405
      %1407 = vrot.lane.b32.xlu0 %v1390, 48
      %v1408 = vpop.permute.xlu0 %1407
      %1411 = vrot.lane.b32.xlu0 %v1389, 64
      %v1412 = vpop.permute.xlu0 %1411
      %1413 = vrot.lane.b32.xlu0 %v1390, 64
      %v1414 = vpop.permute.xlu0 %1413
      %1417 = vrot.lane.b32.xlu0 %v1389, 80
      %v1418 = vpop.permute.xlu0 %1417
      %1419 = vrot.lane.b32.xlu0 %v1390, 80
      %v1420 = vpop.permute.xlu0 %1419
      %1423 = vrot.lane.b32.xlu0 %v1389, 96
      %v1424 = vpop.permute.xlu0 %1423
      %1425 = vrot.lane.b32.xlu0 %v1390, 96
      %v1426 = vpop.permute.xlu0 %1425
      %1429 = vrot.lane.b32.xlu0 %v1389, 112
      %v1430 = vpop.permute.xlu0 %1429
      %1431 = vrot.lane.b32.xlu0 %v1390, 112
      %v1432 = vpop.permute.xlu0 %1431
      %vm1435 = vcmask 130048
      %v1436 = vsel %vm1435, %v1389, %v1394
      %v1437 = vsel %vm1435, %v1390, %v1396
      %v1438 = vsel %vm850, %v1436, %v1400
      %v1439 = vsel %vm850, %v1437, %v1402
      %vm1440 = vcmask 392192
      %v1441 = vsel %vm1440, %v1438, %v1406
      %v1442 = vsel %vm1440, %v1439, %v1408
      %vm1443 = vcmask 523264
      %v1444 = vsel %vm1443, %v1441, %v1412
      %v1445 = vsel %vm1443, %v1442, %v1414
      %vm1446 = vcmask 654336
      %v1447 = vsel %vm1446, %v1444, %v1418
      %v1448 = vsel %vm1446, %v1445, %v1420
      %vm1449 = vcmask 785408
      %v1450 = vsel %vm1449, %v1447, %v1424
      %v1451 = vsel %vm1449, %v1448, %v1426
      %vm1452 = vcmask 916480
      %v1453 = vsel %vm1452, %v1450, %v1430
      %v1454 = vsel %vm1452, %v1451, %v1432
      %v1455 = vmul.f32 %v796, %v1453
      %v1456 = vmul.f32 %v797, %v1454
      %v1457 = vmul.f32 %v798, %v1453
      %v1458 = vmul.f32 %v799, %v1454
      %v1459 = vmul.f32 %v800, %v1453
      %v1460 = vmul.f32 %v801, %v1454
      %v1461 = vmul.f32 %v802, %v1453
      %v1462 = vmul.f32 %v803, %v1454
      %v1463 = vmul.f32 %v804, %v1453
      %v1464 = vmul.f32 %v805, %v1454
      %v1465 = vmul.f32 %v806, %v1453
      %v1466 = vmul.f32 %v807, %v1454
      %v1467 = vmul.f32 %v808, %v1453
      %v1468 = vmul.f32 %v809, %v1454
      %v1469 = vmul.f32 %v810, %v1453
      %v1470 = vmul.f32 %v811, %v1454
      %1471 = vmatprep.subr.mxu0 0.0
      %1472 = vmatpush1.msra.mxu0 %v1455
      %1473 = vmatprep.subr.mxu0 0.0
      %1474 = vmatpush1.msra.mxu0 %v1456
      %1475 = vmatprep.subr.mxu0 0.0
      %1476 = vmatpush1.msra.mxu0 %v1457
      %1477 = vmatprep.subr.mxu0 0.0
      %1478 = vmatpush1.msra.mxu0 %v1458
      %1479 = vmatprep.subr.mxu0 0.0
      %1480 = vmatpush1.msra.mxu0 %v1459
      %1481 = vmatprep.subr.mxu0 0.0
      %1482 = vmatpush1.msra.mxu0 %v1460
      %1483 = vmatprep.subr.mxu0 0.0
      %1484 = vmatpush1.msra.mxu0 %v1461
      %1485 = vmatprep.subr.mxu0 0.0
      %1486 = vmatpush1.msra.mxu0 %v1462
      %1487 = vmatprep.subr.mxu0 0.0
      %1488 = vmatpush1.msra.mxu0 %v1463
      %1489 = vmatprep.subr.mxu0 0.0
      %1490 = vmatpush1.msra.mxu0 %v1464
      %1491 = vmatprep.subr.mxu0 0.0
      %1492 = vmatpush1.msra.mxu0 %v1465
      %1493 = vmatprep.subr.mxu0 0.0
      %1494 = vmatpush1.msra.mxu0 %v1466
      %1495 = vmatprep.subr.mxu0 0.0
      %1496 = vmatpush1.msra.mxu0 %v1467
      %1497 = vmatprep.subr.mxu0 0.0
      %1498 = vmatpush1.msra.mxu0 %v1468
      %1499 = vmatprep.subr.mxu0 0.0
      %1500 = vmatpush1.msra.mxu0 %v1469
      %1501 = vmatprep.subr.mxu0 0.0
      %1502 = vmatpush1.msra.mxu0 %v1470
      %1503 = vmatprep.subr.mxu0 0.0
      %1504 = vmatpush1.msra.mxu0 0.0
      %1505 = vmatprep.subr.mxu0 0.0
      %1506 = vmatpush1.msra.mxu0 0.0
      %1507 = vmatprep.subr.mxu0 0.0
      %1508 = vmatpush1.msra.mxu0 0.0
      %1509 = vmatprep.subr.mxu0 0.0
      %1510 = vmatpush1.msra.mxu0 0.0
      %1511 = vmatprep.subr.mxu0 0.0
      %1512 = vmatpush1.msra.mxu0 0.0
      %1513 = vmatprep.subr.mxu0 0.0
      %1514 = vmatpush1.msra.mxu0 0.0
      %1515 = vmatprep.subr.mxu0 0.0
      %1516 = vmatpush1.msra.mxu0 0.0
      %1517 = vmatprep.subr.mxu0 0.0
      %1518 = vmatpush1.msra.mxu0 0.0
      %1519 = vmatprep.subr.mxu0 0.0
      %1520 = vmatpush1.msra.mxu0 0.0
      %1521 = vmatprep.subr.mxu0 0.0
      %1522 = vmatpush1.msra.mxu0 0.0
      %1523 = vmatprep.subr.mxu0 0.0
      %1524 = vmatpush1.msra.mxu0 0.0
      %1525 = vmatprep.subr.mxu0 0.0
      %1526 = vmatpush1.msra.mxu0 0.0
      %1527 = vmatprep.subr.mxu0 0.0
      %1528 = vmatpush1.msra.mxu0 0.0
      %1529 = vmatprep.subr.mxu0 0.0
      %1530 = vmatpush1.msra.mxu0 0.0
      %1531 = vmatprep.subr.mxu0 0.0
      %1532 = vmatpush1.msra.mxu0 0.0
      %1533 = vmatprep.subr.mxu0 0.0
      %1534 = vmatpush1.msra.mxu0 0.0
      %1535 = vmatprep.mubr.f32.mxu0 0.0
      %1536 = vmatmul.mubr.f32.gmra.mrb[0].mxu0 %v930
      %v1537 = vpop.f32.mrb[0].mxu0
      %v1538 = vadd.f32 0.0, %v1537
      %v1539 = vpop.f32.mrb[0].mxu0
      %1540 = vmatprep.mubr.f32.mxu0 0.0
      %1541 = vmatmul.mubr.f32.gmra.mrb[0].mxu0 %v935
      %v1542 = vpop.f32.mrb[0].mxu0
      %v1543 = vadd.f32 0.0, %v1542
      %v1544 = vpop.f32.mrb[0].mxu0
      %1545 = vdwg.mxu0
      %1547 = vset.pattern.permute.xlu0 0
      %1548 = vperm.xlu0 %1547, %v828
      %v1549 = vpop.permute.xlu0 %1548
      %1552 = vset.pattern.permute.xlu0 0
      %1553 = vperm.xlu0 %1552, %v829
      %v1554 = vpop.permute.xlu0 %1553
      %v1556 = vmul.f32 %v1549, %v1538
      %v1557 = vmul.f32 %v1554, %v1543
      %v1558 = vadd.f32 %v1556, 0.0
      %v1559 = vadd.f32 %v1557, 0.0
      %v1560 = vlaneseq
      %v1561 = vshrl.u32 %v1560, 7
      %v1562 = vsub.s32 1, %v1561
      %v1563 = vrot.slane %v1284, %v1562
      %1564 = vset.pattern.permute.xlu0 1
      %1565 = vperm.xlu0 %1564, %v1365
      %v1566 = vpop.permute.xlu0 %1565
      %1568 = vset.pattern.permute.xlu0 1
      %1569 = vperm.xlu0 %1568, %v1370
      %v1570 = vpop.permute.xlu0 %1569
      %v1572 = vsub.f32 %v1563, %v1566
      %v1573 = vsub.f32 %v1563, %v1570
      %v1574 = vtanh.pop %v1572
      %v1575 = vtanh.pop %v1573
      %1578 = vrot.lane.b32.xlu0 %v1574, 16
      %v1579 = vpop.permute.xlu0 %1578
      %1580 = vrot.lane.b32.xlu0 %v1575, 16
      %v1581 = vpop.permute.xlu0 %1580
      %1584 = vrot.lane.b32.xlu0 %v1574, 32
      %v1585 = vpop.permute.xlu0 %1584
      %1586 = vrot.lane.b32.xlu0 %v1575, 32
      %v1587 = vpop.permute.xlu0 %1586
      %1590 = vrot.lane.b32.xlu0 %v1574, 48
      %v1591 = vpop.permute.xlu0 %1590
      %1592 = vrot.lane.b32.xlu0 %v1575, 48
      %v1593 = vpop.permute.xlu0 %1592
      %1596 = vrot.lane.b32.xlu0 %v1574, 64
      %v1597 = vpop.permute.xlu0 %1596
      %1598 = vrot.lane.b32.xlu0 %v1575, 64
      %v1599 = vpop.permute.xlu0 %1598
      %1602 = vrot.lane.b32.xlu0 %v1574, 80
      %v1603 = vpop.permute.xlu0 %1602
      %1604 = vrot.lane.b32.xlu0 %v1575, 80
      %v1605 = vpop.permute.xlu0 %1604
      %1608 = vrot.lane.b32.xlu0 %v1574, 96
      %v1609 = vpop.permute.xlu0 %1608
      %1610 = vrot.lane.b32.xlu0 %v1575, 96
      %v1611 = vpop.permute.xlu0 %1610
      %1614 = vrot.lane.b32.xlu0 %v1574, 112
      %v1615 = vpop.permute.xlu0 %1614
      %1616 = vrot.lane.b32.xlu0 %v1575, 112
      %v1617 = vpop.permute.xlu0 %1616
      %v1620 = vsel %vm1435, %v1574, %v1579
      %v1621 = vsel %vm1435, %v1575, %v1581
      %v1622 = vsel %vm850, %v1620, %v1585
      %v1623 = vsel %vm850, %v1621, %v1587
      %v1624 = vsel %vm1440, %v1622, %v1591
      %v1625 = vsel %vm1440, %v1623, %v1593
      %v1626 = vsel %vm1443, %v1624, %v1597
      %v1627 = vsel %vm1443, %v1625, %v1599
      %v1628 = vsel %vm1446, %v1626, %v1603
      %v1629 = vsel %vm1446, %v1627, %v1605
      %v1630 = vsel %vm1449, %v1628, %v1609
      %v1631 = vsel %vm1449, %v1629, %v1611
      %v1632 = vsel %vm1452, %v1630, %v1615
      %v1633 = vsel %vm1452, %v1631, %v1617
      %v1634 = vmul.f32 %v796, %v1632
      %v1635 = vmul.f32 %v797, %v1633
      %v1636 = vmul.f32 %v798, %v1632
      %v1637 = vmul.f32 %v799, %v1633
      %v1638 = vmul.f32 %v800, %v1632
      %v1639 = vmul.f32 %v801, %v1633
      %v1640 = vmul.f32 %v802, %v1632
      %v1641 = vmul.f32 %v803, %v1633
      %v1642 = vmul.f32 %v804, %v1632
      %v1643 = vmul.f32 %v805, %v1633
      %v1644 = vmul.f32 %v806, %v1632
      %v1645 = vmul.f32 %v807, %v1633
      %v1646 = vmul.f32 %v808, %v1632
      %v1647 = vmul.f32 %v809, %v1633
      %v1648 = vmul.f32 %v810, %v1632
      %v1649 = vmul.f32 %v811, %v1633
      %1650 = vmatprep.subr.mxu0 0.0
      %1651 = vmatpush1.msra.mxu0 %v1634
      %1652 = vmatprep.subr.mxu0 0.0
      %1653 = vmatpush1.msra.mxu0 %v1635
      %1654 = vmatprep.subr.mxu0 0.0
      %1655 = vmatpush1.msra.mxu0 %v1636
      %1656 = vmatprep.subr.mxu0 0.0
      %1657 = vmatpush1.msra.mxu0 %v1637
      %1658 = vmatprep.subr.mxu0 0.0
      %1659 = vmatpush1.msra.mxu0 %v1638
      %1660 = vmatprep.subr.mxu0 0.0
      %1661 = vmatpush1.msra.mxu0 %v1639
      %1662 = vmatprep.subr.mxu0 0.0
      %1663 = vmatpush1.msra.mxu0 %v1640
      %1664 = vmatprep.subr.mxu0 0.0
      %1665 = vmatpush1.msra.mxu0 %v1641
      %1666 = vmatprep.subr.mxu0 0.0
      %1667 = vmatpush1.msra.mxu0 %v1642
      %1668 = vmatprep.subr.mxu0 0.0
      %1669 = vmatpush1.msra.mxu0 %v1643
      %1670 = vmatprep.subr.mxu0 0.0
      %1671 = vmatpush1.msra.mxu0 %v1644
      %1672 = vmatprep.subr.mxu0 0.0
      %1673 = vmatpush1.msra.mxu0 %v1645
      %1674 = vmatprep.subr.mxu0 0.0
      %1675 = vmatpush1.msra.mxu0 %v1646
      %1676 = vmatprep.subr.mxu0 0.0
      %1677 = vmatpush1.msra.mxu0 %v1647
      %1678 = vmatprep.subr.mxu0 0.0
      %1679 = vmatpush1.msra.mxu0 %v1648
      %1680 = vmatprep.subr.mxu0 0.0
      %1681 = vmatpush1.msra.mxu0 %v1649
      %1682 = vmatprep.subr.mxu0 0.0
      %1683 = vmatpush1.msra.mxu0 0.0
      %1684 = vmatprep.subr.mxu0 0.0
      %1685 = vmatpush1.msra.mxu0 0.0
      %1686 = vmatprep.subr.mxu0 0.0
      %1687 = vmatpush1.msra.mxu0 0.0
      %1688 = vmatprep.subr.mxu0 0.0
      %1689 = vmatpush1.msra.mxu0 0.0
      %1690 = vmatprep.subr.mxu0 0.0
      %1691 = vmatpush1.msra.mxu0 0.0
      %1692 = vmatprep.subr.mxu0 0.0
      %1693 = vmatpush1.msra.mxu0 0.0
      %1694 = vmatprep.subr.mxu0 0.0
      %1695 = vmatpush1.msra.mxu0 0.0
      %1696 = vmatprep.subr.mxu0 0.0
      %1697 = vmatpush1.msra.mxu0 0.0
      %1698 = vmatprep.subr.mxu0 0.0
      %1699 = vmatpush1.msra.mxu0 0.0
      %1700 = vmatprep.subr.mxu0 0.0
      %1701 = vmatpush1.msra.mxu0 0.0
      %1702 = vmatprep.subr.mxu0 0.0
      %1703 = vmatpush1.msra.mxu0 0.0
      %1704 = vmatprep.subr.mxu0 0.0
      %1705 = vmatpush1.msra.mxu0 0.0
      %1706 = vmatprep.subr.mxu0 0.0
      %1707 = vmatpush1.msra.mxu0 0.0
      %1708 = vmatprep.subr.mxu0 0.0
      %1709 = vmatpush1.msra.mxu0 0.0
      %1710 = vmatprep.subr.mxu0 0.0
      %1711 = vmatpush1.msra.mxu0 0.0
      %1712 = vmatprep.subr.mxu0 0.0
      %1713 = vmatpush1.msra.mxu0 0.0
      %1714 = vmatprep.mubr.f32.mxu0 0.0
      %1715 = vmatmul.mubr.f32.gmra.mrb[0].mxu0 %v930
      %v1716 = vpop.f32.mrb[0].mxu0
      %v1717 = vadd.f32 0.0, %v1716
      %v1718 = vpop.f32.mrb[0].mxu0
      %1719 = vmatprep.mubr.f32.mxu0 0.0
      %1720 = vmatmul.mubr.f32.gmra.mrb[0].mxu0 %v935
      %v1721 = vpop.f32.mrb[0].mxu0
      %v1722 = vadd.f32 0.0, %v1721
      %v1723 = vpop.f32.mrb[0].mxu0
      %1724 = vdwg.mxu0
      %1725 = vset.pattern.permute.xlu0 1
      %1726 = vperm.xlu0 %1725, %v828
      %v1727 = vpop.permute.xlu0 %1726
      %1729 = vset.pattern.permute.xlu0 1
      %1730 = vperm.xlu0 %1729, %v829
      %v1731 = vpop.permute.xlu0 %1730
      %v1733 = vmul.f32 %v1727, %v1717
      %v1734 = vmul.f32 %v1731, %v1722
      %v1735 = vadd.f32 %v1558, %v1733
      %v1736 = vadd.f32 %v1559, %v1734
      %v1737 = vld [vmem:[%s450] sm:$0xff]
      %v1738 = vld [vmem:[%s450 + $0x8] sm:$0xff]
      %v1739 = vadd.f32 %v1737, %v1735
      %v1740 = vadd.f32 %v1738, %v1736
      %1741 = vst [vmem:[%s450] sm:$0xff] %v1739
      %1742 = vst [vmem:[%s450 + $0x8] sm:$0xff] %v1740
      %v1743 = vlaneseq
      %v1744 = vshrl.u32 %v1743, 7
      %v1745 = vsub.s32 2, %v1744
      %v1746 = vrot.slane %v1284, %v1745
      %1747 = vset.pattern.permute.xlu0 2
      %1748 = vperm.xlu0 %1747, %v1365
      %v1749 = vpop.permute.xlu0 %1748
      %1751 = vset.pattern.permute.xlu0 2
      %1752 = vperm.xlu0 %1751, %v1370
      %v1753 = vpop.permute.xlu0 %1752
      %v1755 = vsub.f32 %v1746, %v1749
      %v1756 = vsub.f32 %v1746, %v1753
      %v1757 = vtanh.pop %v1755
      %v1758 = vtanh.pop %v1756
      %1761 = vrot.lane.b32.xlu0 %v1757, 16
      %v1762 = vpop.permute.xlu0 %1761
      %1763 = vrot.lane.b32.xlu0 %v1758, 16
      %v1764 = vpop.permute.xlu0 %1763
      %1767 = vrot.lane.b32.xlu0 %v1757, 32
      %v1768 = vpop.permute.xlu0 %1767
      %1769 = vrot.lane.b32.xlu0 %v1758, 32
      %v1770 = vpop.permute.xlu0 %1769
      %1773 = vrot.lane.b32.xlu0 %v1757, 48
      %v1774 = vpop.permute.xlu0 %1773
      %1775 = vrot.lane.b32.xlu0 %v1758, 48
      %v1776 = vpop.permute.xlu0 %1775
      %1779 = vrot.lane.b32.xlu0 %v1757, 64
      %v1780 = vpop.permute.xlu0 %1779
      %1781 = vrot.lane.b32.xlu0 %v1758, 64
      %v1782 = vpop.permute.xlu0 %1781
      %1785 = vrot.lane.b32.xlu0 %v1757, 80
      %v1786 = vpop.permute.xlu0 %1785
      %1787 = vrot.lane.b32.xlu0 %v1758, 80
      %v1788 = vpop.permute.xlu0 %1787
      %1791 = vrot.lane.b32.xlu0 %v1757, 96
      %v1792 = vpop.permute.xlu0 %1791
      %1793 = vrot.lane.b32.xlu0 %v1758, 96
      %v1794 = vpop.permute.xlu0 %1793
      %1797 = vrot.lane.b32.xlu0 %v1757, 112
      %v1798 = vpop.permute.xlu0 %1797
      %1799 = vrot.lane.b32.xlu0 %v1758, 112
      %v1800 = vpop.permute.xlu0 %1799
      %v1803 = vsel %vm1435, %v1757, %v1762
      %v1804 = vsel %vm1435, %v1758, %v1764
      %v1805 = vsel %vm850, %v1803, %v1768
      %v1806 = vsel %vm850, %v1804, %v1770
      %v1807 = vsel %vm1440, %v1805, %v1774
      %v1808 = vsel %vm1440, %v1806, %v1776
      %v1809 = vsel %vm1443, %v1807, %v1780
      %v1810 = vsel %vm1443, %v1808, %v1782
      %v1811 = vsel %vm1446, %v1809, %v1786
      %v1812 = vsel %vm1446, %v1810, %v1788
      %v1813 = vsel %vm1449, %v1811, %v1792
      %v1814 = vsel %vm1449, %v1812, %v1794
      %v1815 = vsel %vm1452, %v1813, %v1798
      %v1816 = vsel %vm1452, %v1814, %v1800
      %v1817 = vmul.f32 %v796, %v1815
      %v1818 = vmul.f32 %v797, %v1816
      %v1819 = vmul.f32 %v798, %v1815
      %v1820 = vmul.f32 %v799, %v1816
      %v1821 = vmul.f32 %v800, %v1815
      %v1822 = vmul.f32 %v801, %v1816
      %v1823 = vmul.f32 %v802, %v1815
      %v1824 = vmul.f32 %v803, %v1816
      %v1825 = vmul.f32 %v804, %v1815
      %v1826 = vmul.f32 %v805, %v1816
      %v1827 = vmul.f32 %v806, %v1815
      %v1828 = vmul.f32 %v807, %v1816
      %v1829 = vmul.f32 %v808, %v1815
      %v1830 = vmul.f32 %v809, %v1816
      %v1831 = vmul.f32 %v810, %v1815
      %v1832 = vmul.f32 %v811, %v1816
      %1833 = vmatprep.subr.mxu0 0.0
      %1834 = vmatpush1.msra.mxu0 %v1817
      %1835 = vmatprep.subr.mxu0 0.0
      %1836 = vmatpush1.msra.mxu0 %v1818
      %1837 = vmatprep.subr.mxu0 0.0
      %1838 = vmatpush1.msra.mxu0 %v1819
      %1839 = vmatprep.subr.mxu0 0.0
      %1840 = vmatpush1.msra.mxu0 %v1820
      %1841 = vmatprep.subr.mxu0 0.0
      %1842 = vmatpush1.msra.mxu0 %v1821
      %1843 = vmatprep.subr.mxu0 0.0
      %1844 = vmatpush1.msra.mxu0 %v1822
      %1845 = vmatprep.subr.mxu0 0.0
      %1846 = vmatpush1.msra.mxu0 %v1823
      %1847 = vmatprep.subr.mxu0 0.0
      %1848 = vmatpush1.msra.mxu0 %v1824
      %1849 = vmatprep.subr.mxu0 0.0
      %1850 = vmatpush1.msra.mxu0 %v1825
      %1851 = vmatprep.subr.mxu0 0.0
      %1852 = vmatpush1.msra.mxu0 %v1826
      %1853 = vmatprep.subr.mxu0 0.0
      %1854 = vmatpush1.msra.mxu0 %v1827
      %1855 = vmatprep.subr.mxu0 0.0
      %1856 = vmatpush1.msra.mxu0 %v1828
      %1857 = vmatprep.subr.mxu0 0.0
      %1858 = vmatpush1.msra.mxu0 %v1829
      %1859 = vmatprep.subr.mxu0 0.0
      %1860 = vmatpush1.msra.mxu0 %v1830
      %1861 = vmatprep.subr.mxu0 0.0
      %1862 = vmatpush1.msra.mxu0 %v1831
      %1863 = vmatprep.subr.mxu0 0.0
      %1864 = vmatpush1.msra.mxu0 %v1832
      %1865 = vmatprep.subr.mxu0 0.0
      %1866 = vmatpush1.msra.mxu0 0.0
      %1867 = vmatprep.subr.mxu0 0.0
      %1868 = vmatpush1.msra.mxu0 0.0
      %1869 = vmatprep.subr.mxu0 0.0
      %1870 = vmatpush1.msra.mxu0 0.0
      %1871 = vmatprep.subr.mxu0 0.0
      %1872 = vmatpush1.msra.mxu0 0.0
      %1873 = vmatprep.subr.mxu0 0.0
      %1874 = vmatpush1.msra.mxu0 0.0
      %1875 = vmatprep.subr.mxu0 0.0
      %1876 = vmatpush1.msra.mxu0 0.0
      %1877 = vmatprep.subr.mxu0 0.0
      %1878 = vmatpush1.msra.mxu0 0.0
      %1879 = vmatprep.subr.mxu0 0.0
      %1880 = vmatpush1.msra.mxu0 0.0
      %1881 = vmatprep.subr.mxu0 0.0
      %1882 = vmatpush1.msra.mxu0 0.0
      %1883 = vmatprep.subr.mxu0 0.0
      %1884 = vmatpush1.msra.mxu0 0.0
      %1885 = vmatprep.subr.mxu0 0.0
      %1886 = vmatpush1.msra.mxu0 0.0
      %1887 = vmatprep.subr.mxu0 0.0
      %1888 = vmatpush1.msra.mxu0 0.0
      %1889 = vmatprep.subr.mxu0 0.0
      %1890 = vmatpush1.msra.mxu0 0.0
      %1891 = vmatprep.subr.mxu0 0.0
      %1892 = vmatpush1.msra.mxu0 0.0
      %1893 = vmatprep.subr.mxu0 0.0
      %1894 = vmatpush1.msra.mxu0 0.0
      %1895 = vmatprep.subr.mxu0 0.0
      %1896 = vmatpush1.msra.mxu0 0.0
      %1897 = vmatprep.mubr.f32.mxu0 0.0
      %1898 = vmatmul.mubr.f32.gmra.mrb[0].mxu0 %v940
      %v1899 = vpop.f32.mrb[0].mxu0
      %v1900 = vadd.f32 0.0, %v1899
      %v1901 = vpop.f32.mrb[0].mxu0
      %1902 = vmatprep.mubr.f32.mxu0 0.0
      %1903 = vmatmul.mubr.f32.gmra.mrb[0].mxu0 %v945
      %v1904 = vpop.f32.mrb[0].mxu0
      %v1905 = vadd.f32 0.0, %v1904
      %v1906 = vpop.f32.mrb[0].mxu0
      %1907 = vdwg.mxu0
      %v1908 = vmul.f32 %v1549, %v1900
      %v1909 = vmul.f32 %v1554, %v1905
      %v1910 = vadd.f32 %v1908, 0.0
      %v1911 = vadd.f32 %v1909, 0.0
      %v1912 = vlaneseq
      %v1913 = vshrl.u32 %v1912, 7
      %v1914 = vsub.s32 3, %v1913
      %v1915 = vrot.slane %v1284, %v1914
      %1916 = vset.pattern.permute.xlu0 3
      %1917 = vperm.xlu0 %1916, %v1365
      %v1918 = vpop.permute.xlu0 %1917
      %1920 = vset.pattern.permute.xlu0 3
      %1921 = vperm.xlu0 %1920, %v1370
      %v1922 = vpop.permute.xlu0 %1921
      %v1924 = vsub.f32 %v1915, %v1918
      %v1925 = vsub.f32 %v1915, %v1922
      %v1926 = vtanh.pop %v1924
      %v1927 = vtanh.pop %v1925
      %1930 = vrot.lane.b32.xlu0 %v1926, 16
      %v1931 = vpop.permute.xlu0 %1930
      %1932 = vrot.lane.b32.xlu0 %v1927, 16
      %v1933 = vpop.permute.xlu0 %1932
      %1936 = vrot.lane.b32.xlu0 %v1926, 32
      %v1937 = vpop.permute.xlu0 %1936
      %1938 = vrot.lane.b32.xlu0 %v1927, 32
      %v1939 = vpop.permute.xlu0 %1938
      %1942 = vrot.lane.b32.xlu0 %v1926, 48
      %v1943 = vpop.permute.xlu0 %1942
      %1944 = vrot.lane.b32.xlu0 %v1927, 48
      %v1945 = vpop.permute.xlu0 %1944
      %1948 = vrot.lane.b32.xlu0 %v1926, 64
      %v1949 = vpop.permute.xlu0 %1948
      %1950 = vrot.lane.b32.xlu0 %v1927, 64
      %v1951 = vpop.permute.xlu0 %1950
      %1954 = vrot.lane.b32.xlu0 %v1926, 80
      %v1955 = vpop.permute.xlu0 %1954
      %1956 = vrot.lane.b32.xlu0 %v1927, 80
      %v1957 = vpop.permute.xlu0 %1956
      %1960 = vrot.lane.b32.xlu0 %v1926, 96
      %v1961 = vpop.permute.xlu0 %1960
      %1962 = vrot.lane.b32.xlu0 %v1927, 96
      %v1963 = vpop.permute.xlu0 %1962
      %1966 = vrot.lane.b32.xlu0 %v1926, 112
      %v1967 = vpop.permute.xlu0 %1966
      %1968 = vrot.lane.b32.xlu0 %v1927, 112
      %v1969 = vpop.permute.xlu0 %1968
      %v1972 = vsel %vm1435, %v1926, %v1931
      %v1973 = vsel %vm1435, %v1927, %v1933
      %v1974 = vsel %vm850, %v1972, %v1937
      %v1975 = vsel %vm850, %v1973, %v1939
      %v1976 = vsel %vm1440, %v1974, %v1943
      %v1977 = vsel %vm1440, %v1975, %v1945
      %v1978 = vsel %vm1443, %v1976, %v1949
      %v1979 = vsel %vm1443, %v1977, %v1951
      %v1980 = vsel %vm1446, %v1978, %v1955
      %v1981 = vsel %vm1446, %v1979, %v1957
      %v1982 = vsel %vm1449, %v1980, %v1961
      %v1983 = vsel %vm1449, %v1981, %v1963
      %v1984 = vsel %vm1452, %v1982, %v1967
      %v1985 = vsel %vm1452, %v1983, %v1969
      %v1986 = vmul.f32 %v796, %v1984
      %v1987 = vmul.f32 %v797, %v1985
      %v1988 = vmul.f32 %v798, %v1984
      %v1989 = vmul.f32 %v799, %v1985
      %v1990 = vmul.f32 %v800, %v1984
      %v1991 = vmul.f32 %v801, %v1985
      %v1992 = vmul.f32 %v802, %v1984
      %v1993 = vmul.f32 %v803, %v1985
      %v1994 = vmul.f32 %v804, %v1984
      %v1995 = vmul.f32 %v805, %v1985
      %v1996 = vmul.f32 %v806, %v1984
      %v1997 = vmul.f32 %v807, %v1985
      %v1998 = vmul.f32 %v808, %v1984
      %v1999 = vmul.f32 %v809, %v1985
      %v2000 = vmul.f32 %v810, %v1984
      %v2001 = vmul.f32 %v811, %v1985
      %2002 = vmatprep.subr.mxu0 0.0
      %2003 = vmatpush1.msra.mxu0 %v1986
      %2004 = vmatprep.subr.mxu0 0.0
      %2005 = vmatpush1.msra.mxu0 %v1987
      %2006 = vmatprep.subr.mxu0 0.0
      %2007 = vmatpush1.msra.mxu0 %v1988
      %2008 = vmatprep.subr.mxu0 0.0
      %2009 = vmatpush1.msra.mxu0 %v1989
      %2010 = vmatprep.subr.mxu0 0.0
      %2011 = vmatpush1.msra.mxu0 %v1990
      %2012 = vmatprep.subr.mxu0 0.0
      %2013 = vmatpush1.msra.mxu0 %v1991
      %2014 = vmatprep.subr.mxu0 0.0
      %2015 = vmatpush1.msra.mxu0 %v1992
      %2016 = vmatprep.subr.mxu0 0.0
      %2017 = vmatpush1.msra.mxu0 %v1993
      %2018 = vmatprep.subr.mxu0 0.0
      %2019 = vmatpush1.msra.mxu0 %v1994
      %2020 = vmatprep.subr.mxu0 0.0
      %2021 = vmatpush1.msra.mxu0 %v1995
      %2022 = vmatprep.subr.mxu0 0.0
      %2023 = vmatpush1.msra.mxu0 %v1996
      %2024 = vmatprep.subr.mxu0 0.0
      %2025 = vmatpush1.msra.mxu0 %v1997
      %2026 = vmatprep.subr.mxu0 0.0
      %2027 = vmatpush1.msra.mxu0 %v1998
      %2028 = vmatprep.subr.mxu0 0.0
      %2029 = vmatpush1.msra.mxu0 %v1999
      %2030 = vmatprep.subr.mxu0 0.0
      %2031 = vmatpush1.msra.mxu0 %v2000
      %2032 = vmatprep.subr.mxu0 0.0
      %2033 = vmatpush1.msra.mxu0 %v2001
      %2034 = vmatprep.subr.mxu0 0.0
      %2035 = vmatpush1.msra.mxu0 0.0
      %2036 = vmatprep.subr.mxu0 0.0
      %2037 = vmatpush1.msra.mxu0 0.0
      %2038 = vmatprep.subr.mxu0 0.0
      %2039 = vmatpush1.msra.mxu0 0.0
      %2040 = vmatprep.subr.mxu0 0.0
      %2041 = vmatpush1.msra.mxu0 0.0
      %2042 = vmatprep.subr.mxu0 0.0
      %2043 = vmatpush1.msra.mxu0 0.0
      %2044 = vmatprep.subr.mxu0 0.0
      %2045 = vmatpush1.msra.mxu0 0.0
      %2046 = vmatprep.subr.mxu0 0.0
      %2047 = vmatpush1.msra.mxu0 0.0
      %2048 = vmatprep.subr.mxu0 0.0
      %2049 = vmatpush1.msra.mxu0 0.0
      %2050 = vmatprep.subr.mxu0 0.0
      %2051 = vmatpush1.msra.mxu0 0.0
      %2052 = vmatprep.subr.mxu0 0.0
      %2053 = vmatpush1.msra.mxu0 0.0
      %2054 = vmatprep.subr.mxu0 0.0
      %2055 = vmatpush1.msra.mxu0 0.0
      %2056 = vmatprep.subr.mxu0 0.0
      %2057 = vmatpush1.msra.mxu0 0.0
      %2058 = vmatprep.subr.mxu0 0.0
      %2059 = vmatpush1.msra.mxu0 0.0
      %2060 = vmatprep.subr.mxu0 0.0
      %2061 = vmatpush1.msra.mxu0 0.0
      %2062 = vmatprep.subr.mxu0 0.0
      %2063 = vmatpush1.msra.mxu0 0.0
      %2064 = vmatprep.subr.mxu0 0.0
      %2065 = vmatpush1.msra.mxu0 0.0
      %2066 = vmatprep.mubr.f32.mxu0 0.0
      %2067 = vmatmul.mubr.f32.gmra.mrb[0].mxu0 %v940
      %v2068 = vpop.f32.mrb[0].mxu0
      %v2069 = vadd.f32 0.0, %v2068
      %v2070 = vpop.f32.mrb[0].mxu0
      %2071 = vmatprep.mubr.f32.mxu0 0.0
      %2072 = vmatmul.mubr.f32.gmra.mrb[0].mxu0 %v945
      %v2073 = vpop.f32.mrb[0].mxu0
      %v2074 = vadd.f32 0.0, %v2073
      %v2075 = vpop.f32.mrb[0].mxu0
      %2076 = vdwg.mxu0
      %v2077 = vmul.f32 %v1727, %v2069
      %v2078 = vmul.f32 %v1731, %v2074
      %v2079 = vadd.f32 %v1910, %v2077
      %v2080 = vadd.f32 %v1911, %v2078
      %v2081 = vld [vmem:[%s450 + $0x10] sm:$0xff]
      %v2082 = vld [vmem:[%s450 + $0x18] sm:$0xff]
      %v2083 = vadd.f32 %v2081, %v2079
      %v2084 = vadd.f32 %v2082, %v2080
      %2085 = vst [vmem:[%s450 + $0x10] sm:$0xff] %v2083
      %2086 = vst [vmem:[%s450 + $0x18] sm:$0xff] %v2084
      %s2087 = scalar_lea.vmem %s5, 32
      %v2088 = vld [vmem:[%s2087] sm:$0xff]
      %v2089 = vld [vmem:[%s2087 + $0x8] sm:$0xff]
      %v2090 = vld [vmem:[%s2087 + $0x10] sm:$0xff]
      %v2091 = vld [vmem:[%s2087 + $0x18] sm:$0xff]
      %s2092 = scalar_lea.vmem %s6, 32
      %v2093 = vld [vmem:[%s2092] sm:$0xff]
      %v2094 = vld [vmem:[%s2092 + $0x8] sm:$0xff]
      %v2095 = vld [vmem:[%s2092 + $0x10] sm:$0xff]
      %v2096 = vld [vmem:[%s2092 + $0x18] sm:$0xff]
      %s2097 = scalar_lea.vmem %s8, 32
      %v2098 = vld [vmem:[%s2097] sm:$0xff]
      %v2099 = vld [vmem:[%s2097 + $0x8] sm:$0xff]
      %v2100 = vld [vmem:[%s2097 + $0x10] sm:$0xff]
      %v2101 = vld [vmem:[%s2097 + $0x18] sm:$0xff]
      %s2102 = scalar_lea.vmem %s7, 16
      %v2103 = vld [vmem:[%s2102] sm:$0xff]
      %v2104 = vld [vmem:[%s2102 + $0x8] sm:$0xff]
      %2106 = vset.pattern.permute.xlu0 0
      %2107 = vperm.xlu0 %2106, %v2093
      %v2108 = vpop.permute.xlu0 %2107
      %2111 = vset.pattern.permute.xlu0 0
      %2112 = vperm.xlu0 %2111, %v2094
      %v2113 = vpop.permute.xlu0 %2112
      %2116 = vset.pattern.permute.xlu0 0
      %2117 = vperm.xlu0 %2116, %v2095
      %v2118 = vpop.permute.xlu0 %2117
      %2121 = vset.pattern.permute.xlu0 0
      %2122 = vperm.xlu0 %2121, %v2096
      %v2123 = vpop.permute.xlu0 %2122
      %v2126 = vsel %vm850, %v2088, 0
      %v2129 = vsel %vm850, %v2089, 0
      %v2132 = vsel %vm850, %v2090, 0
      %v2135 = vsel %vm850, %v2091, 0
      %2137 = vmatprep.subr.mxu0 0.0
      %2138 = vmatpush1.msra.mxu0 %v457
      %2139 = vmatprep.subr.mxu0 0.0
      %2140 = vmatpush1.msra.mxu0 %v458
      %2141 = vmatprep.subr.mxu0 0.0
      %2142 = vmatpush1.msra.mxu0 %v459
      %2143 = vmatprep.subr.mxu0 0.0
      %2144 = vmatpush1.msra.mxu0 %v460
      %2145 = vmatprep.subr.mxu0 0.0
      %2146 = vmatpush1.msra.mxu0 0.0
      %2147 = vmatprep.subr.mxu0 0.0
      %2148 = vmatpush1.msra.mxu0 0.0
      %2149 = vmatprep.subr.mxu0 0.0
      %2150 = vmatpush1.msra.mxu0 0.0
      %2151 = vmatprep.subr.mxu0 0.0
      %2152 = vmatpush1.msra.mxu0 0.0
      %2153 = vmatprep.subr.mxu0 0.0
      %2154 = vmatpush1.msra.mxu0 0.0
      %2155 = vmatprep.subr.mxu0 0.0
      %2156 = vmatpush1.msra.mxu0 0.0
      %2157 = vmatprep.subr.mxu0 0.0
      %2158 = vmatpush1.msra.mxu0 0.0
      %2159 = vmatprep.subr.mxu0 0.0
      %2160 = vmatpush1.msra.mxu0 0.0
      %2161 = vmatprep.subr.mxu0 0.0
      %2162 = vmatpush1.msra.mxu0 0.0
      %2163 = vmatprep.subr.mxu0 0.0
      %2164 = vmatpush1.msra.mxu0 0.0
      %2165 = vmatprep.subr.mxu0 0.0
      %2166 = vmatpush1.msra.mxu0 0.0
      %2167 = vmatprep.subr.mxu0 0.0
      %2168 = vmatpush1.msra.mxu0 0.0
      %2169 = vmatprep.subr.mxu0 0.0
      %2170 = vmatpush1.msra.mxu0 0.0
      %2171 = vmatprep.subr.mxu0 0.0
      %2172 = vmatpush1.msra.mxu0 0.0
      %2173 = vmatprep.subr.mxu0 0.0
      %2174 = vmatpush1.msra.mxu0 0.0
      %2175 = vmatprep.subr.mxu0 0.0
      %2176 = vmatpush1.msra.mxu0 0.0
      %2177 = vmatprep.subr.mxu0 0.0
      %2178 = vmatpush1.msra.mxu0 0.0
      %2179 = vmatprep.subr.mxu0 0.0
      %2180 = vmatpush1.msra.mxu0 0.0
      %2181 = vmatprep.subr.mxu0 0.0
      %2182 = vmatpush1.msra.mxu0 0.0
      %2183 = vmatprep.subr.mxu0 0.0
      %2184 = vmatpush1.msra.mxu0 0.0
      %2185 = vmatprep.subr.mxu0 0.0
      %2186 = vmatpush1.msra.mxu0 0.0
      %2187 = vmatprep.subr.mxu0 0.0
      %2188 = vmatpush1.msra.mxu0 0.0
      %2189 = vmatprep.subr.mxu0 0.0
      %2190 = vmatpush1.msra.mxu0 0.0
      %2191 = vmatprep.subr.mxu0 0.0
      %2192 = vmatpush1.msra.mxu0 0.0
      %2193 = vmatprep.subr.mxu0 0.0
      %2194 = vmatpush1.msra.mxu0 0.0
      %2195 = vmatprep.subr.mxu0 0.0
      %2196 = vmatpush1.msra.mxu0 0.0
      %2197 = vmatprep.subr.mxu0 0.0
      %2198 = vmatpush1.msra.mxu0 0.0
      %2199 = vmatprep.subr.mxu0 0.0
      %2200 = vmatpush1.msra.mxu0 0.0
      %2201 = vmatprep.mubr.f32.mxu0 0.0
      %2202 = vmatmul.mubr.f32.gmra.mrb[0].mxu0 %v2126
      %v2203 = vpop.f32.mrb[0].mxu0
      %v2204 = vadd.f32 %v2108, %v2203
      %v2205 = vpop.f32.mrb[0].mxu0
      %2206 = vmatprep.mubr.f32.mxu0 0.0
      %2207 = vmatmul.mubr.f32.gmra.mrb[0].mxu0 %v2129
      %v2208 = vpop.f32.mrb[0].mxu0
      %v2209 = vadd.f32 %v2113, %v2208
      %v2210 = vpop.f32.mrb[0].mxu0
      %2211 = vmatprep.mubr.f32.mxu0 0.0
      %2212 = vmatmul.mubr.f32.gmra.mrb[0].mxu0 %v2132
      %v2213 = vpop.f32.mrb[0].mxu0
      %v2214 = vadd.f32 %v2118, %v2213
      %v2215 = vpop.f32.mrb[0].mxu0
      %2216 = vmatprep.mubr.f32.mxu0 0.0
      %2217 = vmatmul.mubr.f32.gmra.mrb[0].mxu0 %v2135
      %v2218 = vpop.f32.mrb[0].mxu0
      %v2219 = vadd.f32 %v2123, %v2218
      %v2220 = vpop.f32.mrb[0].mxu0
      %2221 = vdwg.mxu0
      %v2222 = vld [vmem:[#allocation2 + $0x8] sm:$0xff]
      %v2223 = vld [vmem:[#allocation2 + $0x28] sm:$0xff]
      %v2224 = vld [vmem:[#allocation2 + $0x48] sm:$0xff]
      %v2225 = vld [vmem:[#allocation2 + $0x68] sm:$0xff]
      %s2226 = scalar_lea.vmem %s10, 1
      %v2227 = vld [vmem:[%s2226] sm:$0x1]
      %v2229 = vlaneseq
      %v2230 = vshrl.u32 %v2229, 7
      %v2231 = vsub.s32 0, %v2230
      %v2232 = vrot.slane %v2227, %v2231
      %v2234 = vmul.f32 %v2108, %v2232
      %v2235 = vmul.f32 %v2113, %v2232
      %v2236 = vmul.f32 %v2118, %v2232
      %v2237 = vmul.f32 %v2123, %v2232
      %2238 = vmatprep.subr.mxu0 0.0
      %2239 = vmatpush1.msra.mxu0 %v2222
      %2240 = vmatprep.subr.mxu0 0.0
      %2241 = vmatpush1.msra.mxu0 %v2223
      %2242 = vmatprep.subr.mxu0 0.0
      %2243 = vmatpush1.msra.mxu0 %v2224
      %2244 = vmatprep.subr.mxu0 0.0
      %2245 = vmatpush1.msra.mxu0 %v2225
      %2246 = vmatprep.subr.mxu0 0.0
      %2247 = vmatpush1.msra.mxu0 0.0
      %2248 = vmatprep.subr.mxu0 0.0
      %2249 = vmatpush1.msra.mxu0 0.0
      %2250 = vmatprep.subr.mxu0 0.0
      %2251 = vmatpush1.msra.mxu0 0.0
      %2252 = vmatprep.subr.mxu0 0.0
      %2253 = vmatpush1.msra.mxu0 0.0
      %2254 = vmatprep.subr.mxu0 0.0
      %2255 = vmatpush1.msra.mxu0 0.0
      %2256 = vmatprep.subr.mxu0 0.0
      %2257 = vmatpush1.msra.mxu0 0.0
      %2258 = vmatprep.subr.mxu0 0.0
      %2259 = vmatpush1.msra.mxu0 0.0
      %2260 = vmatprep.subr.mxu0 0.0
      %2261 = vmatpush1.msra.mxu0 0.0
      %2262 = vmatprep.subr.mxu0 0.0
      %2263 = vmatpush1.msra.mxu0 0.0
      %2264 = vmatprep.subr.mxu0 0.0
      %2265 = vmatpush1.msra.mxu0 0.0
      %2266 = vmatprep.subr.mxu0 0.0
      %2267 = vmatpush1.msra.mxu0 0.0
      %2268 = vmatprep.subr.mxu0 0.0
      %2269 = vmatpush1.msra.mxu0 0.0
      %2270 = vmatprep.subr.mxu0 0.0
      %2271 = vmatpush1.msra.mxu0 0.0
      %2272 = vmatprep.subr.mxu0 0.0
      %2273 = vmatpush1.msra.mxu0 0.0
      %2274 = vmatprep.subr.mxu0 0.0
      %2275 = vmatpush1.msra.mxu0 0.0
      %2276 = vmatprep.subr.mxu0 0.0
      %2277 = vmatpush1.msra.mxu0 0.0
      %2278 = vmatprep.subr.mxu0 0.0
      %2279 = vmatpush1.msra.mxu0 0.0
      %2280 = vmatprep.subr.mxu0 0.0
      %2281 = vmatpush1.msra.mxu0 0.0
      %2282 = vmatprep.subr.mxu0 0.0
      %2283 = vmatpush1.msra.mxu0 0.0
      %2284 = vmatprep.subr.mxu0 0.0
      %2285 = vmatpush1.msra.mxu0 0.0
      %2286 = vmatprep.subr.mxu0 0.0
      %2287 = vmatpush1.msra.mxu0 0.0
      %2288 = vmatprep.subr.mxu0 0.0
      %2289 = vmatpush1.msra.mxu0 0.0
      %2290 = vmatprep.subr.mxu0 0.0
      %2291 = vmatpush1.msra.mxu0 0.0
      %2292 = vmatprep.subr.mxu0 0.0
      %2293 = vmatpush1.msra.mxu0 0.0
      %2294 = vmatprep.subr.mxu0 0.0
      %2295 = vmatpush1.msra.mxu0 0.0
      %2296 = vmatprep.subr.mxu0 0.0
      %2297 = vmatpush1.msra.mxu0 0.0
      %2298 = vmatprep.subr.mxu0 0.0
      %2299 = vmatpush1.msra.mxu0 0.0
      %2300 = vmatprep.subr.mxu0 0.0
      %2301 = vmatpush1.msra.mxu0 0.0
      %2302 = vmatprep.mubr.f32.mxu0 0.0
      %2303 = vmatmul.mubr.f32.gmra.mrb[0].mxu0 %v2126
      %v2304 = vpop.f32.mrb[0].mxu0
      %v2305 = vadd.f32 %v2234, %v2304
      %v2306 = vpop.f32.mrb[0].mxu0
      %2307 = vmatprep.mubr.f32.mxu0 0.0
      %2308 = vmatmul.mubr.f32.gmra.mrb[0].mxu0 %v2129
      %v2309 = vpop.f32.mrb[0].mxu0
      %v2310 = vadd.f32 %v2235, %v2309
      %v2311 = vpop.f32.mrb[0].mxu0
      %2312 = vmatprep.mubr.f32.mxu0 0.0
      %2313 = vmatmul.mubr.f32.gmra.mrb[0].mxu0 %v2132
      %v2314 = vpop.f32.mrb[0].mxu0
      %v2315 = vadd.f32 %v2236, %v2314
      %v2316 = vpop.f32.mrb[0].mxu0
      %2317 = vmatprep.mubr.f32.mxu0 0.0
      %2318 = vmatmul.mubr.f32.gmra.mrb[0].mxu0 %v2135
      %v2319 = vpop.f32.mrb[0].mxu0
      %v2320 = vadd.f32 %v2237, %v2319
      %v2321 = vpop.f32.mrb[0].mxu0
      %2322 = vdwg.mxu0
      %v2323 = vld [vmem:[#allocation2 + $0x18] sm:$0xff]
      %v2324 = vld [vmem:[#allocation2 + $0x38] sm:$0xff]
      %v2325 = vld [vmem:[#allocation2 + $0x58] sm:$0xff]
      %v2326 = vld [vmem:[#allocation2 + $0x78] sm:$0xff]
      %v2327 = vmul.f32 %v2093, 16.0
      %v2328 = vmul.f32 %v2094, 16.0
      %v2329 = vmul.f32 %v2095, 16.0
      %v2330 = vmul.f32 %v2096, 16.0
      %2332 = vset.pattern.permute.xlu0 0
      %2333 = vperm.xlu0 %2332, %v2327
      %v2334 = vpop.permute.xlu0 %2333
      %2337 = vset.pattern.permute.xlu0 0
      %2338 = vperm.xlu0 %2337, %v2328
      %v2339 = vpop.permute.xlu0 %2338
      %2342 = vset.pattern.permute.xlu0 0
      %2343 = vperm.xlu0 %2342, %v2329
      %v2344 = vpop.permute.xlu0 %2343
      %2347 = vset.pattern.permute.xlu0 0
      %2348 = vperm.xlu0 %2347, %v2330
      %v2349 = vpop.permute.xlu0 %2348
      %2351 = vmatprep.subr.mxu0 0.0
      %2352 = vmatpush1.msra.mxu0 %v2323
      %2353 = vmatprep.subr.mxu0 0.0
      %2354 = vmatpush1.msra.mxu0 %v2324
      %2355 = vmatprep.subr.mxu0 0.0
      %2356 = vmatpush1.msra.mxu0 %v2325
      %2357 = vmatprep.subr.mxu0 0.0
      %2358 = vmatpush1.msra.mxu0 %v2326
      %2359 = vmatprep.subr.mxu0 0.0
      %2360 = vmatpush1.msra.mxu0 0.0
      %2361 = vmatprep.subr.mxu0 0.0
      %2362 = vmatpush1.msra.mxu0 0.0
      %2363 = vmatprep.subr.mxu0 0.0
      %2364 = vmatpush1.msra.mxu0 0.0
      %2365 = vmatprep.subr.mxu0 0.0
      %2366 = vmatpush1.msra.mxu0 0.0
      %2367 = vmatprep.subr.mxu0 0.0
      %2368 = vmatpush1.msra.mxu0 0.0
      %2369 = vmatprep.subr.mxu0 0.0
      %2370 = vmatpush1.msra.mxu0 0.0
      %2371 = vmatprep.subr.mxu0 0.0
      %2372 = vmatpush1.msra.mxu0 0.0
      %2373 = vmatprep.subr.mxu0 0.0
      %2374 = vmatpush1.msra.mxu0 0.0
      %2375 = vmatprep.subr.mxu0 0.0
      %2376 = vmatpush1.msra.mxu0 0.0
      %2377 = vmatprep.subr.mxu0 0.0
      %2378 = vmatpush1.msra.mxu0 0.0
      %2379 = vmatprep.subr.mxu0 0.0
      %2380 = vmatpush1.msra.mxu0 0.0
      %2381 = vmatprep.subr.mxu0 0.0
      %2382 = vmatpush1.msra.mxu0 0.0
      %2383 = vmatprep.subr.mxu0 0.0
      %2384 = vmatpush1.msra.mxu0 0.0
      %2385 = vmatprep.subr.mxu0 0.0
      %2386 = vmatpush1.msra.mxu0 0.0
      %2387 = vmatprep.subr.mxu0 0.0
      %2388 = vmatpush1.msra.mxu0 0.0
      %2389 = vmatprep.subr.mxu0 0.0
      %2390 = vmatpush1.msra.mxu0 0.0
      %2391 = vmatprep.subr.mxu0 0.0
      %2392 = vmatpush1.msra.mxu0 0.0
      %2393 = vmatprep.subr.mxu0 0.0
      %2394 = vmatpush1.msra.mxu0 0.0
      %2395 = vmatprep.subr.mxu0 0.0
      %2396 = vmatpush1.msra.mxu0 0.0
      %2397 = vmatprep.subr.mxu0 0.0
      %2398 = vmatpush1.msra.mxu0 0.0
      %2399 = vmatprep.subr.mxu0 0.0
      %2400 = vmatpush1.msra.mxu0 0.0
      %2401 = vmatprep.subr.mxu0 0.0
      %2402 = vmatpush1.msra.mxu0 0.0
      %2403 = vmatprep.subr.mxu0 0.0
      %2404 = vmatpush1.msra.mxu0 0.0
      %2405 = vmatprep.subr.mxu0 0.0
      %2406 = vmatpush1.msra.mxu0 0.0
      %2407 = vmatprep.subr.mxu0 0.0
      %2408 = vmatpush1.msra.mxu0 0.0
      %2409 = vmatprep.subr.mxu0 0.0
      %2410 = vmatpush1.msra.mxu0 0.0
      %2411 = vmatprep.subr.mxu0 0.0
      %2412 = vmatpush1.msra.mxu0 0.0
      %2413 = vmatprep.subr.mxu0 0.0
      %2414 = vmatpush1.msra.mxu0 0.0
      %2415 = vmatprep.mubr.f32.mxu0 0.0
      %2416 = vmatmul.mubr.f32.gmra.mrb[0].mxu0 %v2126
      %v2417 = vpop.f32.mrb[0].mxu0
      %v2418 = vadd.f32 %v2334, %v2417
      %v2419 = vpop.f32.mrb[0].mxu0
      %2420 = vmatprep.mubr.f32.mxu0 0.0
      %2421 = vmatmul.mubr.f32.gmra.mrb[0].mxu0 %v2129
      %v2422 = vpop.f32.mrb[0].mxu0
      %v2423 = vadd.f32 %v2339, %v2422
      %v2424 = vpop.f32.mrb[0].mxu0
      %2425 = vmatprep.mubr.f32.mxu0 0.0
      %2426 = vmatmul.mubr.f32.gmra.mrb[0].mxu0 %v2132
      %v2427 = vpop.f32.mrb[0].mxu0
      %v2428 = vadd.f32 %v2344, %v2427
      %v2429 = vpop.f32.mrb[0].mxu0
      %2430 = vmatprep.mubr.f32.mxu0 0.0
      %2431 = vmatmul.mubr.f32.gmra.mrb[0].mxu0 %v2135
      %v2432 = vpop.f32.mrb[0].mxu0
      %v2433 = vadd.f32 %v2349, %v2432
      %v2434 = vpop.f32.mrb[0].mxu0
      %2435 = vdwg.mxu0
      %2437 = vset.pattern.permute.xlu0 0
      %2438 = vperm.xlu0 %2437, %v2098
      %v2439 = vpop.permute.xlu0 %2438
      %2442 = vset.pattern.permute.xlu0 0
      %2443 = vperm.xlu0 %2442, %v2099
      %v2444 = vpop.permute.xlu0 %2443
      %2447 = vset.pattern.permute.xlu0 0
      %2448 = vperm.xlu0 %2447, %v2100
      %v2449 = vpop.permute.xlu0 %2448
      %2452 = vset.pattern.permute.xlu0 0
      %2453 = vperm.xlu0 %2452, %v2101
      %v2454 = vpop.permute.xlu0 %2453
      %v2456 = vmul.f32 %v2439, %v2418
      %v2457 = vmul.f32 %v2444, %v2423
      %v2458 = vmul.f32 %v2449, %v2428
      %v2459 = vmul.f32 %v2454, %v2433
      %v2460 = vld [vmem:[%s450] sm:$0xff]
      %v2461 = vld [vmem:[%s450 + $0x8] sm:$0xff]
      %v2462 = vld [vmem:[%s450 + $0x10] sm:$0xff]
      %v2463 = vld [vmem:[%s450 + $0x18] sm:$0xff]
      %v2464 = vadd.f32 %v2305, %v2456
      %v2465 = vadd.f32 %v2310, %v2457
      %v2466 = vadd.f32 %v2315, %v2458
      %v2467 = vadd.f32 %v2320, %v2459
      %v2468 = vadd.f32 %v2460, %v2464
      %v2469 = vadd.f32 %v2461, %v2465
      %v2470 = vadd.f32 %v2462, %v2466
      %v2471 = vadd.f32 %v2463, %v2467
      %2472 = vst [vmem:[%s450] sm:$0xff] %v2468
      %2473 = vst [vmem:[%s450 + $0x8] sm:$0xff] %v2469
      %2474 = vst [vmem:[%s450 + $0x10] sm:$0xff] %v2470
      %2475 = vst [vmem:[%s450 + $0x18] sm:$0xff] %v2471
      %s2476 = scalar_lea.vmem %s1, 4
      %v2477 = vld [vmem:[%s2476] sm:$0xf]
      %s2478 = scalar_lea.vmem %s2, 4
      %v2479 = vld [vmem:[%s2478] sm:$0xf]
      %2481 = vset.pattern.permute.xlu0 0
      %2482 = vperm.xlu0 %2481, %v2479
      %v2483 = vpop.permute.xlu0 %2482
      %v2486 = vsel %vm850, %v2477, 0
      %2488 = vmatprep.subr.mxu0 0.0
      %2489 = vmatpush1.xpose.msra.mxu0 %v1212
      %2490 = vmatprep.subr.mxu0 0.0
      %2491 = vmatpush1.xpose.msra.mxu0 %v1215
      %2492 = vmatprep.subr.mxu0 0.0
      %2493 = vmatpush1.xpose.msra.mxu0 0.0
      %2494 = vmatprep.subr.mxu0 0.0
      %2495 = vmatpush1.xpose.msra.mxu0 0.0
      %2496 = vmatprep.subr.mxu0 0.0
      %2497 = vmatpush1.xpose.msra.mxu0 0.0
      %2498 = vmatprep.subr.mxu0 0.0
      %2499 = vmatpush1.xpose.msra.mxu0 0.0
      %2500 = vmatprep.subr.mxu0 0.0
      %2501 = vmatpush1.xpose.msra.mxu0 0.0
      %2502 = vmatprep.subr.mxu0 0.0
      %2503 = vmatpush1.xpose.msra.mxu0 0.0
      %2504 = vmatprep.subr.mxu0 0.0
      %2505 = vmatpush1.xpose.msra.mxu0 0.0
      %2506 = vmatprep.subr.mxu0 0.0
      %2507 = vmatpush1.xpose.msra.mxu0 0.0
      %2508 = vmatprep.subr.mxu0 0.0
      %2509 = vmatpush1.xpose.msra.mxu0 0.0
      %2510 = vmatprep.subr.mxu0 0.0
      %2511 = vmatpush1.xpose.msra.mxu0 0.0
      %2512 = vmatprep.subr.mxu0 0.0
      %2513 = vmatpush1.xpose.msra.mxu0 0.0
      %2514 = vmatprep.subr.mxu0 0.0
      %2515 = vmatpush1.xpose.msra.mxu0 0.0
      %2516 = vmatprep.subr.mxu0 0.0
      %2517 = vmatpush1.xpose.msra.mxu0 0.0
      %2518 = vmatprep.subr.mxu0 0.0
      %2519 = vmatpush1.xpose.msra.mxu0 0.0
      %2520 = vmatprep.subr.mxu0 0.0
      %2521 = vmatpush1.xpose.msra.mxu0 0.0
      %2522 = vmatprep.subr.mxu0 0.0
      %2523 = vmatpush1.xpose.msra.mxu0 0.0
      %2524 = vmatprep.subr.mxu0 0.0
      %2525 = vmatpush1.xpose.msra.mxu0 0.0
      %2526 = vmatprep.subr.mxu0 0.0
      %2527 = vmatpush1.xpose.msra.mxu0 0.0
      %2528 = vmatprep.subr.mxu0 0.0
      %2529 = vmatpush1.xpose.msra.mxu0 0.0
      %2530 = vmatprep.subr.mxu0 0.0
      %2531 = vmatpush1.xpose.msra.mxu0 0.0
      %2532 = vmatprep.subr.mxu0 0.0
      %2533 = vmatpush1.xpose.msra.mxu0 0.0
      %2534 = vmatprep.subr.mxu0 0.0
      %2535 = vmatpush1.xpose.msra.mxu0 0.0
      %2536 = vmatprep.subr.mxu0 0.0
      %2537 = vmatpush1.xpose.msra.mxu0 0.0
      %2538 = vmatprep.subr.mxu0 0.0
      %2539 = vmatpush1.xpose.msra.mxu0 0.0
      %2540 = vmatprep.subr.mxu0 0.0
      %2541 = vmatpush1.xpose.msra.mxu0 0.0
      %2542 = vmatprep.subr.mxu0 0.0
      %2543 = vmatpush1.xpose.msra.mxu0 0.0
      %2544 = vmatprep.subr.mxu0 0.0
      %2545 = vmatpush1.xpose.msra.mxu0 0.0
      %2546 = vmatprep.subr.mxu0 0.0
      %2547 = vmatpush1.xpose.msra.mxu0 0.0
      %2548 = vmatprep.subr.mxu0 0.0
      %2549 = vmatpush1.xpose.msra.mxu0 0.0
      %2550 = vmatprep.subr.mxu0 0.0
      %2551 = vmatpush1.xpose.msra.mxu0 0.0
      %2552 = vmatprep.mubr.f32.mxu0 0.0
      %2553 = vmatmul.mubr.f32.gmra.mrb[0].mxu0 %v2486
      %v2554 = vpop.f32.mrb[0].mxu0
      %v2555 = vadd.f32 %v2483, %v2554
      %v2556 = vpop.f32.mrb[0].mxu0
      %2557 = vdwg.mxu0
      %s2558 = scalar_lea.vmem %s3, 4
      %v2559 = vld [vmem:[%s2558] sm:$0xf]
      %s2560 = scalar_lea.vmem %s4, 1
      %v2561 = vld [vmem:[%s2560] sm:$0x1]
      %v2563 = vlaneseq
      %v2564 = vshrl.u32 %v2563, 7
      %v2565 = vsub.s32 0, %v2564
      %v2566 = vrot.slane %v2561, %v2565
      %v2569 = vsel %vm850, %v2559, 0
      %2571 = vmatprep.subr.mxu0 0.0
      %2572 = vmatpush1.xpose.msra.mxu0 %v2569
      %2573 = vmatprep.subr.mxu0 0.0
      %2574 = vmatpush1.xpose.msra.mxu0 0.0
      %2575 = vmatprep.subr.mxu0 0.0
      %2576 = vmatpush1.xpose.msra.mxu0 0.0
      %2577 = vmatprep.subr.mxu0 0.0
      %2578 = vmatpush1.xpose.msra.mxu0 0.0
      %2579 = vmatprep.subr.mxu0 0.0
      %2580 = vmatpush1.xpose.msra.mxu0 0.0
      %2581 = vmatprep.subr.mxu0 0.0
      %2582 = vmatpush1.xpose.msra.mxu0 0.0
      %2583 = vmatprep.subr.mxu0 0.0
      %2584 = vmatpush1.xpose.msra.mxu0 0.0
      %2585 = vmatprep.subr.mxu0 0.0
      %2586 = vmatpush1.xpose.msra.mxu0 0.0
      %2587 = vmatprep.subr.mxu0 0.0
      %2588 = vmatpush1.xpose.msra.mxu0 0.0
      %2589 = vmatprep.subr.mxu0 0.0
      %2590 = vmatpush1.xpose.msra.mxu0 0.0
      %2591 = vmatprep.subr.mxu0 0.0
      %2592 = vmatpush1.xpose.msra.mxu0 0.0
      %2593 = vmatprep.subr.mxu0 0.0
      %2594 = vmatpush1.xpose.msra.mxu0 0.0
      %2595 = vmatprep.subr.mxu0 0.0
      %2596 = vmatpush1.xpose.msra.mxu0 0.0
      %2597 = vmatprep.subr.mxu0 0.0
      %2598 = vmatpush1.xpose.msra.mxu0 0.0
      %2599 = vmatprep.subr.mxu0 0.0
      %2600 = vmatpush1.xpose.msra.mxu0 0.0
      %2601 = vmatprep.subr.mxu0 0.0
      %2602 = vmatpush1.xpose.msra.mxu0 0.0
      %2603 = vmatprep.subr.mxu0 0.0
      %2604 = vmatpush1.xpose.msra.mxu0 0.0
      %2605 = vmatprep.subr.mxu0 0.0
      %2606 = vmatpush1.xpose.msra.mxu0 0.0
      %2607 = vmatprep.subr.mxu0 0.0
      %2608 = vmatpush1.xpose.msra.mxu0 0.0
      %2609 = vmatprep.subr.mxu0 0.0
      %2610 = vmatpush1.xpose.msra.mxu0 0.0
      %2611 = vmatprep.subr.mxu0 0.0
      %2612 = vmatpush1.xpose.msra.mxu0 0.0
      %2613 = vmatprep.subr.mxu0 0.0
      %2614 = vmatpush1.xpose.msra.mxu0 0.0
      %2615 = vmatprep.subr.mxu0 0.0
      %2616 = vmatpush1.xpose.msra.mxu0 0.0
      %2617 = vmatprep.subr.mxu0 0.0
      %2618 = vmatpush1.xpose.msra.mxu0 0.0
      %2619 = vmatprep.subr.mxu0 0.0
      %2620 = vmatpush1.xpose.msra.mxu0 0.0
      %2621 = vmatprep.subr.mxu0 0.0
      %2622 = vmatpush1.xpose.msra.mxu0 0.0
      %2623 = vmatprep.subr.mxu0 0.0
      %2624 = vmatpush1.xpose.msra.mxu0 0.0
      %2625 = vmatprep.subr.mxu0 0.0
      %2626 = vmatpush1.xpose.msra.mxu0 0.0
      %2627 = vmatprep.subr.mxu0 0.0
      %2628 = vmatpush1.xpose.msra.mxu0 0.0
      %2629 = vmatprep.subr.mxu0 0.0
      %2630 = vmatpush1.xpose.msra.mxu0 0.0
      %2631 = vmatprep.subr.mxu0 0.0
      %2632 = vmatpush1.xpose.msra.mxu0 0.0
      %2633 = vmatprep.subr.mxu0 0.0
      %2634 = vmatpush1.xpose.msra.mxu0 0.0
      %2635 = vmatprep.mubr.f32.mxu0 0.0
      %2636 = vmatmul.mubr.f32.gmra.mrb[0].mxu0 %v1212
      %v2637 = vpop.f32.mrb[0].mxu0
      %v2638 = vadd.f32 %v2566, %v2637
      %v2639 = vpop.f32.mrb[0].mxu0
      %2640 = vmatprep.mubr.f32.mxu0 0.0
      %2641 = vmatmul.mubr.f32.gmra.mrb[0].mxu0 %v1215
      %v2642 = vpop.f32.mrb[0].mxu0
      %v2643 = vadd.f32 %v2566, %v2642
      %v2644 = vpop.f32.mrb[0].mxu0
      %2645 = vdwg.mxu0
      %v2646 = vlaneseq
      %v2647 = vshrl.u32 %v2646, 7
      %v2648 = vsub.s32 0, %v2647
      %v2649 = vrot.slane %v2555, %v2648
      %2651 = vset.pattern.permute.xlu0 0
      %2652 = vperm.xlu0 %2651, %v2638
      %v2653 = vpop.permute.xlu0 %2652
      %2656 = vset.pattern.permute.xlu0 0
      %2657 = vperm.xlu0 %2656, %v2643
      %v2658 = vpop.permute.xlu0 %2657
      %v2660 = vsub.f32 %v2649, %v2653
      %v2661 = vsub.f32 %v2649, %v2658
      %v2662 = vtanh.pop %v2660
      %v2663 = vtanh.pop %v2661
      %2666 = vrot.lane.b32.xlu0 %v2662, 16
      %v2667 = vpop.permute.xlu0 %2666
      %2668 = vrot.lane.b32.xlu0 %v2663, 16
      %v2669 = vpop.permute.xlu0 %2668
      %2672 = vrot.lane.b32.xlu0 %v2662, 32
      %v2673 = vpop.permute.xlu0 %2672
      %2674 = vrot.lane.b32.xlu0 %v2663, 32
      %v2675 = vpop.permute.xlu0 %2674
      %2678 = vrot.lane.b32.xlu0 %v2662, 48
      %v2679 = vpop.permute.xlu0 %2678
      %2680 = vrot.lane.b32.xlu0 %v2663, 48
      %v2681 = vpop.permute.xlu0 %2680
      %2684 = vrot.lane.b32.xlu0 %v2662, 64
      %v2685 = vpop.permute.xlu0 %2684
      %2686 = vrot.lane.b32.xlu0 %v2663, 64
      %v2687 = vpop.permute.xlu0 %2686
      %2690 = vrot.lane.b32.xlu0 %v2662, 80
      %v2691 = vpop.permute.xlu0 %2690
      %2692 = vrot.lane.b32.xlu0 %v2663, 80
      %v2693 = vpop.permute.xlu0 %2692
      %2696 = vrot.lane.b32.xlu0 %v2662, 96
      %v2697 = vpop.permute.xlu0 %2696
      %2698 = vrot.lane.b32.xlu0 %v2663, 96
      %v2699 = vpop.permute.xlu0 %2698
      %2702 = vrot.lane.b32.xlu0 %v2662, 112
      %v2703 = vpop.permute.xlu0 %2702
      %2704 = vrot.lane.b32.xlu0 %v2663, 112
      %v2705 = vpop.permute.xlu0 %2704
      %v2708 = vsel %vm1435, %v2662, %v2667
      %v2709 = vsel %vm1435, %v2663, %v2669
      %v2710 = vsel %vm850, %v2708, %v2673
      %v2711 = vsel %vm850, %v2709, %v2675
      %v2712 = vsel %vm1440, %v2710, %v2679
      %v2713 = vsel %vm1440, %v2711, %v2681
      %v2714 = vsel %vm1443, %v2712, %v2685
      %v2715 = vsel %vm1443, %v2713, %v2687
      %v2716 = vsel %vm1446, %v2714, %v2691
      %v2717 = vsel %vm1446, %v2715, %v2693
      %v2718 = vsel %vm1449, %v2716, %v2697
      %v2719 = vsel %vm1449, %v2717, %v2699
      %v2720 = vsel %vm1452, %v2718, %v2703
      %v2721 = vsel %vm1452, %v2719, %v2705
      %v2722 = vmul.f32 %v796, %v2720
      %v2723 = vmul.f32 %v797, %v2721
      %v2724 = vmul.f32 %v798, %v2720
      %v2725 = vmul.f32 %v799, %v2721
      %v2726 = vmul.f32 %v800, %v2720
      %v2727 = vmul.f32 %v801, %v2721
      %v2728 = vmul.f32 %v802, %v2720
      %v2729 = vmul.f32 %v803, %v2721
      %v2730 = vmul.f32 %v804, %v2720
      %v2731 = vmul.f32 %v805, %v2721
      %v2732 = vmul.f32 %v806, %v2720
      %v2733 = vmul.f32 %v807, %v2721
      %v2734 = vmul.f32 %v808, %v2720
      %v2735 = vmul.f32 %v809, %v2721
      %v2736 = vmul.f32 %v810, %v2720
      %v2737 = vmul.f32 %v811, %v2721
      %2738 = vmatprep.subr.mxu0 0.0
      %2739 = vmatpush1.msra.mxu0 %v2722
      %2740 = vmatprep.subr.mxu0 0.0
      %2741 = vmatpush1.msra.mxu0 %v2723
      %2742 = vmatprep.subr.mxu0 0.0
      %2743 = vmatpush1.msra.mxu0 %v2724
      %2744 = vmatprep.subr.mxu0 0.0
      %2745 = vmatpush1.msra.mxu0 %v2725
      %2746 = vmatprep.subr.mxu0 0.0
      %2747 = vmatpush1.msra.mxu0 %v2726
      %2748 = vmatprep.subr.mxu0 0.0
      %2749 = vmatpush1.msra.mxu0 %v2727
      %2750 = vmatprep.subr.mxu0 0.0
      %2751 = vmatpush1.msra.mxu0 %v2728
      %2752 = vmatprep.subr.mxu0 0.0
      %2753 = vmatpush1.msra.mxu0 %v2729
      %2754 = vmatprep.subr.mxu0 0.0
      %2755 = vmatpush1.msra.mxu0 %v2730
      %2756 = vmatprep.subr.mxu0 0.0
      %2757 = vmatpush1.msra.mxu0 %v2731
      %2758 = vmatprep.subr.mxu0 0.0
      %2759 = vmatpush1.msra.mxu0 %v2732
      %2760 = vmatprep.subr.mxu0 0.0
      %2761 = vmatpush1.msra.mxu0 %v2733
      %2762 = vmatprep.subr.mxu0 0.0
      %2763 = vmatpush1.msra.mxu0 %v2734
      %2764 = vmatprep.subr.mxu0 0.0
      %2765 = vmatpush1.msra.mxu0 %v2735
      %2766 = vmatprep.subr.mxu0 0.0
      %2767 = vmatpush1.msra.mxu0 %v2736
      %2768 = vmatprep.subr.mxu0 0.0
      %2769 = vmatpush1.msra.mxu0 %v2737
      %2770 = vmatprep.subr.mxu0 0.0
      %2771 = vmatpush1.msra.mxu0 0.0
      %2772 = vmatprep.subr.mxu0 0.0
      %2773 = vmatpush1.msra.mxu0 0.0
      %2774 = vmatprep.subr.mxu0 0.0
      %2775 = vmatpush1.msra.mxu0 0.0
      %2776 = vmatprep.subr.mxu0 0.0
      %2777 = vmatpush1.msra.mxu0 0.0
      %2778 = vmatprep.subr.mxu0 0.0
      %2779 = vmatpush1.msra.mxu0 0.0
      %2780 = vmatprep.subr.mxu0 0.0
      %2781 = vmatpush1.msra.mxu0 0.0
      %2782 = vmatprep.subr.mxu0 0.0
      %2783 = vmatpush1.msra.mxu0 0.0
      %2784 = vmatprep.subr.mxu0 0.0
      %2785 = vmatpush1.msra.mxu0 0.0
      %2786 = vmatprep.subr.mxu0 0.0
      %2787 = vmatpush1.msra.mxu0 0.0
      %2788 = vmatprep.subr.mxu0 0.0
      %2789 = vmatpush1.msra.mxu0 0.0
      %2790 = vmatprep.subr.mxu0 0.0
      %2791 = vmatpush1.msra.mxu0 0.0
      %2792 = vmatprep.subr.mxu0 0.0
      %2793 = vmatpush1.msra.mxu0 0.0
      %2794 = vmatprep.subr.mxu0 0.0
      %2795 = vmatpush1.msra.mxu0 0.0
      %2796 = vmatprep.subr.mxu0 0.0
      %2797 = vmatpush1.msra.mxu0 0.0
      %2798 = vmatprep.subr.mxu0 0.0
      %2799 = vmatpush1.msra.mxu0 0.0
      %2800 = vmatprep.subr.mxu0 0.0
      %2801 = vmatpush1.msra.mxu0 0.0
      %2802 = vmatprep.mubr.f32.mxu0 0.0
      %2803 = vmatmul.mubr.f32.gmra.mrb[0].mxu0 %v2204
      %v2804 = vpop.f32.mrb[0].mxu0
      %v2805 = vadd.f32 0.0, %v2804
      %v2806 = vpop.f32.mrb[0].mxu0
      %2807 = vmatprep.mubr.f32.mxu0 0.0
      %2808 = vmatmul.mubr.f32.gmra.mrb[0].mxu0 %v2209
      %v2809 = vpop.f32.mrb[0].mxu0
      %v2810 = vadd.f32 0.0, %v2809
      %v2811 = vpop.f32.mrb[0].mxu0
      %2812 = vdwg.mxu0
      %2814 = vset.pattern.permute.xlu0 0
      %2815 = vperm.xlu0 %2814, %v2103
      %v2816 = vpop.permute.xlu0 %2815
      %2819 = vset.pattern.permute.xlu0 0
      %2820 = vperm.xlu0 %2819, %v2104
      %v2821 = vpop.permute.xlu0 %2820
      %v2823 = vmul.f32 %v2816, %v2805
      %v2824 = vmul.f32 %v2821, %v2810
      %v2825 = vadd.f32 %v2823, 0.0
      %v2826 = vadd.f32 %v2824, 0.0
      %v2827 = vlaneseq
      %v2828 = vshrl.u32 %v2827, 7
      %v2829 = vsub.s32 1, %v2828
      %v2830 = vrot.slane %v2555, %v2829
      %2831 = vset.pattern.permute.xlu0 1
      %2832 = vperm.xlu0 %2831, %v2638
      %v2833 = vpop.permute.xlu0 %2832
      %2835 = vset.pattern.permute.xlu0 1
      %2836 = vperm.xlu0 %2835, %v2643
      %v2837 = vpop.permute.xlu0 %2836
      %v2839 = vsub.f32 %v2830, %v2833
      %v2840 = vsub.f32 %v2830, %v2837
      %v2841 = vtanh.pop %v2839
      %v2842 = vtanh.pop %v2840
      %2845 = vrot.lane.b32.xlu0 %v2841, 16
      %v2846 = vpop.permute.xlu0 %2845
      %2847 = vrot.lane.b32.xlu0 %v2842, 16
      %v2848 = vpop.permute.xlu0 %2847
      %2851 = vrot.lane.b32.xlu0 %v2841, 32
      %v2852 = vpop.permute.xlu0 %2851
      %2853 = vrot.lane.b32.xlu0 %v2842, 32
      %v2854 = vpop.permute.xlu0 %2853
      %2857 = vrot.lane.b32.xlu0 %v2841, 48
      %v2858 = vpop.permute.xlu0 %2857
      %2859 = vrot.lane.b32.xlu0 %v2842, 48
      %v2860 = vpop.permute.xlu0 %2859
      %2863 = vrot.lane.b32.xlu0 %v2841, 64
      %v2864 = vpop.permute.xlu0 %2863
      %2865 = vrot.lane.b32.xlu0 %v2842, 64
      %v2866 = vpop.permute.xlu0 %2865
      %2869 = vrot.lane.b32.xlu0 %v2841, 80
      %v2870 = vpop.permute.xlu0 %2869
      %2871 = vrot.lane.b32.xlu0 %v2842, 80
      %v2872 = vpop.permute.xlu0 %2871
      %2875 = vrot.lane.b32.xlu0 %v2841, 96
      %v2876 = vpop.permute.xlu0 %2875
      %2877 = vrot.lane.b32.xlu0 %v2842, 96
      %v2878 = vpop.permute.xlu0 %2877
      %2881 = vrot.lane.b32.xlu0 %v2841, 112
      %v2882 = vpop.permute.xlu0 %2881
      %2883 = vrot.lane.b32.xlu0 %v2842, 112
      %v2884 = vpop.permute.xlu0 %2883
      %v2887 = vsel %vm1435, %v2841, %v2846
      %v2888 = vsel %vm1435, %v2842, %v2848
      %v2889 = vsel %vm850, %v2887, %v2852
      %v2890 = vsel %vm850, %v2888, %v2854
      %v2891 = vsel %vm1440, %v2889, %v2858
      %v2892 = vsel %vm1440, %v2890, %v2860
      %v2893 = vsel %vm1443, %v2891, %v2864
      %v2894 = vsel %vm1443, %v2892, %v2866
      %v2895 = vsel %vm1446, %v2893, %v2870
      %v2896 = vsel %vm1446, %v2894, %v2872
      %v2897 = vsel %vm1449, %v2895, %v2876
      %v2898 = vsel %vm1449, %v2896, %v2878
      %v2899 = vsel %vm1452, %v2897, %v2882
      %v2900 = vsel %vm1452, %v2898, %v2884
      %v2901 = vmul.f32 %v796, %v2899
      %v2902 = vmul.f32 %v797, %v2900
      %v2903 = vmul.f32 %v798, %v2899
      %v2904 = vmul.f32 %v799, %v2900
      %v2905 = vmul.f32 %v800, %v2899
      %v2906 = vmul.f32 %v801, %v2900
      %v2907 = vmul.f32 %v802, %v2899
      %v2908 = vmul.f32 %v803, %v2900
      %v2909 = vmul.f32 %v804, %v2899
      %v2910 = vmul.f32 %v805, %v2900
      %v2911 = vmul.f32 %v806, %v2899
      %v2912 = vmul.f32 %v807, %v2900
      %v2913 = vmul.f32 %v808, %v2899
      %v2914 = vmul.f32 %v809, %v2900
      %v2915 = vmul.f32 %v810, %v2899
      %v2916 = vmul.f32 %v811, %v2900
      %2917 = vmatprep.subr.mxu0 0.0
      %2918 = vmatpush1.msra.mxu0 %v2901
      %2919 = vmatprep.subr.mxu0 0.0
      %2920 = vmatpush1.msra.mxu0 %v2902
      %2921 = vmatprep.subr.mxu0 0.0
      %2922 = vmatpush1.msra.mxu0 %v2903
      %2923 = vmatprep.subr.mxu0 0.0
      %2924 = vmatpush1.msra.mxu0 %v2904
      %2925 = vmatprep.subr.mxu0 0.0
      %2926 = vmatpush1.msra.mxu0 %v2905
      %2927 = vmatprep.subr.mxu0 0.0
      %2928 = vmatpush1.msra.mxu0 %v2906
      %2929 = vmatprep.subr.mxu0 0.0
      %2930 = vmatpush1.msra.mxu0 %v2907
      %2931 = vmatprep.subr.mxu0 0.0
      %2932 = vmatpush1.msra.mxu0 %v2908
      %2933 = vmatprep.subr.mxu0 0.0
      %2934 = vmatpush1.msra.mxu0 %v2909
      %2935 = vmatprep.subr.mxu0 0.0
      %2936 = vmatpush1.msra.mxu0 %v2910
      %2937 = vmatprep.subr.mxu0 0.0
      %2938 = vmatpush1.msra.mxu0 %v2911
      %2939 = vmatprep.subr.mxu0 0.0
      %2940 = vmatpush1.msra.mxu0 %v2912
      %2941 = vmatprep.subr.mxu0 0.0
      %2942 = vmatpush1.msra.mxu0 %v2913
      %2943 = vmatprep.subr.mxu0 0.0
      %2944 = vmatpush1.msra.mxu0 %v2914
      %2945 = vmatprep.subr.mxu0 0.0
      %2946 = vmatpush1.msra.mxu0 %v2915
      %2947 = vmatprep.subr.mxu0 0.0
      %2948 = vmatpush1.msra.mxu0 %v2916
      %2949 = vmatprep.subr.mxu0 0.0
      %2950 = vmatpush1.msra.mxu0 0.0
      %2951 = vmatprep.subr.mxu0 0.0
      %2952 = vmatpush1.msra.mxu0 0.0
      %2953 = vmatprep.subr.mxu0 0.0
      %2954 = vmatpush1.msra.mxu0 0.0
      %2955 = vmatprep.subr.mxu0 0.0
      %2956 = vmatpush1.msra.mxu0 0.0
      %2957 = vmatprep.subr.mxu0 0.0
      %2958 = vmatpush1.msra.mxu0 0.0
      %2959 = vmatprep.subr.mxu0 0.0
      %2960 = vmatpush1.msra.mxu0 0.0
      %2961 = vmatprep.subr.mxu0 0.0
      %2962 = vmatpush1.msra.mxu0 0.0
      %2963 = vmatprep.subr.mxu0 0.0
      %2964 = vmatpush1.msra.mxu0 0.0
      %2965 = vmatprep.subr.mxu0 0.0
      %2966 = vmatpush1.msra.mxu0 0.0
      %2967 = vmatprep.subr.mxu0 0.0
      %2968 = vmatpush1.msra.mxu0 0.0
      %2969 = vmatprep.subr.mxu0 0.0
      %2970 = vmatpush1.msra.mxu0 0.0
      %2971 = vmatprep.subr.mxu0 0.0
      %2972 = vmatpush1.msra.mxu0 0.0
      %2973 = vmatprep.subr.mxu0 0.0
      %2974 = vmatpush1.msra.mxu0 0.0
      %2975 = vmatprep.subr.mxu0 0.0
      %2976 = vmatpush1.msra.mxu0 0.0
      %2977 = vmatprep.subr.mxu0 0.0
      %2978 = vmatpush1.msra.mxu0 0.0
      %2979 = vmatprep.subr.mxu0 0.0
      %2980 = vmatpush1.msra.mxu0 0.0
      %2981 = vmatprep.mubr.f32.mxu0 0.0
      %2982 = vmatmul.mubr.f32.gmra.mrb[0].mxu0 %v2204
      %v2983 = vpop.f32.mrb[0].mxu0
      %v2984 = vadd.f32 0.0, %v2983
      %v2985 = vpop.f32.mrb[0].mxu0
      %2986 = vmatprep.mubr.f32.mxu0 0.0
      %2987 = vmatmul.mubr.f32.gmra.mrb[0].mxu0 %v2209
      %v2988 = vpop.f32.mrb[0].mxu0
      %v2989 = vadd.f32 0.0, %v2988
      %v2990 = vpop.f32.mrb[0].mxu0
      %2991 = vdwg.mxu0
      %2992 = vset.pattern.permute.xlu0 1
      %2993 = vperm.xlu0 %2992, %v2103
      %v2994 = vpop.permute.xlu0 %2993
      %2996 = vset.pattern.permute.xlu0 1
      %2997 = vperm.xlu0 %2996, %v2104
      %v2998 = vpop.permute.xlu0 %2997
      %v3000 = vmul.f32 %v2994, %v2984
      %v3001 = vmul.f32 %v2998, %v2989
      %v3002 = vadd.f32 %v2825, %v3000
      %v3003 = vadd.f32 %v2826, %v3001
      %v3004 = vld [vmem:[%s450] sm:$0xff]
      %v3005 = vld [vmem:[%s450 + $0x8] sm:$0xff]
      %v3006 = vadd.f32 %v3004, %v3002
      %v3007 = vadd.f32 %v3005, %v3003
      %3008 = vst [vmem:[%s450] sm:$0xff] %v3006
      %3009 = vst [vmem:[%s450 + $0x8] sm:$0xff] %v3007
      %v3010 = vlaneseq
      %v3011 = vshrl.u32 %v3010, 7
      %v3012 = vsub.s32 2, %v3011
      %v3013 = vrot.slane %v2555, %v3012
      %3014 = vset.pattern.permute.xlu0 2
      %3015 = vperm.xlu0 %3014, %v2638
      %v3016 = vpop.permute.xlu0 %3015
      %3018 = vset.pattern.permute.xlu0 2
      %3019 = vperm.xlu0 %3018, %v2643
      %v3020 = vpop.permute.xlu0 %3019
      %v3022 = vsub.f32 %v3013, %v3016
      %v3023 = vsub.f32 %v3013, %v3020
      %v3024 = vtanh.pop %v3022
      %v3025 = vtanh.pop %v3023
      %3028 = vrot.lane.b32.xlu0 %v3024, 16
      %v3029 = vpop.permute.xlu0 %3028
      %3030 = vrot.lane.b32.xlu0 %v3025, 16
      %v3031 = vpop.permute.xlu0 %3030
      %3034 = vrot.lane.b32.xlu0 %v3024, 32
      %v3035 = vpop.permute.xlu0 %3034
      %3036 = vrot.lane.b32.xlu0 %v3025, 32
      %v3037 = vpop.permute.xlu0 %3036
      %3040 = vrot.lane.b32.xlu0 %v3024, 48
      %v3041 = vpop.permute.xlu0 %3040
      %3042 = vrot.lane.b32.xlu0 %v3025, 48
      %v3043 = vpop.permute.xlu0 %3042
      %3046 = vrot.lane.b32.xlu0 %v3024, 64
      %v3047 = vpop.permute.xlu0 %3046
      %3048 = vrot.lane.b32.xlu0 %v3025, 64
      %v3049 = vpop.permute.xlu0 %3048
      %3052 = vrot.lane.b32.xlu0 %v3024, 80
      %v3053 = vpop.permute.xlu0 %3052
      %3054 = vrot.lane.b32.xlu0 %v3025, 80
      %v3055 = vpop.permute.xlu0 %3054
      %3058 = vrot.lane.b32.xlu0 %v3024, 96
      %v3059 = vpop.permute.xlu0 %3058
      %3060 = vrot.lane.b32.xlu0 %v3025, 96
      %v3061 = vpop.permute.xlu0 %3060
      %3064 = vrot.lane.b32.xlu0 %v3024, 112
      %v3065 = vpop.permute.xlu0 %3064
      %3066 = vrot.lane.b32.xlu0 %v3025, 112
      %v3067 = vpop.permute.xlu0 %3066
      %v3070 = vsel %vm1435, %v3024, %v3029
      %v3071 = vsel %vm1435, %v3025, %v3031
      %v3072 = vsel %vm850, %v3070, %v3035
      %v3073 = vsel %vm850, %v3071, %v3037
      %v3074 = vsel %vm1440, %v3072, %v3041
      %v3075 = vsel %vm1440, %v3073, %v3043
      %v3076 = vsel %vm1443, %v3074, %v3047
      %v3077 = vsel %vm1443, %v3075, %v3049
      %v3078 = vsel %vm1446, %v3076, %v3053
      %v3079 = vsel %vm1446, %v3077, %v3055
      %v3080 = vsel %vm1449, %v3078, %v3059
      %v3081 = vsel %vm1449, %v3079, %v3061
      %v3082 = vsel %vm1452, %v3080, %v3065
      %v3083 = vsel %vm1452, %v3081, %v3067
      %v3084 = vmul.f32 %v796, %v3082
      %v3085 = vmul.f32 %v797, %v3083
      %v3086 = vmul.f32 %v798, %v3082
      %v3087 = vmul.f32 %v799, %v3083
      %v3088 = vmul.f32 %v800, %v3082
      %v3089 = vmul.f32 %v801, %v3083
      %v3090 = vmul.f32 %v802, %v3082
      %v3091 = vmul.f32 %v803, %v3083
      %v3092 = vmul.f32 %v804, %v3082
      %v3093 = vmul.f32 %v805, %v3083
      %v3094 = vmul.f32 %v806, %v3082
      %v3095 = vmul.f32 %v807, %v3083
      %v3096 = vmul.f32 %v808, %v3082
      %v3097 = vmul.f32 %v809, %v3083
      %v3098 = vmul.f32 %v810, %v3082
      %v3099 = vmul.f32 %v811, %v3083
      %3100 = vmatprep.subr.mxu0 0.0
      %3101 = vmatpush1.msra.mxu0 %v3084
      %3102 = vmatprep.subr.mxu0 0.0
      %3103 = vmatpush1.msra.mxu0 %v3085
      %3104 = vmatprep.subr.mxu0 0.0
      %3105 = vmatpush1.msra.mxu0 %v3086
      %3106 = vmatprep.subr.mxu0 0.0
      %3107 = vmatpush1.msra.mxu0 %v3087
      %3108 = vmatprep.subr.mxu0 0.0
      %3109 = vmatpush1.msra.mxu0 %v3088
      %3110 = vmatprep.subr.mxu0 0.0
      %3111 = vmatpush1.msra.mxu0 %v3089
      %3112 = vmatprep.subr.mxu0 0.0
      %3113 = vmatpush1.msra.mxu0 %v3090
      %3114 = vmatprep.subr.mxu0 0.0
      %3115 = vmatpush1.msra.mxu0 %v3091
      %3116 = vmatprep.subr.mxu0 0.0
      %3117 = vmatpush1.msra.mxu0 %v3092
      %3118 = vmatprep.subr.mxu0 0.0
      %3119 = vmatpush1.msra.mxu0 %v3093
      %3120 = vmatprep.subr.mxu0 0.0
      %3121 = vmatpush1.msra.mxu0 %v3094
      %3122 = vmatprep.subr.mxu0 0.0
      %3123 = vmatpush1.msra.mxu0 %v3095
      %3124 = vmatprep.subr.mxu0 0.0
      %3125 = vmatpush1.msra.mxu0 %v3096
      %3126 = vmatprep.subr.mxu0 0.0
      %3127 = vmatpush1.msra.mxu0 %v3097
      %3128 = vmatprep.subr.mxu0 0.0
      %3129 = vmatpush1.msra.mxu0 %v3098
      %3130 = vmatprep.subr.mxu0 0.0
      %3131 = vmatpush1.msra.mxu0 %v3099
      %3132 = vmatprep.subr.mxu0 0.0
      %3133 = vmatpush1.msra.mxu0 0.0
      %3134 = vmatprep.subr.mxu0 0.0
      %3135 = vmatpush1.msra.mxu0 0.0
      %3136 = vmatprep.subr.mxu0 0.0
      %3137 = vmatpush1.msra.mxu0 0.0
      %3138 = vmatprep.subr.mxu0 0.0
      %3139 = vmatpush1.msra.mxu0 0.0
      %3140 = vmatprep.subr.mxu0 0.0
      %3141 = vmatpush1.msra.mxu0 0.0
      %3142 = vmatprep.subr.mxu0 0.0
      %3143 = vmatpush1.msra.mxu0 0.0
      %3144 = vmatprep.subr.mxu0 0.0
      %3145 = vmatpush1.msra.mxu0 0.0
      %3146 = vmatprep.subr.mxu0 0.0
      %3147 = vmatpush1.msra.mxu0 0.0
      %3148 = vmatprep.subr.mxu0 0.0
      %3149 = vmatpush1.msra.mxu0 0.0
      %3150 = vmatprep.subr.mxu0 0.0
      %3151 = vmatpush1.msra.mxu0 0.0
      %3152 = vmatprep.subr.mxu0 0.0
      %3153 = vmatpush1.msra.mxu0 0.0
      %3154 = vmatprep.subr.mxu0 0.0
      %3155 = vmatpush1.msra.mxu0 0.0
      %3156 = vmatprep.subr.mxu0 0.0
      %3157 = vmatpush1.msra.mxu0 0.0
      %3158 = vmatprep.subr.mxu0 0.0
      %3159 = vmatpush1.msra.mxu0 0.0
      %3160 = vmatprep.subr.mxu0 0.0
      %3161 = vmatpush1.msra.mxu0 0.0
      %3162 = vmatprep.subr.mxu0 0.0
      %3163 = vmatpush1.msra.mxu0 0.0
      %3164 = vmatprep.mubr.f32.mxu0 0.0
      %3165 = vmatmul.mubr.f32.gmra.mrb[0].mxu0 %v2214
      %v3166 = vpop.f32.mrb[0].mxu0
      %v3167 = vadd.f32 0.0, %v3166
      %v3168 = vpop.f32.mrb[0].mxu0
      %3169 = vmatprep.mubr.f32.mxu0 0.0
      %3170 = vmatmul.mubr.f32.gmra.mrb[0].mxu0 %v2219
      %v3171 = vpop.f32.mrb[0].mxu0
      %v3172 = vadd.f32 0.0, %v3171
      %v3173 = vpop.f32.mrb[0].mxu0
      %3174 = vdwg.mxu0
      %v3175 = vmul.f32 %v2816, %v3167
      %v3176 = vmul.f32 %v2821, %v3172
      %v3177 = vadd.f32 %v3175, 0.0
      %v3178 = vadd.f32 %v3176, 0.0
      %v3179 = vlaneseq
      %v3180 = vshrl.u32 %v3179, 7
      %v3181 = vsub.s32 3, %v3180
      %v3182 = vrot.slane %v2555, %v3181
      %3183 = vset.pattern.permute.xlu0 3
      %3184 = vperm.xlu0 %3183, %v2638
      %v3185 = vpop.permute.xlu0 %3184
      %3187 = vset.pattern.permute.xlu0 3
      %3188 = vperm.xlu0 %3187, %v2643
      %v3189 = vpop.permute.xlu0 %3188
      %v3191 = vsub.f32 %v3182, %v3185
      %v3192 = vsub.f32 %v3182, %v3189
      %v3193 = vtanh.pop %v3191
      %v3194 = vtanh.pop %v3192
      %3197 = vrot.lane.b32.xlu0 %v3193, 16
      %v3198 = vpop.permute.xlu0 %3197
      %3199 = vrot.lane.b32.xlu0 %v3194, 16
      %v3200 = vpop.permute.xlu0 %3199
      %3203 = vrot.lane.b32.xlu0 %v3193, 32
      %v3204 = vpop.permute.xlu0 %3203
      %3205 = vrot.lane.b32.xlu0 %v3194, 32
      %v3206 = vpop.permute.xlu0 %3205
      %3209 = vrot.lane.b32.xlu0 %v3193, 48
      %v3210 = vpop.permute.xlu0 %3209
      %3211 = vrot.lane.b32.xlu0 %v3194, 48
      %v3212 = vpop.permute.xlu0 %3211
      %3215 = vrot.lane.b32.xlu0 %v3193, 64
      %v3216 = vpop.permute.xlu0 %3215
      %3217 = vrot.lane.b32.xlu0 %v3194, 64
      %v3218 = vpop.permute.xlu0 %3217
      %3221 = vrot.lane.b32.xlu0 %v3193, 80
      %v3222 = vpop.permute.xlu0 %3221
      %3223 = vrot.lane.b32.xlu0 %v3194, 80
      %v3224 = vpop.permute.xlu0 %3223
      %3227 = vrot.lane.b32.xlu0 %v3193, 96
      %v3228 = vpop.permute.xlu0 %3227
      %3229 = vrot.lane.b32.xlu0 %v3194, 96
      %v3230 = vpop.permute.xlu0 %3229
      %3233 = vrot.lane.b32.xlu0 %v3193, 112
      %v3234 = vpop.permute.xlu0 %3233
      %3235 = vrot.lane.b32.xlu0 %v3194, 112
      %v3236 = vpop.permute.xlu0 %3235
      %v3239 = vsel %vm1435, %v3193, %v3198
      %v3240 = vsel %vm1435, %v3194, %v3200
      %v3241 = vsel %vm850, %v3239, %v3204
      %v3242 = vsel %vm850, %v3240, %v3206
      %v3243 = vsel %vm1440, %v3241, %v3210
      %v3244 = vsel %vm1440, %v3242, %v3212
      %v3245 = vsel %vm1443, %v3243, %v3216
      %v3246 = vsel %vm1443, %v3244, %v3218
      %v3247 = vsel %vm1446, %v3245, %v3222
      %v3248 = vsel %vm1446, %v3246, %v3224
      %v3249 = vsel %vm1449, %v3247, %v3228
      %v3250 = vsel %vm1449, %v3248, %v3230
      %v3251 = vsel %vm1452, %v3249, %v3234
      %v3252 = vsel %vm1452, %v3250, %v3236
      %v3253 = vmul.f32 %v796, %v3251
      %v3254 = vmul.f32 %v797, %v3252
      %v3255 = vmul.f32 %v798, %v3251
      %v3256 = vmul.f32 %v799, %v3252
      %v3257 = vmul.f32 %v800, %v3251
      %v3258 = vmul.f32 %v801, %v3252
      %v3259 = vmul.f32 %v802, %v3251
      %v3260 = vmul.f32 %v803, %v3252
      %v3261 = vmul.f32 %v804, %v3251
      %v3262 = vmul.f32 %v805, %v3252
      %v3263 = vmul.f32 %v806, %v3251
      %v3264 = vmul.f32 %v807, %v3252
      %v3265 = vmul.f32 %v808, %v3251
      %v3266 = vmul.f32 %v809, %v3252
      %v3267 = vmul.f32 %v810, %v3251
      %v3268 = vmul.f32 %v811, %v3252
      %3269 = vmatprep.subr.mxu0 0.0
      %3270 = vmatpush1.msra.mxu0 %v3253
      %3271 = vmatprep.subr.mxu0 0.0
      %3272 = vmatpush1.msra.mxu0 %v3254
      %3273 = vmatprep.subr.mxu0 0.0
      %3274 = vmatpush1.msra.mxu0 %v3255
      %3275 = vmatprep.subr.mxu0 0.0
      %3276 = vmatpush1.msra.mxu0 %v3256
      %3277 = vmatprep.subr.mxu0 0.0
      %3278 = vmatpush1.msra.mxu0 %v3257
      %3279 = vmatprep.subr.mxu0 0.0
      %3280 = vmatpush1.msra.mxu0 %v3258
      %3281 = vmatprep.subr.mxu0 0.0
      %3282 = vmatpush1.msra.mxu0 %v3259
      %3283 = vmatprep.subr.mxu0 0.0
      %3284 = vmatpush1.msra.mxu0 %v3260
      %3285 = vmatprep.subr.mxu0 0.0
      %3286 = vmatpush1.msra.mxu0 %v3261
      %3287 = vmatprep.subr.mxu0 0.0
      %3288 = vmatpush1.msra.mxu0 %v3262
      %3289 = vmatprep.subr.mxu0 0.0
      %3290 = vmatpush1.msra.mxu0 %v3263
      %3291 = vmatprep.subr.mxu0 0.0
      %3292 = vmatpush1.msra.mxu0 %v3264
      %3293 = vmatprep.subr.mxu0 0.0
      %3294 = vmatpush1.msra.mxu0 %v3265
      %3295 = vmatprep.subr.mxu0 0.0
      %3296 = vmatpush1.msra.mxu0 %v3266
      %3297 = vmatprep.subr.mxu0 0.0
      %3298 = vmatpush1.msra.mxu0 %v3267
      %3299 = vmatprep.subr.mxu0 0.0
      %3300 = vmatpush1.msra.mxu0 %v3268
      %3301 = vmatprep.subr.mxu0 0.0
      %3302 = vmatpush1.msra.mxu0 0.0
      %3303 = vmatprep.subr.mxu0 0.0
      %3304 = vmatpush1.msra.mxu0 0.0
      %3305 = vmatprep.subr.mxu0 0.0
      %3306 = vmatpush1.msra.mxu0 0.0
      %3307 = vmatprep.subr.mxu0 0.0
      %3308 = vmatpush1.msra.mxu0 0.0
      %3309 = vmatprep.subr.mxu0 0.0
      %3310 = vmatpush1.msra.mxu0 0.0
      %3311 = vmatprep.subr.mxu0 0.0
      %3312 = vmatpush1.msra.mxu0 0.0
      %3313 = vmatprep.subr.mxu0 0.0
      %3314 = vmatpush1.msra.mxu0 0.0
      %3315 = vmatprep.subr.mxu0 0.0
      %3316 = vmatpush1.msra.mxu0 0.0
      %3317 = vmatprep.subr.mxu0 0.0
      %3318 = vmatpush1.msra.mxu0 0.0
      %3319 = vmatprep.subr.mxu0 0.0
      %3320 = vmatpush1.msra.mxu0 0.0
      %3321 = vmatprep.subr.mxu0 0.0
      %3322 = vmatpush1.msra.mxu0 0.0
      %3323 = vmatprep.subr.mxu0 0.0
      %3324 = vmatpush1.msra.mxu0 0.0
      %3325 = vmatprep.subr.mxu0 0.0
      %3326 = vmatpush1.msra.mxu0 0.0
      %3327 = vmatprep.subr.mxu0 0.0
      %3328 = vmatpush1.msra.mxu0 0.0
      %3329 = vmatprep.subr.mxu0 0.0
      %3330 = vmatpush1.msra.mxu0 0.0
      %3331 = vmatprep.subr.mxu0 0.0
      %3332 = vmatpush1.msra.mxu0 0.0
      %3333 = vmatprep.mubr.f32.mxu0 0.0
      %3334 = vmatmul.mubr.f32.gmra.mrb[0].mxu0 %v2214
      %v3335 = vpop.f32.mrb[0].mxu0
      %v3336 = vadd.f32 0.0, %v3335
      %v3337 = vpop.f32.mrb[0].mxu0
      %3338 = vmatprep.mubr.f32.mxu0 0.0
      %3339 = vmatmul.mubr.f32.gmra.mrb[0].mxu0 %v2219
      %v3340 = vpop.f32.mrb[0].mxu0
      %v3341 = vadd.f32 0.0, %v3340
      %v3342 = vpop.f32.mrb[0].mxu0
      %3343 = vdwg.mxu0
      %v3344 = vmul.f32 %v2994, %v3336
      %v3345 = vmul.f32 %v2998, %v3341
      %v3346 = vadd.f32 %v3177, %v3344
      %v3347 = vadd.f32 %v3178, %v3345
      %v3348 = vld [vmem:[%s450 + $0x10] sm:$0xff]
      %v3349 = vld [vmem:[%s450 + $0x18] sm:$0xff]
      %v3350 = vadd.f32 %v3348, %v3346
      %v3351 = vadd.f32 %v3349, %v3347
      %3352 = vst [vmem:[%s450 + $0x10] sm:$0xff] %v3350
      %3353 = vst [vmem:[%s450 + $0x18] sm:$0xff] %v3351
      %s3354 = scalar_lea.vmem %s5, 64
      %v3355 = vld [vmem:[%s3354] sm:$0xff]
      %v3356 = vld [vmem:[%s3354 + $0x8] sm:$0xff]
      %v3357 = vld [vmem:[%s3354 + $0x10] sm:$0xff]
      %v3358 = vld [vmem:[%s3354 + $0x18] sm:$0xff]
      %s3359 = scalar_lea.vmem %s6, 64
      %v3360 = vld [vmem:[%s3359] sm:$0xff]
      %v3361 = vld [vmem:[%s3359 + $0x8] sm:$0xff]
      %v3362 = vld [vmem:[%s3359 + $0x10] sm:$0xff]
      %v3363 = vld [vmem:[%s3359 + $0x18] sm:$0xff]
      %s3364 = scalar_lea.vmem %s8, 64
      %v3365 = vld [vmem:[%s3364] sm:$0xff]
      %v3366 = vld [vmem:[%s3364 + $0x8] sm:$0xff]
      %v3367 = vld [vmem:[%s3364 + $0x10] sm:$0xff]
      %v3368 = vld [vmem:[%s3364 + $0x18] sm:$0xff]
      %s3369 = scalar_lea.vmem %s7, 32
      %v3370 = vld [vmem:[%s3369] sm:$0xff]
      %v3371 = vld [vmem:[%s3369 + $0x8] sm:$0xff]
      %3373 = vset.pattern.permute.xlu0 0
      %3374 = vperm.xlu0 %3373, %v3360
      %v3375 = vpop.permute.xlu0 %3374
      %3378 = vset.pattern.permute.xlu0 0
      %3379 = vperm.xlu0 %3378, %v3361
      %v3380 = vpop.permute.xlu0 %3379
      %3383 = vset.pattern.permute.xlu0 0
      %3384 = vperm.xlu0 %3383, %v3362
      %v3385 = vpop.permute.xlu0 %3384
      %3388 = vset.pattern.permute.xlu0 0
      %3389 = vperm.xlu0 %3388, %v3363
      %v3390 = vpop.permute.xlu0 %3389
      %v3393 = vsel %vm850, %v3355, 0
      %v3396 = vsel %vm850, %v3356, 0
      %v3399 = vsel %vm850, %v3357, 0
      %v3402 = vsel %vm850, %v3358, 0
      %3404 = vmatprep.subr.mxu0 0.0
      %3405 = vmatpush1.msra.mxu0 %v457
      %3406 = vmatprep.subr.mxu0 0.0
      %3407 = vmatpush1.msra.mxu0 %v458
      %3408 = vmatprep.subr.mxu0 0.0
      %3409 = vmatpush1.msra.mxu0 %v459
      %3410 = vmatprep.subr.mxu0 0.0
      %3411 = vmatpush1.msra.mxu0 %v460
      %3412 = vmatprep.subr.mxu0 0.0
      %3413 = vmatpush1.msra.mxu0 0.0
      %3414 = vmatprep.subr.mxu0 0.0
      %3415 = vmatpush1.msra.mxu0 0.0
      %3416 = vmatprep.subr.mxu0 0.0
      %3417 = vmatpush1.msra.mxu0 0.0
      %3418 = vmatprep.subr.mxu0 0.0
      %3419 = vmatpush1.msra.mxu0 0.0
      %3420 = vmatprep.subr.mxu0 0.0
      %3421 = vmatpush1.msra.mxu0 0.0
      %3422 = vmatprep.subr.mxu0 0.0
      %3423 = vmatpush1.msra.mxu0 0.0
      %3424 = vmatprep.subr.mxu0 0.0
      %3425 = vmatpush1.msra.mxu0 0.0
      %3426 = vmatprep.subr.mxu0 0.0
      %3427 = vmatpush1.msra.mxu0 0.0
      %3428 = vmatprep.subr.mxu0 0.0
      %3429 = vmatpush1.msra.mxu0 0.0
      %3430 = vmatprep.subr.mxu0 0.0
      %3431 = vmatpush1.msra.mxu0 0.0
      %3432 = vmatprep.subr.mxu0 0.0
      %3433 = vmatpush1.msra.mxu0 0.0
      %3434 = vmatprep.subr.mxu0 0.0
      %3435 = vmatpush1.msra.mxu0 0.0
      %3436 = vmatprep.subr.mxu0 0.0
      %3437 = vmatpush1.msra.mxu0 0.0
      %3438 = vmatprep.subr.mxu0 0.0
      %3439 = vmatpush1.msra.mxu0 0.0
      %3440 = vmatprep.subr.mxu0 0.0
      %3441 = vmatpush1.msra.mxu0 0.0
      %3442 = vmatprep.subr.mxu0 0.0
      %3443 = vmatpush1.msra.mxu0 0.0
      %3444 = vmatprep.subr.mxu0 0.0
      %3445 = vmatpush1.msra.mxu0 0.0
      %3446 = vmatprep.subr.mxu0 0.0
      %3447 = vmatpush1.msra.mxu0 0.0
      %3448 = vmatprep.subr.mxu0 0.0
      %3449 = vmatpush1.msra.mxu0 0.0
      %3450 = vmatprep.subr.mxu0 0.0
      %3451 = vmatpush1.msra.mxu0 0.0
      %3452 = vmatprep.subr.mxu0 0.0
      %3453 = vmatpush1.msra.mxu0 0.0
      %3454 = vmatprep.subr.mxu0 0.0
      %3455 = vmatpush1.msra.mxu0 0.0
      %3456 = vmatprep.subr.mxu0 0.0
      %3457 = vmatpush1.msra.mxu0 0.0
      %3458 = vmatprep.subr.mxu0 0.0
      %3459 = vmatpush1.msra.mxu0 0.0
      %3460 = vmatprep.subr.mxu0 0.0
      %3461 = vmatpush1.msra.mxu0 0.0
      %3462 = vmatprep.subr.mxu0 0.0
      %3463 = vmatpush1.msra.mxu0 0.0
      %3464 = vmatprep.subr.mxu0 0.0
      %3465 = vmatpush1.msra.mxu0 0.0
      %3466 = vmatprep.subr.mxu0 0.0
      %3467 = vmatpush1.msra.mxu0 0.0
      %3468 = vmatprep.mubr.f32.mxu0 0.0
      %3469 = vmatmul.mubr.f32.gmra.mrb[0].mxu0 %v3393
      %v3470 = vpop.f32.mrb[0].mxu0
      %v3471 = vadd.f32 %v3375, %v3470
      %v3472 = vpop.f32.mrb[0].mxu0
      %3473 = vmatprep.mubr.f32.mxu0 0.0
      %3474 = vmatmul.mubr.f32.gmra.mrb[0].mxu0 %v3396
      %v3475 = vpop.f32.mrb[0].mxu0
      %v3476 = vadd.f32 %v3380, %v3475
      %v3477 = vpop.f32.mrb[0].mxu0
      %3478 = vmatprep.mubr.f32.mxu0 0.0
      %3479 = vmatmul.mubr.f32.gmra.mrb[0].mxu0 %v3399
      %v3480 = vpop.f32.mrb[0].mxu0
      %v3481 = vadd.f32 %v3385, %v3480
      %v3482 = vpop.f32.mrb[0].mxu0
      %3483 = vmatprep.mubr.f32.mxu0 0.0
      %3484 = vmatmul.mubr.f32.gmra.mrb[0].mxu0 %v3402
      %v3485 = vpop.f32.mrb[0].mxu0
      %v3486 = vadd.f32 %v3390, %v3485
      %v3487 = vpop.f32.mrb[0].mxu0
      %3488 = vdwg.mxu0
      %v3489 = vld [vmem:[#allocation2 + $0x10] sm:$0xff]
      %v3490 = vld [vmem:[#allocation2 + $0x30] sm:$0xff]
      %v3491 = vld [vmem:[#allocation2 + $0x50] sm:$0xff]
      %v3492 = vld [vmem:[#allocation2 + $0x70] sm:$0xff]
      %s3493 = scalar_lea.vmem %s10, 2
      %v3494 = vld [vmem:[%s3493] sm:$0x1]
      %v3496 = vlaneseq
      %v3497 = vshrl.u32 %v3496, 7
      %v3498 = vsub.s32 0, %v3497
      %v3499 = vrot.slane %v3494, %v3498
      %v3501 = vmul.f32 %v3375, %v3499
      %v3502 = vmul.f32 %v3380, %v3499
      %v3503 = vmul.f32 %v3385, %v3499
      %v3504 = vmul.f32 %v3390, %v3499
      %3505 = vmatprep.subr.mxu0 0.0
      %3506 = vmatpush1.msra.mxu0 %v3489
      %3507 = vmatprep.subr.mxu0 0.0
      %3508 = vmatpush1.msra.mxu0 %v3490
      %3509 = vmatprep.subr.mxu0 0.0
      %3510 = vmatpush1.msra.mxu0 %v3491
      %3511 = vmatprep.subr.mxu0 0.0
      %3512 = vmatpush1.msra.mxu0 %v3492
      %3513 = vmatprep.subr.mxu0 0.0
      %3514 = vmatpush1.msra.mxu0 0.0
      %3515 = vmatprep.subr.mxu0 0.0
      %3516 = vmatpush1.msra.mxu0 0.0
      %3517 = vmatprep.subr.mxu0 0.0
      %3518 = vmatpush1.msra.mxu0 0.0
      %3519 = vmatprep.subr.mxu0 0.0
      %3520 = vmatpush1.msra.mxu0 0.0
      %3521 = vmatprep.subr.mxu0 0.0
      %3522 = vmatpush1.msra.mxu0 0.0
      %3523 = vmatprep.subr.mxu0 0.0
      %3524 = vmatpush1.msra.mxu0 0.0
      %3525 = vmatprep.subr.mxu0 0.0
      %3526 = vmatpush1.msra.mxu0 0.0
      %3527 = vmatprep.subr.mxu0 0.0
      %3528 = vmatpush1.msra.mxu0 0.0
      %3529 = vmatprep.subr.mxu0 0.0
      %3530 = vmatpush1.msra.mxu0 0.0
      %3531 = vmatprep.subr.mxu0 0.0
      %3532 = vmatpush1.msra.mxu0 0.0
      %3533 = vmatprep.subr.mxu0 0.0
      %3534 = vmatpush1.msra.mxu0 0.0
      %3535 = vmatprep.subr.mxu0 0.0
      %3536 = vmatpush1.msra.mxu0 0.0
      %3537 = vmatprep.subr.mxu0 0.0
      %3538 = vmatpush1.msra.mxu0 0.0
      %3539 = vmatprep.subr.mxu0 0.0
      %3540 = vmatpush1.msra.mxu0 0.0
      %3541 = vmatprep.subr.mxu0 0.0
      %3542 = vmatpush1.msra.mxu0 0.0
      %3543 = vmatprep.subr.mxu0 0.0
      %3544 = vmatpush1.msra.mxu0 0.0
      %3545 = vmatprep.subr.mxu0 0.0
      %3546 = vmatpush1.msra.mxu0 0.0
      %3547 = vmatprep.subr.mxu0 0.0
      %3548 = vmatpush1.msra.mxu0 0.0
      %3549 = vmatprep.subr.mxu0 0.0
      %3550 = vmatpush1.msra.mxu0 0.0
      %3551 = vmatprep.subr.mxu0 0.0
      %3552 = vmatpush1.msra.mxu0 0.0
      %3553 = vmatprep.subr.mxu0 0.0
      %3554 = vmatpush1.msra.mxu0 0.0
      %3555 = vmatprep.subr.mxu0 0.0
      %3556 = vmatpush1.msra.mxu0 0.0
      %3557 = vmatprep.subr.mxu0 0.0
      %3558 = vmatpush1.msra.mxu0 0.0
      %3559 = vmatprep.subr.mxu0 0.0
      %3560 = vmatpush1.msra.mxu0 0.0
      %3561 = vmatprep.subr.mxu0 0.0
      %3562 = vmatpush1.msra.mxu0 0.0
      %3563 = vmatprep.subr.mxu0 0.0
      %3564 = vmatpush1.msra.mxu0 0.0
      %3565 = vmatprep.subr.mxu0 0.0
      %3566 = vmatpush1.msra.mxu0 0.0
      %3567 = vmatprep.subr.mxu0 0.0
      %3568 = vmatpush1.msra.mxu0 0.0
      %3569 = vmatprep.mubr.f32.mxu0 0.0
      %3570 = vmatmul.mubr.f32.gmra.mrb[0].mxu0 %v3393
      %v3571 = vpop.f32.mrb[0].mxu0
      %v3572 = vadd.f32 %v3501, %v3571
      %v3573 = vpop.f32.mrb[0].mxu0
      %3574 = vmatprep.mubr.f32.mxu0 0.0
      %3575 = vmatmul.mubr.f32.gmra.mrb[0].mxu0 %v3396
      %v3576 = vpop.f32.mrb[0].mxu0
      %v3577 = vadd.f32 %v3502, %v3576
      %v3578 = vpop.f32.mrb[0].mxu0
      %3579 = vmatprep.mubr.f32.mxu0 0.0
      %3580 = vmatmul.mubr.f32.gmra.mrb[0].mxu0 %v3399
      %v3581 = vpop.f32.mrb[0].mxu0
      %v3582 = vadd.f32 %v3503, %v3581
      %v3583 = vpop.f32.mrb[0].mxu0
      %3584 = vmatprep.mubr.f32.mxu0 0.0
      %3585 = vmatmul.mubr.f32.gmra.mrb[0].mxu0 %v3402
      %v3586 = vpop.f32.mrb[0].mxu0
      %v3587 = vadd.f32 %v3504, %v3586
      %v3588 = vpop.f32.mrb[0].mxu0
      %3589 = vdwg.mxu0
      %v3590 = vld [vmem:[#allocation2 + $0x18] sm:$0xff]
      %v3591 = vld [vmem:[#allocation2 + $0x38] sm:$0xff]
      %v3592 = vld [vmem:[#allocation2 + $0x58] sm:$0xff]
      %v3593 = vld [vmem:[#allocation2 + $0x78] sm:$0xff]
      %v3594 = vmul.f32 %v3360, 16.0
      %v3595 = vmul.f32 %v3361, 16.0
      %v3596 = vmul.f32 %v3362, 16.0
      %v3597 = vmul.f32 %v3363, 16.0
      %3599 = vset.pattern.permute.xlu0 0
      %3600 = vperm.xlu0 %3599, %v3594
      %v3601 = vpop.permute.xlu0 %3600
      %3604 = vset.pattern.permute.xlu0 0
      %3605 = vperm.xlu0 %3604, %v3595
      %v3606 = vpop.permute.xlu0 %3605
      %3609 = vset.pattern.permute.xlu0 0
      %3610 = vperm.xlu0 %3609, %v3596
      %v3611 = vpop.permute.xlu0 %3610
      %3614 = vset.pattern.permute.xlu0 0
      %3615 = vperm.xlu0 %3614, %v3597
      %v3616 = vpop.permute.xlu0 %3615
      %3618 = vmatprep.subr.mxu0 0.0
      %3619 = vmatpush1.msra.mxu0 %v3590
      %3620 = vmatprep.subr.mxu0 0.0
      %3621 = vmatpush1.msra.mxu0 %v3591
      %3622 = vmatprep.subr.mxu0 0.0
      %3623 = vmatpush1.msra.mxu0 %v3592
      %3624 = vmatprep.subr.mxu0 0.0
      %3625 = vmatpush1.msra.mxu0 %v3593
      %3626 = vmatprep.subr.mxu0 0.0
      %3627 = vmatpush1.msra.mxu0 0.0
      %3628 = vmatprep.subr.mxu0 0.0
      %3629 = vmatpush1.msra.mxu0 0.0
      %3630 = vmatprep.subr.mxu0 0.0
      %3631 = vmatpush1.msra.mxu0 0.0
      %3632 = vmatprep.subr.mxu0 0.0
      %3633 = vmatpush1.msra.mxu0 0.0
      %3634 = vmatprep.subr.mxu0 0.0
      %3635 = vmatpush1.msra.mxu0 0.0
      %3636 = vmatprep.subr.mxu0 0.0
      %3637 = vmatpush1.msra.mxu0 0.0
      %3638 = vmatprep.subr.mxu0 0.0
      %3639 = vmatpush1.msra.mxu0 0.0
      %3640 = vmatprep.subr.mxu0 0.0
      %3641 = vmatpush1.msra.mxu0 0.0
      %3642 = vmatprep.subr.mxu0 0.0
      %3643 = vmatpush1.msra.mxu0 0.0
      %3644 = vmatprep.subr.mxu0 0.0
      %3645 = vmatpush1.msra.mxu0 0.0
      %3646 = vmatprep.subr.mxu0 0.0
      %3647 = vmatpush1.msra.mxu0 0.0
      %3648 = vmatprep.subr.mxu0 0.0
      %3649 = vmatpush1.msra.mxu0 0.0
      %3650 = vmatprep.subr.mxu0 0.0
      %3651 = vmatpush1.msra.mxu0 0.0
      %3652 = vmatprep.subr.mxu0 0.0
      %3653 = vmatpush1.msra.mxu0 0.0
      %3654 = vmatprep.subr.mxu0 0.0
      %3655 = vmatpush1.msra.mxu0 0.0
      %3656 = vmatprep.subr.mxu0 0.0
      %3657 = vmatpush1.msra.mxu0 0.0
      %3658 = vmatprep.subr.mxu0 0.0
      %3659 = vmatpush1.msra.mxu0 0.0
      %3660 = vmatprep.subr.mxu0 0.0
      %3661 = vmatpush1.msra.mxu0 0.0
      %3662 = vmatprep.subr.mxu0 0.0
      %3663 = vmatpush1.msra.mxu0 0.0
      %3664 = vmatprep.subr.mxu0 0.0
      %3665 = vmatpush1.msra.mxu0 0.0
      %3666 = vmatprep.subr.mxu0 0.0
      %3667 = vmatpush1.msra.mxu0 0.0
      %3668 = vmatprep.subr.mxu0 0.0
      %3669 = vmatpush1.msra.mxu0 0.0
      %3670 = vmatprep.subr.mxu0 0.0
      %3671 = vmatpush1.msra.mxu0 0.0
      %3672 = vmatprep.subr.mxu0 0.0
      %3673 = vmatpush1.msra.mxu0 0.0
      %3674 = vmatprep.subr.mxu0 0.0
      %3675 = vmatpush1.msra.mxu0 0.0
      %3676 = vmatprep.subr.mxu0 0.0
      %3677 = vmatpush1.msra.mxu0 0.0
      %3678 = vmatprep.subr.mxu0 0.0
      %3679 = vmatpush1.msra.mxu0 0.0
      %3680 = vmatprep.subr.mxu0 0.0
      %3681 = vmatpush1.msra.mxu0 0.0
      %3682 = vmatprep.mubr.f32.mxu0 0.0
      %3683 = vmatmul.mubr.f32.gmra.mrb[0].mxu0 %v3393
      %v3684 = vpop.f32.mrb[0].mxu0
      %v3685 = vadd.f32 %v3601, %v3684
      %v3686 = vpop.f32.mrb[0].mxu0
      %3687 = vmatprep.mubr.f32.mxu0 0.0
      %3688 = vmatmul.mubr.f32.gmra.mrb[0].mxu0 %v3396
      %v3689 = vpop.f32.mrb[0].mxu0
      %v3690 = vadd.f32 %v3606, %v3689
      %v3691 = vpop.f32.mrb[0].mxu0
      %3692 = vmatprep.mubr.f32.mxu0 0.0
      %3693 = vmatmul.mubr.f32.gmra.mrb[0].mxu0 %v3399
      %v3694 = vpop.f32.mrb[0].mxu0
      %v3695 = vadd.f32 %v3611, %v3694
      %v3696 = vpop.f32.mrb[0].mxu0
      %3697 = vmatprep.mubr.f32.mxu0 0.0
      %3698 = vmatmul.mubr.f32.gmra.mrb[0].mxu0 %v3402
      %v3699 = vpop.f32.mrb[0].mxu0
      %v3700 = vadd.f32 %v3616, %v3699
      %v3701 = vpop.f32.mrb[0].mxu0
      %3702 = vdwg.mxu0
      %3704 = vset.pattern.permute.xlu0 0
      %3705 = vperm.xlu0 %3704, %v3365
      %v3706 = vpop.permute.xlu0 %3705
      %3709 = vset.pattern.permute.xlu0 0
      %3710 = vperm.xlu0 %3709, %v3366
      %v3711 = vpop.permute.xlu0 %3710
      %3714 = vset.pattern.permute.xlu0 0
      %3715 = vperm.xlu0 %3714, %v3367
      %v3716 = vpop.permute.xlu0 %3715
      %3719 = vset.pattern.permute.xlu0 0
      %3720 = vperm.xlu0 %3719, %v3368
      %v3721 = vpop.permute.xlu0 %3720
      %v3723 = vmul.f32 %v3706, %v3685
      %v3724 = vmul.f32 %v3711, %v3690
      %v3725 = vmul.f32 %v3716, %v3695
      %v3726 = vmul.f32 %v3721, %v3700
      %v3727 = vld [vmem:[%s450] sm:$0xff]
      %v3728 = vld [vmem:[%s450 + $0x8] sm:$0xff]
      %v3729 = vld [vmem:[%s450 + $0x10] sm:$0xff]
      %v3730 = vld [vmem:[%s450 + $0x18] sm:$0xff]
      %v3731 = vadd.f32 %v3572, %v3723
      %v3732 = vadd.f32 %v3577, %v3724
      %v3733 = vadd.f32 %v3582, %v3725
      %v3734 = vadd.f32 %v3587, %v3726
      %v3735 = vadd.f32 %v3727, %v3731
      %v3736 = vadd.f32 %v3728, %v3732
      %v3737 = vadd.f32 %v3729, %v3733
      %v3738 = vadd.f32 %v3730, %v3734
      %3739 = vst [vmem:[%s450] sm:$0xff] %v3735
      %3740 = vst [vmem:[%s450 + $0x8] sm:$0xff] %v3736
      %3741 = vst [vmem:[%s450 + $0x10] sm:$0xff] %v3737
      %3742 = vst [vmem:[%s450 + $0x18] sm:$0xff] %v3738
      %s3743 = scalar_lea.vmem %s1, 8
      %v3744 = vld [vmem:[%s3743] sm:$0xf]
      %s3745 = scalar_lea.vmem %s2, 8
      %v3746 = vld [vmem:[%s3745] sm:$0xf]
      %3748 = vset.pattern.permute.xlu0 0
      %3749 = vperm.xlu0 %3748, %v3746
      %v3750 = vpop.permute.xlu0 %3749
      %v3753 = vsel %vm850, %v3744, 0
      %3755 = vmatprep.subr.mxu0 0.0
      %3756 = vmatpush1.xpose.msra.mxu0 %v1212
      %3757 = vmatprep.subr.mxu0 0.0
      %3758 = vmatpush1.xpose.msra.mxu0 %v1215
      %3759 = vmatprep.subr.mxu0 0.0
      %3760 = vmatpush1.xpose.msra.mxu0 0.0
      %3761 = vmatprep.subr.mxu0 0.0
      %3762 = vmatpush1.xpose.msra.mxu0 0.0
      %3763 = vmatprep.subr.mxu0 0.0
      %3764 = vmatpush1.xpose.msra.mxu0 0.0
      %3765 = vmatprep.subr.mxu0 0.0
      %3766 = vmatpush1.xpose.msra.mxu0 0.0
      %3767 = vmatprep.subr.mxu0 0.0
      %3768 = vmatpush1.xpose.msra.mxu0 0.0
      %3769 = vmatprep.subr.mxu0 0.0
      %3770 = vmatpush1.xpose.msra.mxu0 0.0
      %3771 = vmatprep.subr.mxu0 0.0
      %3772 = vmatpush1.xpose.msra.mxu0 0.0
      %3773 = vmatprep.subr.mxu0 0.0
      %3774 = vmatpush1.xpose.msra.mxu0 0.0
      %3775 = vmatprep.subr.mxu0 0.0
      %3776 = vmatpush1.xpose.msra.mxu0 0.0
      %3777 = vmatprep.subr.mxu0 0.0
      %3778 = vmatpush1.xpose.msra.mxu0 0.0
      %3779 = vmatprep.subr.mxu0 0.0
      %3780 = vmatpush1.xpose.msra.mxu0 0.0
      %3781 = vmatprep.subr.mxu0 0.0
      %3782 = vmatpush1.xpose.msra.mxu0 0.0
      %3783 = vmatprep.subr.mxu0 0.0
      %3784 = vmatpush1.xpose.msra.mxu0 0.0
      %3785 = vmatprep.subr.mxu0 0.0
      %3786 = vmatpush1.xpose.msra.mxu0 0.0
      %3787 = vmatprep.subr.mxu0 0.0
      %3788 = vmatpush1.xpose.msra.mxu0 0.0
      %3789 = vmatprep.subr.mxu0 0.0
      %3790 = vmatpush1.xpose.msra.mxu0 0.0
      %3791 = vmatprep.subr.mxu0 0.0
      %3792 = vmatpush1.xpose.msra.mxu0 0.0
      %3793 = vmatprep.subr.mxu0 0.0
      %3794 = vmatpush1.xpose.msra.mxu0 0.0
      %3795 = vmatprep.subr.mxu0 0.0
      %3796 = vmatpush1.xpose.msra.mxu0 0.0
      %3797 = vmatprep.subr.mxu0 0.0
      %3798 = vmatpush1.xpose.msra.mxu0 0.0
      %3799 = vmatprep.subr.mxu0 0.0
      %3800 = vmatpush1.xpose.msra.mxu0 0.0
      %3801 = vmatprep.subr.mxu0 0.0
      %3802 = vmatpush1.xpose.msra.mxu0 0.0
      %3803 = vmatprep.subr.mxu0 0.0
      %3804 = vmatpush1.xpose.msra.mxu0 0.0
      %3805 = vmatprep.subr.mxu0 0.0
      %3806 = vmatpush1.xpose.msra.mxu0 0.0
      %3807 = vmatprep.subr.mxu0 0.0
      %3808 = vmatpush1.xpose.msra.mxu0 0.0
      %3809 = vmatprep.subr.mxu0 0.0
      %3810 = vmatpush1.xpose.msra.mxu0 0.0
      %3811 = vmatprep.subr.mxu0 0.0
      %3812 = vmatpush1.xpose.msra.mxu0 0.0
      %3813 = vmatprep.subr.mxu0 0.0
      %3814 = vmatpush1.xpose.msra.mxu0 0.0
      %3815 = vmatprep.subr.mxu0 0.0
      %3816 = vmatpush1.xpose.msra.mxu0 0.0
      %3817 = vmatprep.subr.mxu0 0.0
      %3818 = vmatpush1.xpose.msra.mxu0 0.0
      %3819 = vmatprep.mubr.f32.mxu0 0.0
      %3820 = vmatmul.mubr.f32.gmra.mrb[0].mxu0 %v3753
      %v3821 = vpop.f32.mrb[0].mxu0
      %v3822 = vadd.f32 %v3750, %v3821
      %v3823 = vpop.f32.mrb[0].mxu0
      %3824 = vdwg.mxu0
      %s3825 = scalar_lea.vmem %s3, 8
      %v3826 = vld [vmem:[%s3825] sm:$0xf]
      %s3827 = scalar_lea.vmem %s4, 2
      %v3828 = vld [vmem:[%s3827] sm:$0x1]
      %v3830 = vlaneseq
      %v3831 = vshrl.u32 %v3830, 7
      %v3832 = vsub.s32 0, %v3831
      %v3833 = vrot.slane %v3828, %v3832
      %v3836 = vsel %vm850, %v3826, 0
      %3838 = vmatprep.subr.mxu0 0.0
      %3839 = vmatpush1.xpose.msra.mxu0 %v3836
      %3840 = vmatprep.subr.mxu0 0.0
      %3841 = vmatpush1.xpose.msra.mxu0 0.0
      %3842 = vmatprep.subr.mxu0 0.0
      %3843 = vmatpush1.xpose.msra.mxu0 0.0
      %3844 = vmatprep.subr.mxu0 0.0
      %3845 = vmatpush1.xpose.msra.mxu0 0.0
      %3846 = vmatprep.subr.mxu0 0.0
      %3847 = vmatpush1.xpose.msra.mxu0 0.0
      %3848 = vmatprep.subr.mxu0 0.0
      %3849 = vmatpush1.xpose.msra.mxu0 0.0
      %3850 = vmatprep.subr.mxu0 0.0
      %3851 = vmatpush1.xpose.msra.mxu0 0.0
      %3852 = vmatprep.subr.mxu0 0.0
      %3853 = vmatpush1.xpose.msra.mxu0 0.0
      %3854 = vmatprep.subr.mxu0 0.0
      %3855 = vmatpush1.xpose.msra.mxu0 0.0
      %3856 = vmatprep.subr.mxu0 0.0
      %3857 = vmatpush1.xpose.msra.mxu0 0.0
      %3858 = vmatprep.subr.mxu0 0.0
      %3859 = vmatpush1.xpose.msra.mxu0 0.0
      %3860 = vmatprep.subr.mxu0 0.0
      %3861 = vmatpush1.xpose.msra.mxu0 0.0
      %3862 = vmatprep.subr.mxu0 0.0
      %3863 = vmatpush1.xpose.msra.mxu0 0.0
      %3864 = vmatprep.subr.mxu0 0.0
      %3865 = vmatpush1.xpose.msra.mxu0 0.0
      %3866 = vmatprep.subr.mxu0 0.0
      %3867 = vmatpush1.xpose.msra.mxu0 0.0
      %3868 = vmatprep.subr.mxu0 0.0
      %3869 = vmatpush1.xpose.msra.mxu0 0.0
      %3870 = vmatprep.subr.mxu0 0.0
      %3871 = vmatpush1.xpose.msra.mxu0 0.0
      %3872 = vmatprep.subr.mxu0 0.0
      %3873 = vmatpush1.xpose.msra.mxu0 0.0
      %3874 = vmatprep.subr.mxu0 0.0
      %3875 = vmatpush1.xpose.msra.mxu0 0.0
      %3876 = vmatprep.subr.mxu0 0.0
      %3877 = vmatpush1.xpose.msra.mxu0 0.0
      %3878 = vmatprep.subr.mxu0 0.0
      %3879 = vmatpush1.xpose.msra.mxu0 0.0
      %3880 = vmatprep.subr.mxu0 0.0
      %3881 = vmatpush1.xpose.msra.mxu0 0.0
      %3882 = vmatprep.subr.mxu0 0.0
      %3883 = vmatpush1.xpose.msra.mxu0 0.0
      %3884 = vmatprep.subr.mxu0 0.0
      %3885 = vmatpush1.xpose.msra.mxu0 0.0
      %3886 = vmatprep.subr.mxu0 0.0
      %3887 = vmatpush1.xpose.msra.mxu0 0.0
      %3888 = vmatprep.subr.mxu0 0.0
      %3889 = vmatpush1.xpose.msra.mxu0 0.0
      %3890 = vmatprep.subr.mxu0 0.0
      %3891 = vmatpush1.xpose.msra.mxu0 0.0
      %3892 = vmatprep.subr.mxu0 0.0
      %3893 = vmatpush1.xpose.msra.mxu0 0.0
      %3894 = vmatprep.subr.mxu0 0.0
      %3895 = vmatpush1.xpose.msra.mxu0 0.0
      %3896 = vmatprep.subr.mxu0 0.0
      %3897 = vmatpush1.xpose.msra.mxu0 0.0
      %3898 = vmatprep.subr.mxu0 0.0
      %3899 = vmatpush1.xpose.msra.mxu0 0.0
      %3900 = vmatprep.subr.mxu0 0.0
      %3901 = vmatpush1.xpose.msra.mxu0 0.0
      %3902 = vmatprep.mubr.f32.mxu0 0.0
      %3903 = vmatmul.mubr.f32.gmra.mrb[0].mxu0 %v1212
      %v3904 = vpop.f32.mrb[0].mxu0
      %v3905 = vadd.f32 %v3833, %v3904
      %v3906 = vpop.f32.mrb[0].mxu0
      %3907 = vmatprep.mubr.f32.mxu0 0.0
      %3908 = vmatmul.mubr.f32.gmra.mrb[0].mxu0 %v1215
      %v3909 = vpop.f32.mrb[0].mxu0
      %v3910 = vadd.f32 %v3833, %v3909
      %v3911 = vpop.f32.mrb[0].mxu0
      %3912 = vdwg.mxu0
      %v3913 = vlaneseq
      %v3914 = vshrl.u32 %v3913, 7
      %v3915 = vsub.s32 0, %v3914
      %v3916 = vrot.slane %v3822, %v3915
      %3918 = vset.pattern.permute.xlu0 0
      %3919 = vperm.xlu0 %3918, %v3905
      %v3920 = vpop.permute.xlu0 %3919
      %3923 = vset.pattern.permute.xlu0 0
      %3924 = vperm.xlu0 %3923, %v3910
      %v3925 = vpop.permute.xlu0 %3924
      %v3927 = vsub.f32 %v3916, %v3920
      %v3928 = vsub.f32 %v3916, %v3925
      %v3929 = vtanh.pop %v3927
      %v3930 = vtanh.pop %v3928
      %3933 = vrot.lane.b32.xlu0 %v3929, 16
      %v3934 = vpop.permute.xlu0 %3933
      %3935 = vrot.lane.b32.xlu0 %v3930, 16
      %v3936 = vpop.permute.xlu0 %3935
      %3939 = vrot.lane.b32.xlu0 %v3929, 32
      %v3940 = vpop.permute.xlu0 %3939
      %3941 = vrot.lane.b32.xlu0 %v3930, 32
      %v3942 = vpop.permute.xlu0 %3941
      %3945 = vrot.lane.b32.xlu0 %v3929, 48
      %v3946 = vpop.permute.xlu0 %3945
      %3947 = vrot.lane.b32.xlu0 %v3930, 48
      %v3948 = vpop.permute.xlu0 %3947
      %3951 = vrot.lane.b32.xlu0 %v3929, 64
      %v3952 = vpop.permute.xlu0 %3951
      %3953 = vrot.lane.b32.xlu0 %v3930, 64
      %v3954 = vpop.permute.xlu0 %3953
      %3957 = vrot.lane.b32.xlu0 %v3929, 80
      %v3958 = vpop.permute.xlu0 %3957
      %3959 = vrot.lane.b32.xlu0 %v3930, 80
      %v3960 = vpop.permute.xlu0 %3959
      %3963 = vrot.lane.b32.xlu0 %v3929, 96
      %v3964 = vpop.permute.xlu0 %3963
      %3965 = vrot.lane.b32.xlu0 %v3930, 96
      %v3966 = vpop.permute.xlu0 %3965
      %3969 = vrot.lane.b32.xlu0 %v3929, 112
      %v3970 = vpop.permute.xlu0 %3969
      %3971 = vrot.lane.b32.xlu0 %v3930, 112
      %v3972 = vpop.permute.xlu0 %3971
      %v3975 = vsel %vm1435, %v3929, %v3934
      %v3976 = vsel %vm1435, %v3930, %v3936
      %v3977 = vsel %vm850, %v3975, %v3940
      %v3978 = vsel %vm850, %v3976, %v3942
      %v3979 = vsel %vm1440, %v3977, %v3946
      %v3980 = vsel %vm1440, %v3978, %v3948
      %v3981 = vsel %vm1443, %v3979, %v3952
      %v3982 = vsel %vm1443, %v3980, %v3954
      %v3983 = vsel %vm1446, %v3981, %v3958
      %v3984 = vsel %vm1446, %v3982, %v3960
      %v3985 = vsel %vm1449, %v3983, %v3964
      %v3986 = vsel %vm1449, %v3984, %v3966
      %v3987 = vsel %vm1452, %v3985, %v3970
      %v3988 = vsel %vm1452, %v3986, %v3972
      %v3989 = vmul.f32 %v796, %v3987
      %v3990 = vmul.f32 %v797, %v3988
      %v3991 = vmul.f32 %v798, %v3987
      %v3992 = vmul.f32 %v799, %v3988
      %v3993 = vmul.f32 %v800, %v3987
      %v3994 = vmul.f32 %v801, %v3988
      %v3995 = vmul.f32 %v802, %v3987
      %v3996 = vmul.f32 %v803, %v3988
      %v3997 = vmul.f32 %v804, %v3987
      %v3998 = vmul.f32 %v805, %v3988
      %v3999 = vmul.f32 %v806, %v3987
      %v4000 = vmul.f32 %v807, %v3988
      %v4001 = vmul.f32 %v808, %v3987
      %v4002 = vmul.f32 %v809, %v3988
      %v4003 = vmul.f32 %v810, %v3987
      %v4004 = vmul.f32 %v811, %v3988
      %4005 = vmatprep.subr.mxu0 0.0
      %4006 = vmatpush1.msra.mxu0 %v3989
      %4007 = vmatprep.subr.mxu0 0.0
      %4008 = vmatpush1.msra.mxu0 %v3990
      %4009 = vmatprep.subr.mxu0 0.0
      %4010 = vmatpush1.msra.mxu0 %v3991
      %4011 = vmatprep.subr.mxu0 0.0
      %4012 = vmatpush1.msra.mxu0 %v3992
      %4013 = vmatprep.subr.mxu0 0.0
      %4014 = vmatpush1.msra.mxu0 %v3993
      %4015 = vmatprep.subr.mxu0 0.0
      %4016 = vmatpush1.msra.mxu0 %v3994
      %4017 = vmatprep.subr.mxu0 0.0
      %4018 = vmatpush1.msra.mxu0 %v3995
      %4019 = vmatprep.subr.mxu0 0.0
      %4020 = vmatpush1.msra.mxu0 %v3996
      %4021 = vmatprep.subr.mxu0 0.0
      %4022 = vmatpush1.msra.mxu0 %v3997
      %4023 = vmatprep.subr.mxu0 0.0
      %4024 = vmatpush1.msra.mxu0 %v3998
      %4025 = vmatprep.subr.mxu0 0.0
      %4026 = vmatpush1.msra.mxu0 %v3999
      %4027 = vmatprep.subr.mxu0 0.0
      %4028 = vmatpush1.msra.mxu0 %v4000
      %4029 = vmatprep.subr.mxu0 0.0
      %4030 = vmatpush1.msra.mxu0 %v4001
      %4031 = vmatprep.subr.mxu0 0.0
      %4032 = vmatpush1.msra.mxu0 %v4002
      %4033 = vmatprep.subr.mxu0 0.0
      %4034 = vmatpush1.msra.mxu0 %v4003
      %4035 = vmatprep.subr.mxu0 0.0
      %4036 = vmatpush1.msra.mxu0 %v4004
      %4037 = vmatprep.subr.mxu0 0.0
      %4038 = vmatpush1.msra.mxu0 0.0
      %4039 = vmatprep.subr.mxu0 0.0
      %4040 = vmatpush1.msra.mxu0 0.0
      %4041 = vmatprep.subr.mxu0 0.0
      %4042 = vmatpush1.msra.mxu0 0.0
      %4043 = vmatprep.subr.mxu0 0.0
      %4044 = vmatpush1.msra.mxu0 0.0
      %4045 = vmatprep.subr.mxu0 0.0
      %4046 = vmatpush1.msra.mxu0 0.0
      %4047 = vmatprep.subr.mxu0 0.0
      %4048 = vmatpush1.msra.mxu0 0.0
      %4049 = vmatprep.subr.mxu0 0.0
      %4050 = vmatpush1.msra.mxu0 0.0
      %4051 = vmatprep.subr.mxu0 0.0
      %4052 = vmatpush1.msra.mxu0 0.0
      %4053 = vmatprep.subr.mxu0 0.0
      %4054 = vmatpush1.msra.mxu0 0.0
      %4055 = vmatprep.subr.mxu0 0.0
      %4056 = vmatpush1.msra.mxu0 0.0
      %4057 = vmatprep.subr.mxu0 0.0
      %4058 = vmatpush1.msra.mxu0 0.0
      %4059 = vmatprep.subr.mxu0 0.0
      %4060 = vmatpush1.msra.mxu0 0.0
      %4061 = vmatprep.subr.mxu0 0.0
      %4062 = vmatpush1.msra.mxu0 0.0
      %4063 = vmatprep.subr.mxu0 0.0
      %4064 = vmatpush1.msra.mxu0 0.0
      %4065 = vmatprep.subr.mxu0 0.0
      %4066 = vmatpush1.msra.mxu0 0.0
      %4067 = vmatprep.subr.mxu0 0.0
      %4068 = vmatpush1.msra.mxu0 0.0
      %4069 = vmatprep.mubr.f32.mxu0 0.0
      %4070 = vmatmul.mubr.f32.gmra.mrb[0].mxu0 %v3471
      %v4071 = vpop.f32.mrb[0].mxu0
      %v4072 = vadd.f32 0.0, %v4071
      %v4073 = vpop.f32.mrb[0].mxu0
      %4074 = vmatprep.mubr.f32.mxu0 0.0
      %4075 = vmatmul.mubr.f32.gmra.mrb[0].mxu0 %v3476
      %v4076 = vpop.f32.mrb[0].mxu0
      %v4077 = vadd.f32 0.0, %v4076
      %v4078 = vpop.f32.mrb[0].mxu0
      %4079 = vdwg.mxu0
      %4081 = vset.pattern.permute.xlu0 0
      %4082 = vperm.xlu0 %4081, %v3370
      %v4083 = vpop.permute.xlu0 %4082
      %4086 = vset.pattern.permute.xlu0 0
      %4087 = vperm.xlu0 %4086, %v3371
      %v4088 = vpop.permute.xlu0 %4087
      %v4090 = vmul.f32 %v4083, %v4072
      %v4091 = vmul.f32 %v4088, %v4077
      %v4092 = vadd.f32 %v4090, 0.0
      %v4093 = vadd.f32 %v4091, 0.0
      %v4094 = vlaneseq
      %v4095 = vshrl.u32 %v4094, 7
      %v4096 = vsub.s32 1, %v4095
      %v4097 = vrot.slane %v3822, %v4096
      %4098 = vset.pattern.permute.xlu0 1
      %4099 = vperm.xlu0 %4098, %v3905
      %v4100 = vpop.permute.xlu0 %4099
      %4102 = vset.pattern.permute.xlu0 1
      %4103 = vperm.xlu0 %4102, %v3910
      %v4104 = vpop.permute.xlu0 %4103
      %v4106 = vsub.f32 %v4097, %v4100
      %v4107 = vsub.f32 %v4097, %v4104
      %v4108 = vtanh.pop %v4106
      %v4109 = vtanh.pop %v4107
      %4112 = vrot.lane.b32.xlu0 %v4108, 16
      %v4113 = vpop.permute.xlu0 %4112
      %4114 = vrot.lane.b32.xlu0 %v4109, 16
      %v4115 = vpop.permute.xlu0 %4114
      %4118 = vrot.lane.b32.xlu0 %v4108, 32
      %v4119 = vpop.permute.xlu0 %4118
      %4120 = vrot.lane.b32.xlu0 %v4109, 32
      %v4121 = vpop.permute.xlu0 %4120
      %4124 = vrot.lane.b32.xlu0 %v4108, 48
      %v4125 = vpop.permute.xlu0 %4124
      %4126 = vrot.lane.b32.xlu0 %v4109, 48
      %v4127 = vpop.permute.xlu0 %4126
      %4130 = vrot.lane.b32.xlu0 %v4108, 64
      %v4131 = vpop.permute.xlu0 %4130
      %4132 = vrot.lane.b32.xlu0 %v4109, 64
      %v4133 = vpop.permute.xlu0 %4132
      %4136 = vrot.lane.b32.xlu0 %v4108, 80
      %v4137 = vpop.permute.xlu0 %4136
      %4138 = vrot.lane.b32.xlu0 %v4109, 80
      %v4139 = vpop.permute.xlu0 %4138
      %4142 = vrot.lane.b32.xlu0 %v4108, 96
      %v4143 = vpop.permute.xlu0 %4142
      %4144 = vrot.lane.b32.xlu0 %v4109, 96
      %v4145 = vpop.permute.xlu0 %4144
      %4148 = vrot.lane.b32.xlu0 %v4108, 112
      %v4149 = vpop.permute.xlu0 %4148
      %4150 = vrot.lane.b32.xlu0 %v4109, 112
      %v4151 = vpop.permute.xlu0 %4150
      %v4154 = vsel %vm1435, %v4108, %v4113
      %v4155 = vsel %vm1435, %v4109, %v4115
      %v4156 = vsel %vm850, %v4154, %v4119
      %v4157 = vsel %vm850, %v4155, %v4121
      %v4158 = vsel %vm1440, %v4156, %v4125
      %v4159 = vsel %vm1440, %v4157, %v4127
      %v4160 = vsel %vm1443, %v4158, %v4131
      %v4161 = vsel %vm1443, %v4159, %v4133
      %v4162 = vsel %vm1446, %v4160, %v4137
      %v4163 = vsel %vm1446, %v4161, %v4139
      %v4164 = vsel %vm1449, %v4162, %v4143
      %v4165 = vsel %vm1449, %v4163, %v4145
      %v4166 = vsel %vm1452, %v4164, %v4149
      %v4167 = vsel %vm1452, %v4165, %v4151
      %v4168 = vmul.f32 %v796, %v4166
      %v4169 = vmul.f32 %v797, %v4167
      %v4170 = vmul.f32 %v798, %v4166
      %v4171 = vmul.f32 %v799, %v4167
      %v4172 = vmul.f32 %v800, %v4166
      %v4173 = vmul.f32 %v801, %v4167
      %v4174 = vmul.f32 %v802, %v4166
      %v4175 = vmul.f32 %v803, %v4167
      %v4176 = vmul.f32 %v804, %v4166
      %v4177 = vmul.f32 %v805, %v4167
      %v4178 = vmul.f32 %v806, %v4166
      %v4179 = vmul.f32 %v807, %v4167
      %v4180 = vmul.f32 %v808, %v4166
      %v4181 = vmul.f32 %v809, %v4167
      %v4182 = vmul.f32 %v810, %v4166
      %v4183 = vmul.f32 %v811, %v4167
      %4184 = vmatprep.subr.mxu0 0.0
      %4185 = vmatpush1.msra.mxu0 %v4168
      %4186 = vmatprep.subr.mxu0 0.0
      %4187 = vmatpush1.msra.mxu0 %v4169
      %4188 = vmatprep.subr.mxu0 0.0
      %4189 = vmatpush1.msra.mxu0 %v4170
      %4190 = vmatprep.subr.mxu0 0.0
      %4191 = vmatpush1.msra.mxu0 %v4171
      %4192 = vmatprep.subr.mxu0 0.0
      %4193 = vmatpush1.msra.mxu0 %v4172
      %4194 = vmatprep.subr.mxu0 0.0
      %4195 = vmatpush1.msra.mxu0 %v4173
      %4196 = vmatprep.subr.mxu0 0.0
      %4197 = vmatpush1.msra.mxu0 %v4174
      %4198 = vmatprep.subr.mxu0 0.0
      %4199 = vmatpush1.msra.mxu0 %v4175
      %4200 = vmatprep.subr.mxu0 0.0
      %4201 = vmatpush1.msra.mxu0 %v4176
      %4202 = vmatprep.subr.mxu0 0.0
      %4203 = vmatpush1.msra.mxu0 %v4177
      %4204 = vmatprep.subr.mxu0 0.0
      %4205 = vmatpush1.msra.mxu0 %v4178
      %4206 = vmatprep.subr.mxu0 0.0
      %4207 = vmatpush1.msra.mxu0 %v4179
      %4208 = vmatprep.subr.mxu0 0.0
      %4209 = vmatpush1.msra.mxu0 %v4180
      %4210 = vmatprep.subr.mxu0 0.0
      %4211 = vmatpush1.msra.mxu0 %v4181
      %4212 = vmatprep.subr.mxu0 0.0
      %4213 = vmatpush1.msra.mxu0 %v4182
      %4214 = vmatprep.subr.mxu0 0.0
      %4215 = vmatpush1.msra.mxu0 %v4183
      %4216 = vmatprep.subr.mxu0 0.0
      %4217 = vmatpush1.msra.mxu0 0.0
      %4218 = vmatprep.subr.mxu0 0.0
      %4219 = vmatpush1.msra.mxu0 0.0
      %4220 = vmatprep.subr.mxu0 0.0
      %4221 = vmatpush1.msra.mxu0 0.0
      %4222 = vmatprep.subr.mxu0 0.0
      %4223 = vmatpush1.msra.mxu0 0.0
      %4224 = vmatprep.subr.mxu0 0.0
      %4225 = vmatpush1.msra.mxu0 0.0
      %4226 = vmatprep.subr.mxu0 0.0
      %4227 = vmatpush1.msra.mxu0 0.0
      %4228 = vmatprep.subr.mxu0 0.0
      %4229 = vmatpush1.msra.mxu0 0.0
      %4230 = vmatprep.subr.mxu0 0.0
      %4231 = vmatpush1.msra.mxu0 0.0
      %4232 = vmatprep.subr.mxu0 0.0
      %4233 = vmatpush1.msra.mxu0 0.0
      %4234 = vmatprep.subr.mxu0 0.0
      %4235 = vmatpush1.msra.mxu0 0.0
      %4236 = vmatprep.subr.mxu0 0.0
      %4237 = vmatpush1.msra.mxu0 0.0
      %4238 = vmatprep.subr.mxu0 0.0
      %4239 = vmatpush1.msra.mxu0 0.0
      %4240 = vmatprep.subr.mxu0 0.0
      %4241 = vmatpush1.msra.mxu0 0.0
      %4242 = vmatprep.subr.mxu0 0.0
      %4243 = vmatpush1.msra.mxu0 0.0
      %4244 = vmatprep.subr.mxu0 0.0
      %4245 = vmatpush1.msra.mxu0 0.0
      %4246 = vmatprep.subr.mxu0 0.0
      %4247 = vmatpush1.msra.mxu0 0.0
      %4248 = vmatprep.mubr.f32.mxu0 0.0
      %4249 = vmatmul.mubr.f32.gmra.mrb[0].mxu0 %v3471
      %v4250 = vpop.f32.mrb[0].mxu0
      %v4251 = vadd.f32 0.0, %v4250
      %v4252 = vpop.f32.mrb[0].mxu0
      %4253 = vmatprep.mubr.f32.mxu0 0.0
      %4254 = vmatmul.mubr.f32.gmra.mrb[0].mxu0 %v3476
      %v4255 = vpop.f32.mrb[0].mxu0
      %v4256 = vadd.f32 0.0, %v4255
      %v4257 = vpop.f32.mrb[0].mxu0
      %4258 = vdwg.mxu0
      %4259 = vset.pattern.permute.xlu0 1
      %4260 = vperm.xlu0 %4259, %v3370
      %v4261 = vpop.permute.xlu0 %4260
      %4263 = vset.pattern.permute.xlu0 1
      %4264 = vperm.xlu0 %4263, %v3371
      %v4265 = vpop.permute.xlu0 %4264
      %v4267 = vmul.f32 %v4261, %v4251
      %v4268 = vmul.f32 %v4265, %v4256
      %v4269 = vadd.f32 %v4092, %v4267
      %v4270 = vadd.f32 %v4093, %v4268
      %v4271 = vld [vmem:[%s450] sm:$0xff]
      %v4272 = vld [vmem:[%s450 + $0x8] sm:$0xff]
      %v4273 = vadd.f32 %v4271, %v4269
      %v4274 = vadd.f32 %v4272, %v4270
      %4275 = vst [vmem:[%s450] sm:$0xff] %v4273
      %4276 = vst [vmem:[%s450 + $0x8] sm:$0xff] %v4274
      %v4277 = vlaneseq
      %v4278 = vshrl.u32 %v4277, 7
      %v4279 = vsub.s32 2, %v4278
      %v4280 = vrot.slane %v3822, %v4279
      %4281 = vset.pattern.permute.xlu0 2
      %4282 = vperm.xlu0 %4281, %v3905
      %v4283 = vpop.permute.xlu0 %4282
      %4285 = vset.pattern.permute.xlu0 2
      %4286 = vperm.xlu0 %4285, %v3910
      %v4287 = vpop.permute.xlu0 %4286
      %v4289 = vsub.f32 %v4280, %v4283
      %v4290 = vsub.f32 %v4280, %v4287
      %v4291 = vtanh.pop %v4289
      %v4292 = vtanh.pop %v4290
      %4295 = vrot.lane.b32.xlu0 %v4291, 16
      %v4296 = vpop.permute.xlu0 %4295
      %4297 = vrot.lane.b32.xlu0 %v4292, 16
      %v4298 = vpop.permute.xlu0 %4297
      %4301 = vrot.lane.b32.xlu0 %v4291, 32
      %v4302 = vpop.permute.xlu0 %4301
      %4303 = vrot.lane.b32.xlu0 %v4292, 32
      %v4304 = vpop.permute.xlu0 %4303
      %4307 = vrot.lane.b32.xlu0 %v4291, 48
      %v4308 = vpop.permute.xlu0 %4307
      %4309 = vrot.lane.b32.xlu0 %v4292, 48
      %v4310 = vpop.permute.xlu0 %4309
      %4313 = vrot.lane.b32.xlu0 %v4291, 64
      %v4314 = vpop.permute.xlu0 %4313
      %4315 = vrot.lane.b32.xlu0 %v4292, 64
      %v4316 = vpop.permute.xlu0 %4315
      %4319 = vrot.lane.b32.xlu0 %v4291, 80
      %v4320 = vpop.permute.xlu0 %4319
      %4321 = vrot.lane.b32.xlu0 %v4292, 80
      %v4322 = vpop.permute.xlu0 %4321
      %4325 = vrot.lane.b32.xlu0 %v4291, 96
      %v4326 = vpop.permute.xlu0 %4325
      %4327 = vrot.lane.b32.xlu0 %v4292, 96
      %v4328 = vpop.permute.xlu0 %4327
      %4331 = vrot.lane.b32.xlu0 %v4291, 112
      %v4332 = vpop.permute.xlu0 %4331
      %4333 = vrot.lane.b32.xlu0 %v4292, 112
      %v4334 = vpop.permute.xlu0 %4333
      %v4337 = vsel %vm1435, %v4291, %v4296
      %v4338 = vsel %vm1435, %v4292, %v4298
      %v4339 = vsel %vm850, %v4337, %v4302
      %v4340 = vsel %vm850, %v4338, %v4304
      %v4341 = vsel %vm1440, %v4339, %v4308
      %v4342 = vsel %vm1440, %v4340, %v4310
      %v4343 = vsel %vm1443, %v4341, %v4314
      %v4344 = vsel %vm1443, %v4342, %v4316
      %v4345 = vsel %vm1446, %v4343, %v4320
      %v4346 = vsel %vm1446, %v4344, %v4322
      %v4347 = vsel %vm1449, %v4345, %v4326
      %v4348 = vsel %vm1449, %v4346, %v4328
      %v4349 = vsel %vm1452, %v4347, %v4332
      %v4350 = vsel %vm1452, %v4348, %v4334
      %v4351 = vmul.f32 %v796, %v4349
      %v4352 = vmul.f32 %v797, %v4350
      %v4353 = vmul.f32 %v798, %v4349
      %v4354 = vmul.f32 %v799, %v4350
      %v4355 = vmul.f32 %v800, %v4349
      %v4356 = vmul.f32 %v801, %v4350
      %v4357 = vmul.f32 %v802, %v4349
      %v4358 = vmul.f32 %v803, %v4350
      %v4359 = vmul.f32 %v804, %v4349
      %v4360 = vmul.f32 %v805, %v4350
      %v4361 = vmul.f32 %v806, %v4349
      %v4362 = vmul.f32 %v807, %v4350
      %v4363 = vmul.f32 %v808, %v4349
      %v4364 = vmul.f32 %v809, %v4350
      %v4365 = vmul.f32 %v810, %v4349
      %v4366 = vmul.f32 %v811, %v4350
      %4367 = vmatprep.subr.mxu0 0.0
      %4368 = vmatpush1.msra.mxu0 %v4351
      %4369 = vmatprep.subr.mxu0 0.0
      %4370 = vmatpush1.msra.mxu0 %v4352
      %4371 = vmatprep.subr.mxu0 0.0
      %4372 = vmatpush1.msra.mxu0 %v4353
      %4373 = vmatprep.subr.mxu0 0.0
      %4374 = vmatpush1.msra.mxu0 %v4354
      %4375 = vmatprep.subr.mxu0 0.0
      %4376 = vmatpush1.msra.mxu0 %v4355
      %4377 = vmatprep.subr.mxu0 0.0
      %4378 = vmatpush1.msra.mxu0 %v4356
      %4379 = vmatprep.subr.mxu0 0.0
      %4380 = vmatpush1.msra.mxu0 %v4357
      %4381 = vmatprep.subr.mxu0 0.0
      %4382 = vmatpush1.msra.mxu0 %v4358
      %4383 = vmatprep.subr.mxu0 0.0
      %4384 = vmatpush1.msra.mxu0 %v4359
      %4385 = vmatprep.subr.mxu0 0.0
      %4386 = vmatpush1.msra.mxu0 %v4360
      %4387 = vmatprep.subr.mxu0 0.0
      %4388 = vmatpush1.msra.mxu0 %v4361
      %4389 = vmatprep.subr.mxu0 0.0
      %4390 = vmatpush1.msra.mxu0 %v4362
      %4391 = vmatprep.subr.mxu0 0.0
      %4392 = vmatpush1.msra.mxu0 %v4363
      %4393 = vmatprep.subr.mxu0 0.0
      %4394 = vmatpush1.msra.mxu0 %v4364
      %4395 = vmatprep.subr.mxu0 0.0
      %4396 = vmatpush1.msra.mxu0 %v4365
      %4397 = vmatprep.subr.mxu0 0.0
      %4398 = vmatpush1.msra.mxu0 %v4366
      %4399 = vmatprep.subr.mxu0 0.0
      %4400 = vmatpush1.msra.mxu0 0.0
      %4401 = vmatprep.subr.mxu0 0.0
      %4402 = vmatpush1.msra.mxu0 0.0
      %4403 = vmatprep.subr.mxu0 0.0
      %4404 = vmatpush1.msra.mxu0 0.0
      %4405 = vmatprep.subr.mxu0 0.0
      %4406 = vmatpush1.msra.mxu0 0.0
      %4407 = vmatprep.subr.mxu0 0.0
      %4408 = vmatpush1.msra.mxu0 0.0
      %4409 = vmatprep.subr.mxu0 0.0
      %4410 = vmatpush1.msra.mxu0 0.0
      %4411 = vmatprep.subr.mxu0 0.0
      %4412 = vmatpush1.msra.mxu0 0.0
      %4413 = vmatprep.subr.mxu0 0.0
      %4414 = vmatpush1.msra.mxu0 0.0
      %4415 = vmatprep.subr.mxu0 0.0
      %4416 = vmatpush1.msra.mxu0 0.0
      %4417 = vmatprep.subr.mxu0 0.0
      %4418 = vmatpush1.msra.mxu0 0.0
      %4419 = vmatprep.subr.mxu0 0.0
      %4420 = vmatpush1.msra.mxu0 0.0
      %4421 = vmatprep.subr.mxu0 0.0
      %4422 = vmatpush1.msra.mxu0 0.0
      %4423 = vmatprep.subr.mxu0 0.0
      %4424 = vmatpush1.msra.mxu0 0.0
      %4425 = vmatprep.subr.mxu0 0.0
      %4426 = vmatpush1.msra.mxu0 0.0
      %4427 = vmatprep.subr.mxu0 0.0
      %4428 = vmatpush1.msra.mxu0 0.0
      %4429 = vmatprep.subr.mxu0 0.0
      %4430 = vmatpush1.msra.mxu0 0.0
      %4431 = vmatprep.mubr.f32.mxu0 0.0
      %4432 = vmatmul.mubr.f32.gmra.mrb[0].mxu0 %v3481
      %v4433 = vpop.f32.mrb[0].mxu0
      %v4434 = vadd.f32 0.0, %v4433
      %v4435 = vpop.f32.mrb[0].mxu0
      %4436 = vmatprep.mubr.f32.mxu0 0.0
      %4437 = vmatmul.mubr.f32.gmra.mrb[0].mxu0 %v3486
      %v4438 = vpop.f32.mrb[0].mxu0
      %v4439 = vadd.f32 0.0, %v4438
      %v4440 = vpop.f32.mrb[0].mxu0
      %4441 = vdwg.mxu0
      %v4442 = vmul.f32 %v4083, %v4434
      %v4443 = vmul.f32 %v4088, %v4439
      %v4444 = vadd.f32 %v4442, 0.0
      %v4445 = vadd.f32 %v4443, 0.0
      %v4446 = vlaneseq
      %v4447 = vshrl.u32 %v4446, 7
      %v4448 = vsub.s32 3, %v4447
      %v4449 = vrot.slane %v3822, %v4448
      %4450 = vset.pattern.permute.xlu0 3
      %4451 = vperm.xlu0 %4450, %v3905
      %v4452 = vpop.permute.xlu0 %4451
      %4454 = vset.pattern.permute.xlu0 3
      %4455 = vperm.xlu0 %4454, %v3910
      %v4456 = vpop.permute.xlu0 %4455
      %v4458 = vsub.f32 %v4449, %v4452
      %v4459 = vsub.f32 %v4449, %v4456
      %v4460 = vtanh.pop %v4458
      %v4461 = vtanh.pop %v4459
      %4464 = vrot.lane.b32.xlu0 %v4460, 16
      %v4465 = vpop.permute.xlu0 %4464
      %4466 = vrot.lane.b32.xlu0 %v4461, 16
      %v4467 = vpop.permute.xlu0 %4466
      %4470 = vrot.lane.b32.xlu0 %v4460, 32
      %v4471 = vpop.permute.xlu0 %4470
      %4472 = vrot.lane.b32.xlu0 %v4461, 32
      %v4473 = vpop.permute.xlu0 %4472
      %4476 = vrot.lane.b32.xlu0 %v4460, 48
      %v4477 = vpop.permute.xlu0 %4476
      %4478 = vrot.lane.b32.xlu0 %v4461, 48
      %v4479 = vpop.permute.xlu0 %4478
      %4482 = vrot.lane.b32.xlu0 %v4460, 64
      %v4483 = vpop.permute.xlu0 %4482
      %4484 = vrot.lane.b32.xlu0 %v4461, 64
      %v4485 = vpop.permute.xlu0 %4484
      %4488 = vrot.lane.b32.xlu0 %v4460, 80
      %v4489 = vpop.permute.xlu0 %4488
      %4490 = vrot.lane.b32.xlu0 %v4461, 80
      %v4491 = vpop.permute.xlu0 %4490
      %4494 = vrot.lane.b32.xlu0 %v4460, 96
      %v4495 = vpop.permute.xlu0 %4494
      %4496 = vrot.lane.b32.xlu0 %v4461, 96
      %v4497 = vpop.permute.xlu0 %4496
      %4500 = vrot.lane.b32.xlu0 %v4460, 112
      %v4501 = vpop.permute.xlu0 %4500
      %4502 = vrot.lane.b32.xlu0 %v4461, 112
      %v4503 = vpop.permute.xlu0 %4502
      %v4506 = vsel %vm1435, %v4460, %v4465
      %v4507 = vsel %vm1435, %v4461, %v4467
      %v4508 = vsel %vm850, %v4506, %v4471
      %v4509 = vsel %vm850, %v4507, %v4473
      %v4510 = vsel %vm1440, %v4508, %v4477
      %v4511 = vsel %vm1440, %v4509, %v4479
      %v4512 = vsel %vm1443, %v4510, %v4483
      %v4513 = vsel %vm1443, %v4511, %v4485
      %v4514 = vsel %vm1446, %v4512, %v4489
      %v4515 = vsel %vm1446, %v4513, %v4491
      %v4516 = vsel %vm1449, %v4514, %v4495
      %v4517 = vsel %vm1449, %v4515, %v4497
      %v4518 = vsel %vm1452, %v4516, %v4501
      %v4519 = vsel %vm1452, %v4517, %v4503
      %v4520 = vmul.f32 %v796, %v4518
      %v4521 = vmul.f32 %v797, %v4519
      %v4522 = vmul.f32 %v798, %v4518
      %v4523 = vmul.f32 %v799, %v4519
      %v4524 = vmul.f32 %v800, %v4518
      %v4525 = vmul.f32 %v801, %v4519
      %v4526 = vmul.f32 %v802, %v4518
      %v4527 = vmul.f32 %v803, %v4519
      %v4528 = vmul.f32 %v804, %v4518
      %v4529 = vmul.f32 %v805, %v4519
      %v4530 = vmul.f32 %v806, %v4518
      %v4531 = vmul.f32 %v807, %v4519
      %v4532 = vmul.f32 %v808, %v4518
      %v4533 = vmul.f32 %v809, %v4519
      %v4534 = vmul.f32 %v810, %v4518
      %v4535 = vmul.f32 %v811, %v4519
      %4536 = vmatprep.subr.mxu0 0.0
      %4537 = vmatpush1.msra.mxu0 %v4520
      %4538 = vmatprep.subr.mxu0 0.0
      %4539 = vmatpush1.msra.mxu0 %v4521
      %4540 = vmatprep.subr.mxu0 0.0
      %4541 = vmatpush1.msra.mxu0 %v4522
      %4542 = vmatprep.subr.mxu0 0.0
      %4543 = vmatpush1.msra.mxu0 %v4523
      %4544 = vmatprep.subr.mxu0 0.0
      %4545 = vmatpush1.msra.mxu0 %v4524
      %4546 = vmatprep.subr.mxu0 0.0
      %4547 = vmatpush1.msra.mxu0 %v4525
      %4548 = vmatprep.subr.mxu0 0.0
      %4549 = vmatpush1.msra.mxu0 %v4526
      %4550 = vmatprep.subr.mxu0 0.0
      %4551 = vmatpush1.msra.mxu0 %v4527
      %4552 = vmatprep.subr.mxu0 0.0
      %4553 = vmatpush1.msra.mxu0 %v4528
      %4554 = vmatprep.subr.mxu0 0.0
      %4555 = vmatpush1.msra.mxu0 %v4529
      %4556 = vmatprep.subr.mxu0 0.0
      %4557 = vmatpush1.msra.mxu0 %v4530
      %4558 = vmatprep.subr.mxu0 0.0
      %4559 = vmatpush1.msra.mxu0 %v4531
      %4560 = vmatprep.subr.mxu0 0.0
      %4561 = vmatpush1.msra.mxu0 %v4532
      %4562 = vmatprep.subr.mxu0 0.0
      %4563 = vmatpush1.msra.mxu0 %v4533
      %4564 = vmatprep.subr.mxu0 0.0
      %4565 = vmatpush1.msra.mxu0 %v4534
      %4566 = vmatprep.subr.mxu0 0.0
      %4567 = vmatpush1.msra.mxu0 %v4535
      %4568 = vmatprep.subr.mxu0 0.0
      %4569 = vmatpush1.msra.mxu0 0.0
      %4570 = vmatprep.subr.mxu0 0.0
      %4571 = vmatpush1.msra.mxu0 0.0
      %4572 = vmatprep.subr.mxu0 0.0
      %4573 = vmatpush1.msra.mxu0 0.0
      %4574 = vmatprep.subr.mxu0 0.0
      %4575 = vmatpush1.msra.mxu0 0.0
      %4576 = vmatprep.subr.mxu0 0.0
      %4577 = vmatpush1.msra.mxu0 0.0
      %4578 = vmatprep.subr.mxu0 0.0
      %4579 = vmatpush1.msra.mxu0 0.0
      %4580 = vmatprep.subr.mxu0 0.0
      %4581 = vmatpush1.msra.mxu0 0.0
      %4582 = vmatprep.subr.mxu0 0.0
      %4583 = vmatpush1.msra.mxu0 0.0
      %4584 = vmatprep.subr.mxu0 0.0
      %4585 = vmatpush1.msra.mxu0 0.0
      %4586 = vmatprep.subr.mxu0 0.0
      %4587 = vmatpush1.msra.mxu0 0.0
      %4588 = vmatprep.subr.mxu0 0.0
      %4589 = vmatpush1.msra.mxu0 0.0
      %4590 = vmatprep.subr.mxu0 0.0
      %4591 = vmatpush1.msra.mxu0 0.0
      %4592 = vmatprep.subr.mxu0 0.0
      %4593 = vmatpush1.msra.mxu0 0.0
      %4594 = vmatprep.subr.mxu0 0.0
      %4595 = vmatpush1.msra.mxu0 0.0
      %4596 = vmatprep.subr.mxu0 0.0
      %4597 = vmatpush1.msra.mxu0 0.0
      %4598 = vmatprep.subr.mxu0 0.0
      %4599 = vmatpush1.msra.mxu0 0.0
      %4600 = vmatprep.mubr.f32.mxu0 0.0
      %4601 = vmatmul.mubr.f32.gmra.mrb[0].mxu0 %v3481
      %v4602 = vpop.f32.mrb[0].mxu0
      %v4603 = vadd.f32 0.0, %v4602
      %v4604 = vpop.f32.mrb[0].mxu0
      %4605 = vmatprep.mubr.f32.mxu0 0.0
      %4606 = vmatmul.mubr.f32.gmra.mrb[0].mxu0 %v3486
      %v4607 = vpop.f32.mrb[0].mxu0
      %v4608 = vadd.f32 0.0, %v4607
      %v4609 = vpop.f32.mrb[0].mxu0
      %4610 = vdwg.mxu0
      %v4611 = vmul.f32 %v4261, %v4603
      %v4612 = vmul.f32 %v4265, %v4608
      %v4613 = vadd.f32 %v4444, %v4611
      %v4614 = vadd.f32 %v4445, %v4612
      %v4615 = vld [vmem:[%s450 + $0x10] sm:$0xff]
      %v4616 = vld [vmem:[%s450 + $0x18] sm:$0xff]
      %v4617 = vadd.f32 %v4615, %v4613
      %v4618 = vadd.f32 %v4616, %v4614
      %4619 = vst [vmem:[%s450 + $0x10] sm:$0xff] %v4617
      %4620 = vst [vmem:[%s450 + $0x18] sm:$0xff] %v4618
      %v4621 = vld [vmem:[%s450] sm:$0xff]
      %v4622 = vld [vmem:[%s450 + $0x8] sm:$0xff]
      %4623 = vadd.xlane.f32.xlu0 %v4621
      %v4624 = vpop.xlane.xlu0 %4623
      %4625 = vadd.xlane.f32.xlu0 %v4622
      %v4626 = vpop.xlane.xlu0 %4625
      %v4627 = vadd.f32 %v4624, 0.0
      %v4628 = vadd.f32 %v4626, 0.0
      %v4629 = vmul.f32 %v4621, %v4621
      %v4630 = vmul.f32 %v4622, %v4622
      %4631 = vadd.xlane.f32.xlu0 %v4629
      %v4632 = vpop.xlane.xlu0 %4631
      %4633 = vadd.xlane.f32.xlu0 %v4630
      %v4634 = vpop.xlane.xlu0 %4633
      %v4635 = vadd.f32 %v4632, 0.0
      %v4636 = vadd.f32 %v4634, 0.0
      %v4637 = vld [vmem:[%s450 + $0x10] sm:$0xff]
      %v4638 = vld [vmem:[%s450 + $0x18] sm:$0xff]
      %4639 = vadd.xlane.f32.xlu0 %v4637
      %v4640 = vpop.xlane.xlu0 %4639
      %4641 = vadd.xlane.f32.xlu0 %v4638
      %v4642 = vpop.xlane.xlu0 %4641
      %v4643 = vadd.f32 %v4627, %v4640
      %v4644 = vadd.f32 %v4628, %v4642
      %v4645 = vmul.f32 %v4637, %v4637
      %v4646 = vmul.f32 %v4638, %v4638
      %4647 = vadd.xlane.f32.xlu0 %v4645
      %v4648 = vpop.xlane.xlu0 %4647
      %4649 = vadd.xlane.f32.xlu0 %v4646
      %v4650 = vpop.xlane.xlu0 %4649
      %v4651 = vadd.f32 %v4635, %v4648
      %v4652 = vadd.f32 %v4636, %v4650
      %vm4653 = vcmask 7168
      %v4654 = vsel %vm4653, %v4643, %v4651
      %v4655 = vsel %vm4653, %v4644, %v4652
      %vm4656 = vcmask 15360
      %4657 = vst.msk [vmem:[%s456] sm:$0xff] %vm4656, %v4654
      %4658 = vst.msk [vmem:[%s456 + $0x8] sm:$0xff] %vm4656, %v4655
      %s4659 = smul.u32 4, %s25
      %p4660 = scmp.lt.s32.totalorder %s4659, 7
      %s4661 = scalar_select %p4660, %s4659, 7
      %s4662 = smul.addr %s4661, 8
      %s4663 = scalar_lea.vmem %s12, %s4662
      %p4664 = scmp.lt.s32.totalorder %s25, 1
      %s4665 = scalar_select %p4664, %s25, 1
      %s4666 = smul.addr %s4665, 2
      %s4667 = smul.addr %s4666, 8
      %s4668 = scalar_lea.vmem %s13, %s4667
      // Predicated region
      $region69: #{unit_gcn_forward.2} parent=67 // pred_check
        %p4669 = pneg %p300
      $region70: #{unit_gcn_forward.2} parent=67 // pred_check_branch
        %4671 = sbr.rel (%p4669) target = $region72
      $region71: #{unit_gcn_forward.2} parent=67 // pred_region
        %s4672 = smul.u32 4, %s25
      $region72: #{unit_gcn_forward.2} parent=67 // pred_fallthru
        _
      // Predicated region
      $region73: #{unit_gcn_forward.2} parent=67 // pred_check
        %p4673 = pneg %p326
      $region74: #{unit_gcn_forward.2} parent=67 // pred_check_branch
        %4675 = sbr.rel (%p4673) target = $region76
      $region75: #{unit_gcn_forward.2} parent=67 // pred_region
        _
      $region76: #{unit_gcn_forward.2} parent=67 // pred_fallthru
        _
    $region68: #{unit_gcn_forward.2} parent=5 // pred_fallthru
      _
    %p4676 = scmp.le.s32.totalorder 2, %s20
    // Predicated region
    $region77: #{unit_gcn_forward.2} parent=5 // pred_check
      %p4677 = pneg %p4676
    $region78: #{unit_gcn_forward.2} parent=5 // pred_check_branch
      %4679 = sbr.rel (%p4677) target = $region80
    $region79: #{unit_gcn_forward.2} parent=5 // pred_region
      %s4680 = ssub.s32 %s20, 2
      // Predicated region
      $region81: #{unit_gcn_forward.2} parent=79 // pred_check
        %p4681 = pneg %p306
      $region82: #{unit_gcn_forward.2} parent=79 // pred_check_branch
        %4683 = sbr.rel (%p4681) target = $region84
      $region83: #{unit_gcn_forward.2} parent=79 // pred_region
        %s4684 = smul.u32 4, %s26
        %p4685 = scmp.lt.s32.totalorder %s4684, 7
        %s4686 = scalar_select %p4685, %s4684, 7
        %s4687 = smul.addr %s4686, 8
        %s4688 = scalar_lea.vmem %s12, %s4687
      $region84: #{unit_gcn_forward.2} parent=79 // pred_fallthru
        _
      // Predicated region
      $region85: #{unit_gcn_forward.2} parent=79 // pred_check
        %p4689 = pneg %p332
      $region86: #{unit_gcn_forward.2} parent=79 // pred_check_branch
        %4691 = sbr.rel (%p4689) target = $region88
      $region87: #{unit_gcn_forward.2} parent=79 // pred_region
        %p4692 = scmp.lt.s32.totalorder %s26, 1
        %s4693 = scalar_select %p4692, %s26, 1
        %s4694 = smul.addr %s4693, 2
        %s4695 = smul.addr %s4694, 8
        %s4696 = scalar_lea.vmem %s13, %s4695
      $region88: #{unit_gcn_forward.2} parent=79 // pred_fallthru
        _
    $region80: #{unit_gcn_forward.2} parent=5 // pred_fallthru
      _
  $region6: #{unit_gcn_forward.2} parent=0 // loop_footer
    %s24 = sadd.s32 1, %s20
  $region7: #{unit_gcn_forward.2} parent=0 // loop_footer_branch
    %19 = sbr.rel target = $region3
  $region8: #{unit_gcn_forward.2} parent=0 // loop_exit
    _

</llo_original>
